<compile_context>
chip_gen: v6e
topology: v6e:2x2x1
jax: 0.10.0
libtpu: 0.0.40
codegen_flags: <defaults>
</compile_context>

<pallas_src>
import functools

import jax
import jax.numpy as jnp
from jax.experimental import pallas as pl
from jax.experimental.pallas import tpu as pltpu


# ----------------------------------------------------------------------------
# Pallas kernel: fused 3x3 conv (9-tap accumulation) + bias (+ReLU) with the
# 1x1 head convolutions fused into the epilogue (multi-output).
# ----------------------------------------------------------------------------
def _fused_conv_heads_kernel(*refs, num_phases, taps, tr, wo, cin,
                             relu_base, emit_base):
    """refs = (phase_0 .. phase_{P-1}, w_conv, b_conv, w_head, b_head,
               [x_out,] h_out)

    phase_k : (Hp, Wp, cin)   polyphase component of the padded input image
    w_conv  : (9*cin, cmid)   3x3 conv weight, rows ordered (dy, dx, cin)
    b_conv  : (1, cmid)
    w_head  : (cmid, fpad)    all 1x1 heads concatenated along out-channels,
                              zero-padded to a lane-dense multiple of 128
    b_head  : (1, fpad)
    x_out   : (tr*wo, cmid)   base-net output tile (only when emit_base)
    h_out   : (tr*wo, fpad)   concatenated head-output tile (lane dense)
    """
    phase_refs = refs[:num_phases]
    w_conv_ref, b_conv_ref, w_head_ref, b_head_ref = \
        refs[num_phases:num_phases + 4]
    out_refs = refs[num_phases + 4:]
    if emit_base:
        x_out_ref, h_out_ref = out_refs
    else:
        h_out_ref = out_refs[0]

    r = pl.program_id(1)
    row0 = pl.multiple_of(r * tr, tr)        # first output row of this tile

    cmid = w_conv_ref.shape[-1]
    acc = jnp.zeros((tr * wo, cmid), jnp.float32)

    # 9-tap accumulation from the VMEM-resident tile: no im2col, the input is
    # read from HBM exactly once per (batch, tile).
    for t, (p, ro, co) in enumerate(taps):
        tap = phase_refs[p][pl.ds(row0 + ro, tr), pl.ds(co, wo), :]  # (tr,wo,cin)
        tap2d = tap.reshape(tr * wo, cin)    # wo is a multiple of 8 -> free
        w_tap = w_conv_ref[pl.ds(t * cin, cin), :]                   # (cin,cmid)
        acc = acc + jnp.dot(tap2d, w_tap, preferred_element_type=jnp.float32)

    xm = acc + b_conv_ref[...]
    if relu_base:
        xm = jnp.maximum(xm, 0.0)
    if emit_base:
        x_out_ref[...] = xm.astype(x_out_ref.dtype)

    # Head epilogue: the base-net tile is still on-chip -> one extra MXU
    # matmul and a lane-dense (multiple-of-128) store.
    h = jnp.dot(xm, w_head_ref[...], preferred_element_type=jnp.float32)
    h_out_ref[...] = (h + b_head_ref[...]).astype(h_out_ref.dtype)


# ----------------------------------------------------------------------------
# Wrapper: padding / polyphase split / tiling plumbing around the kernel
# ----------------------------------------------------------------------------
def _pick_row_tile(ho, wo, target_rows=512):
    """Largest divisor of `ho` whose tile has at most ~target_rows matmul rows."""
    tr = max(1, min(ho, target_rows // max(wo, 1)))
    while ho % tr:
        tr -= 1
    return tr


def fused_conv3x3_heads(x_nhwc, w_conv, b_conv, w_head, b_head, *,
                        stride, relu_base=True, emit_base=True,
                        target_rows=512):
    """3x3 conv (pad=1, given stride) + bias (+ReLU), with all 1x1 heads
    (concatenated / zero-padded in `w_head`) fused into the same kernel.
    Returns (base_out, head_slab) if emit_base else head_slab, NHWC."""
    n, h, w, cin = x_nhwc.shape
    ho = (h + 2 - 3) // stride + 1
    wo = (w + 2 - 3) // stride + 1
    cmid = w_conv.shape[1]
    fpad = w_head.shape[1]

    # pad=1 halo; for stride 2 do a polyphase split so every tap inside the
    # kernel is a unit-stride rectangular slice (no strided VMEM reads, no 9x
    # im2col expansion through HBM).
    xp = jnp.pad(x_nhwc, ((0, 0), (1, 1), (1, 1), (0, 0)))
    if stride == 1:
        phases = [xp]
    else:
        phases = [xp[:, py::stride, px::stride, :]
                  for py in range(stride) for px in range(stride)]
    taps = tuple(((dy % stride) * stride + (dx % stride), dy // stride, dx // stride)
                 for dy in range(3) for dx in range(3))

    tr = _pick_row_tile(ho, wo, target_rows)
    grid = (n, ho // tr)

    phase_specs = [
        pl.BlockSpec((None,) + tuple(p.shape[1:]), lambda b, r: (b, 0, 0, 0))
        for p in phases
    ]
    param_specs = [
        pl.BlockSpec(tuple(w_conv.shape), lambda b, r: (0, 0)),
        pl.BlockSpec(tuple(b_conv.shape), lambda b, r: (0, 0)),
        pl.BlockSpec(tuple(w_head.shape), lambda b, r: (0, 0)),
        pl.BlockSpec(tuple(b_head.shape), lambda b, r: (0, 0)),
    ]

    out_shapes = []
    out_specs = []
    if emit_base:
        out_shapes.append(jax.ShapeDtypeStruct((n, ho * wo, cmid), jnp.float32))
        out_specs.append(pl.BlockSpec((None, tr * wo, cmid),
                                      lambda b, r: (b, r, 0)))
    out_shapes.append(jax.ShapeDtypeStruct((n, ho * wo, fpad), jnp.float32))
    out_specs.append(pl.BlockSpec((None, tr * wo, fpad),
                                  lambda b, r: (b, r, 0)))

    kernel = functools.partial(
        _fused_conv_heads_kernel, num_phases=len(phases), taps=taps,
        tr=tr, wo=wo, cin=cin, relu_base=relu_base, emit_base=emit_base)

    outs = pl.pallas_call(
        kernel,
        out_shape=tuple(out_shapes),
        grid=grid,
        in_specs=phase_specs + param_specs,
        out_specs=tuple(out_specs),
        compiler_params=pltpu.CompilerParams(
            # batch axis and row-tile axis are fully independent -> megacore
            # (2 TensorCores on v7x) can shard them.
            dimension_semantics=("parallel", "parallel"),
            vmem_limit_bytes=32 * 1024 * 1024),
    )(*phases, w_conv, b_conv, w_head, b_head)

    if emit_base:
        x_out, h_out = outs
        return (x_out.reshape(n, ho, wo, cmid),
                h_out.reshape(n, ho, wo, fpad))
    h_out = outs[0]
    return h_out.reshape(n, ho, wo, fpad)


# ----------------------------------------------------------------------------
# Shell2Stage parameters & forward
# ----------------------------------------------------------------------------
# TODO(synk): base_net / head_nets are abstract nn.Modules in the PyTorch
# source; a representative conv configuration is instantiated here.
def init_params(key, in_ch=4, base1_ch=16, base2_ch=32,
                head1_chs=(8, 12), head2_chs=(8, 12)):
    ks = jax.random.split(key, 8)

    def wconv(k, cin, cout):            # rows ordered (dy, dx, cin)
        return jax.random.normal(k, (9 * cin, cout), jnp.float32) * 0.05

    def bias(k, c):
        return jax.random.normal(k, (1, c), jnp.float32) * 0.01

    def head_pack(kw, kb, cin, chs):
        f = int(sum(chs))
        fpad = ((f + 127) // 128) * 128          # lane-dense output slab
        wr = jax.random.normal(kw, (cin, f), jnp.float32) * 0.05
        br = jax.random.normal(kb, (1, f), jnp.float32) * 0.01
        wp = jnp.zeros((cin, fpad), jnp.float32).at[:, :f].set(wr)
        bp = jnp.zeros((1, fpad), jnp.float32).at[:, :f].set(br)
        return wp, bp

    params = {
        "base_w1": wconv(ks[0], in_ch, base1_ch),
        "base_b1": bias(ks[1], base1_ch),
        "base_w2": wconv(ks[2], base1_ch, base2_ch),
        "base_b2": bias(ks[3], base2_ch),
    }
    params["h1_w"], params["h1_b"] = head_pack(ks[4], ks[5], base1_ch, head1_chs)
    params["h2_w"], params["h2_b"] = head_pack(ks[6], ks[7], base2_ch, head2_chs)
    return params


def shell2stage_forward(params, x_nchw, *, head1_chs=(8, 12), head2_chs=(8, 12)):
    """Faithful to Shell2Stage.forward:
        x1, x2 = base_net(x)
        h1 = [hn(x1) for hn in head_nets1]
        h2 = [hn(x2) for hn in head_nets2]
        return h1 + h2
    External layout is NCHW (PyTorch); compute is NHWC (channels on lanes)."""
    x = jnp.transpose(x_nchw, (0, 2, 3, 1)).astype(jnp.float32)

    # stage 1: base conv (stride 1) + head_nets1 fused; x1 is needed by stage 2
    x1, h1_slab = fused_conv3x3_heads(
        x, params["base_w1"], params["base_b1"],
        params["h1_w"], params["h1_b"], stride=1, emit_base=True)

    # stage 2: base conv (stride 2, consumes x1) + head_nets2 fused;
    # x2 is never written back to HBM (only head outputs are returned).
    h2_slab = fused_conv3x3_heads(
        x1, params["base_w2"], params["base_b2"],
        params["h2_w"], params["h2_b"], stride=2, emit_base=False)

    # split the lane-padded head slabs back into individual head outputs (NCHW)
    outs = []
    for slab, chs in ((h1_slab, head1_chs), (h2_slab, head2_chs)):
        off = 0
        for c in chs:
            outs.append(jnp.transpose(slab[..., off:off + c], (0, 3, 1, 2)))
            off += c
    return outs


# ----------------------------------------------------------------------------
# Pure-JAX reference (for correctness check)
# ----------------------------------------------------------------------------
def reference_forward(params, x_nchw, *, head1_chs=(8, 12), head2_chs=(8, 12)):
    x = jnp.transpose(x_nchw, (0, 2, 3, 1)).astype(jnp.float32)

    def conv3x3(inp, w_mat, b, stride):
        cin = inp.shape[-1]
        w = w_mat.reshape(3, 3, cin, -1)            # rows are (dy, dx, cin)
        out = jax.lax.conv_general_dilated(
            inp, w, window_strides=(stride, stride), padding=((1, 1), (1, 1)),
            dimension_numbers=("NHWC", "HWIO", "NHWC"),
            precision=jax.lax.Precision.HIGHEST)
        return jnp.maximum(out + b.reshape(1, 1, 1, -1), 0.0)

    def heads(inp, wp, bp, chs):
        full = jnp.einsum("nhwc,cf->nhwf", inp, wp,
                          precision=jax.lax.Precision.HIGHEST)
        full = full + bp.reshape(1, 1, 1, -1)
        res, off = [], 0
        for c in chs:
            res.append(jnp.transpose(full[..., off:off + c], (0, 3, 1, 2)))
            off += c
        return res

    x1 = conv3x3(x, params["base_w1"], params["base_b1"], 1)
    x2 = conv3x3(x1, params["base_w2"], params["base_b2"], 2)
    return (heads(x1, params["h1_w"], params["h1_b"], head1_chs)
            + heads(x2, params["h2_w"], params["h2_b"], head2_chs))


if __name__ == "__main__":
    key = jax.random.PRNGKey(0)
    kp, kx = jax.random.split(key)
    params = init_params(kp)

    # small NCHW input: batch=2, channels=4, spatial=16x16
    x = jax.random.normal(kx, (2, 4, 16, 16), jnp.float32)

    outs = jax.jit(shell2stage_forward)(params, x)
    outs = [jax.block_until_ready(o) for o in outs]

    expected_shapes = [(2, 8, 16, 16), (2, 12, 16, 16),
                       (2, 8, 8, 8), (2, 12, 8, 8)]
    assert [tuple(o.shape) for o in outs] == expected_shapes, \
        [tuple(o.shape) for o in outs]
    assert all(bool(jnp.all(jnp.isfinite(o))) for o in outs)

    # numerical check against a pure-JAX reference (tolerance covers MXU
    # f32-matmul pass differences)
    refs = reference_forward(params, x)
    for o, rf in zip(outs, refs):
        err = float(jnp.max(jnp.abs(o - rf)))
        assert jnp.allclose(o, rf, rtol=2e-2, atol=2e-2), err

    print("KERNEL_OK")
</pallas_src>

<mosaic_0001>
module attributes {stable_mosaic.version = 11 : i64} {
  func.func @_fused_conv_heads_kernel(%arg0: i32, %arg1: i32, %arg2: memref<1x18x18x4xf32, #tpu.memory_space<vmem>>, %arg3: memref<36x16xf32, #tpu.memory_space<vmem>>, %arg4: memref<1x16xf32, #tpu.memory_space<vmem>>, %arg5: memref<16x128xf32, #tpu.memory_space<vmem>>, %arg6: memref<1x128xf32, #tpu.memory_space<vmem>>, %arg7: memref<1x256x16xf32, #tpu.memory_space<vmem>>, %arg8: memref<1x256x128xf32, #tpu.memory_space<vmem>>) attributes {dimension_semantics = [#tpu.dimension_semantics<parallel>, #tpu.dimension_semantics<parallel>], iteration_bounds = array<i64: 2, 1>, scalar_prefetch = 0 : i64, scratch_operands = 0 : i64, tpu.core_type = #tpu.core_type<tc>, window_params = [{transform_indices = @transform_0, window_bounds = array<i64: 1, 18, 18, 4>}, {pipeline_mode = #tpu.pipeline_mode<synchronous>, transform_indices = @transform_1, window_bounds = array<i64: 36, 16>}, {pipeline_mode = #tpu.pipeline_mode<synchronous>, transform_indices = @transform_2, window_bounds = array<i64: 1, 16>}, {pipeline_mode = #tpu.pipeline_mode<synchronous>, transform_indices = @transform_3, window_bounds = array<i64: 16, 128>}, {pipeline_mode = #tpu.pipeline_mode<synchronous>, transform_indices = @transform_4, window_bounds = array<i64: 1, 128>}, {transform_indices = @transform_5, window_bounds = array<i64: 1, 256, 16>}, {transform_indices = @transform_6, window_bounds = array<i64: 1, 256, 128>}]} {
    %c16_i32 = arith.constant 16 : i32
    %0 = arith.muli %arg1, %c16_i32 : i32
    %1 = tpu.assume_multiple %0, 16 : i32
    %cst = arith.constant 0.000000e+00 : f32
    %2 = vector.broadcast %cst : f32 to vector<256x16xf32>
    %c0_i32 = arith.constant 0 : i32
    %3 = arith.addi %1, %c0_i32 : i32
    %c0 = arith.constant 0 : index
    %4 = arith.index_cast %3 : i32 to index
    %c0_0 = arith.constant 0 : index
    %c0_1 = arith.constant 0 : index
    %5 = vector.load %arg2[%c0, %4, %c0_0, %c0_1] : memref<1x18x18x4xf32, #tpu.memory_space<vmem>>, vector<1x16x16x4xf32>
    %6 = vector.shape_cast %5 : vector<1x16x16x4xf32> to vector<16x16x4xf32>
    %7 = vector.shape_cast %6 : vector<16x16x4xf32> to vector<256x4xf32>
    %c0_2 = arith.constant 0 : index
    %c0_3 = arith.constant 0 : index
    %8 = vector.load %arg3[%c0_2, %c0_3] : memref<36x16xf32, #tpu.memory_space<vmem>>, vector<4x16xf32>
    %cst_4 = arith.constant dense<0.000000e+00> : vector<256x16xf32>
    %9 = tpu.matmul %7, %8, %cst_4 {dimension_numbers = #tpu.dot_dimension_numbers<[1], [0], [0], [1], [0, 0, 1, 1], [], []>} : vector<256x4xf32>, vector<4x16xf32>, vector<256x16xf32> -> vector<256x16xf32>
    %10 = arith.addf %2, %9 : vector<256x16xf32>
    %c0_i32_5 = arith.constant 0 : i32
    %11 = arith.addi %1, %c0_i32_5 : i32
    %c0_6 = arith.constant 0 : index
    %12 = arith.index_cast %11 : i32 to index
    %c1 = arith.constant 1 : index
    %c0_7 = arith.constant 0 : index
    %13 = vector.load %arg2[%c0_6, %12, %c1, %c0_7] : memref<1x18x18x4xf32, #tpu.memory_space<vmem>>, vector<1x16x16x4xf32>
    %14 = vector.shape_cast %13 : vector<1x16x16x4xf32> to vector<16x16x4xf32>
    %15 = vector.shape_cast %14 : vector<16x16x4xf32> to vector<256x4xf32>
    %c4 = arith.constant 4 : index
    %c0_8 = arith.constant 0 : index
    %16 = vector.load %arg3[%c4, %c0_8] : memref<36x16xf32, #tpu.memory_space<vmem>>, vector<4x16xf32>
    %cst_9 = arith.constant dense<0.000000e+00> : vector<256x16xf32>
    %17 = tpu.matmul %15, %16, %cst_9 {dimension_numbers = #tpu.dot_dimension_numbers<[1], [0], [0], [1], [0, 0, 1, 1], [], []>} : vector<256x4xf32>, vector<4x16xf32>, vector<256x16xf32> -> vector<256x16xf32>
    %18 = arith.addf %10, %17 : vector<256x16xf32>
    %c0_i32_10 = arith.constant 0 : i32
    %19 = arith.addi %1, %c0_i32_10 : i32
    %c0_11 = arith.constant 0 : index
    %20 = arith.index_cast %19 : i32 to index
    %c2 = arith.constant 2 : index
    %c0_12 = arith.constant 0 : index
    %21 = vector.load %arg2[%c0_11, %20, %c2, %c0_12] : memref<1x18x18x4xf32, #tpu.memory_space<vmem>>, vector<1x16x16x4xf32>
    %22 = vector.shape_cast %21 : vector<1x16x16x4xf32> to vector<16x16x4xf32>
    %23 = vector.shape_cast %22 : vector<16x16x4xf32> to vector<256x4xf32>
    %c8 = arith.constant 8 : index
    %c0_13 = arith.constant 0 : index
    %24 = vector.load %arg3[%c8, %c0_13] : memref<36x16xf32, #tpu.memory_space<vmem>>, vector<4x16xf32>
    %cst_14 = arith.constant dense<0.000000e+00> : vector<256x16xf32>
    %25 = tpu.matmul %23, %24, %cst_14 {dimension_numbers = #tpu.dot_dimension_numbers<[1], [0], [0], [1], [0, 0, 1, 1], [], []>} : vector<256x4xf32>, vector<4x16xf32>, vector<256x16xf32> -> vector<256x16xf32>
    %26 = arith.addf %18, %25 : vector<256x16xf32>
    %c1_i32 = arith.constant 1 : i32
    %27 = arith.addi %1, %c1_i32 : i32
    %c0_15 = arith.constant 0 : index
    %28 = arith.index_cast %27 : i32 to index
    %c0_16 = arith.constant 0 : index
    %c0_17 = arith.constant 0 : index
    %29 = vector.load %arg2[%c0_15, %28, %c0_16, %c0_17] : memref<1x18x18x4xf32, #tpu.memory_space<vmem>>, vector<1x16x16x4xf32>
    %30 = vector.shape_cast %29 : vector<1x16x16x4xf32> to vector<16x16x4xf32>
    %31 = vector.shape_cast %30 : vector<16x16x4xf32> to vector<256x4xf32>
    %c12 = arith.constant 12 : index
    %c0_18 = arith.constant 0 : index
    %32 = vector.load %arg3[%c12, %c0_18] : memref<36x16xf32, #tpu.memory_space<vmem>>, vector<4x16xf32>
    %cst_19 = arith.constant dense<0.000000e+00> : vector<256x16xf32>
    %33 = tpu.matmul %31, %32, %cst_19 {dimension_numbers = #tpu.dot_dimension_numbers<[1], [0], [0], [1], [0, 0, 1, 1], [], []>} : vector<256x4xf32>, vector<4x16xf32>, vector<256x16xf32> -> vector<256x16xf32>
    %34 = arith.addf %26, %33 : vector<256x16xf32>
    %c1_i32_20 = arith.constant 1 : i32
    %35 = arith.addi %1, %c1_i32_20 : i32
    %c0_21 = arith.constant 0 : index
    %36 = arith.index_cast %35 : i32 to index
    %c1_22 = arith.constant 1 : index
    %c0_23 = arith.constant 0 : index
    %37 = vector.load %arg2[%c0_21, %36, %c1_22, %c0_23] : memref<1x18x18x4xf32, #tpu.memory_space<vmem>>, vector<1x16x16x4xf32>
    %38 = vector.shape_cast %37 : vector<1x16x16x4xf32> to vector<16x16x4xf32>
    %39 = vector.shape_cast %38 : vector<16x16x4xf32> to vector<256x4xf32>
    %c16 = arith.constant 16 : index
    %c0_24 = arith.constant 0 : index
    %40 = vector.load %arg3[%c16, %c0_24] : memref<36x16xf32, #tpu.memory_space<vmem>>, vector<4x16xf32>
    %cst_25 = arith.constant dense<0.000000e+00> : vector<256x16xf32>
    %41 = tpu.matmul %39, %40, %cst_25 {dimension_numbers = #tpu.dot_dimension_numbers<[1], [0], [0], [1], [0, 0, 1, 1], [], []>} : vector<256x4xf32>, vector<4x16xf32>, vector<256x16xf32> -> vector<256x16xf32>
    %42 = arith.addf %34, %41 : vector<256x16xf32>
    %c1_i32_26 = arith.constant 1 : i32
    %43 = arith.addi %1, %c1_i32_26 : i32
    %c0_27 = arith.constant 0 : index
    %44 = arith.index_cast %43 : i32 to index
    %c2_28 = arith.constant 2 : index
    %c0_29 = arith.constant 0 : index
    %45 = vector.load %arg2[%c0_27, %44, %c2_28, %c0_29] : memref<1x18x18x4xf32, #tpu.memory_space<vmem>>, vector<1x16x16x4xf32>
    %46 = vector.shape_cast %45 : vector<1x16x16x4xf32> to vector<16x16x4xf32>
    %47 = vector.shape_cast %46 : vector<16x16x4xf32> to vector<256x4xf32>
    %c20 = arith.constant 20 : index
    %c0_30 = arith.constant 0 : index
    %48 = vector.load %arg3[%c20, %c0_30] : memref<36x16xf32, #tpu.memory_space<vmem>>, vector<4x16xf32>
    %cst_31 = arith.constant dense<0.000000e+00> : vector<256x16xf32>
    %49 = tpu.matmul %47, %48, %cst_31 {dimension_numbers = #tpu.dot_dimension_numbers<[1], [0], [0], [1], [0, 0, 1, 1], [], []>} : vector<256x4xf32>, vector<4x16xf32>, vector<256x16xf32> -> vector<256x16xf32>
    %50 = arith.addf %42, %49 : vector<256x16xf32>
    %c2_i32 = arith.constant 2 : i32
    %51 = arith.addi %1, %c2_i32 : i32
    %c0_32 = arith.constant 0 : index
    %52 = arith.index_cast %51 : i32 to index
    %c0_33 = arith.constant 0 : index
    %c0_34 = arith.constant 0 : index
    %53 = vector.load %arg2[%c0_32, %52, %c0_33, %c0_34] : memref<1x18x18x4xf32, #tpu.memory_space<vmem>>, vector<1x16x16x4xf32>
    %54 = vector.shape_cast %53 : vector<1x16x16x4xf32> to vector<16x16x4xf32>
    %55 = vector.shape_cast %54 : vector<16x16x4xf32> to vector<256x4xf32>
    %c24 = arith.constant 24 : index
    %c0_35 = arith.constant 0 : index
    %56 = vector.load %arg3[%c24, %c0_35] : memref<36x16xf32, #tpu.memory_space<vmem>>, vector<4x16xf32>
    %cst_36 = arith.constant dense<0.000000e+00> : vector<256x16xf32>
    %57 = tpu.matmul %55, %56, %cst_36 {dimension_numbers = #tpu.dot_dimension_numbers<[1], [0], [0], [1], [0, 0, 1, 1], [], []>} : vector<256x4xf32>, vector<4x16xf32>, vector<256x16xf32> -> vector<256x16xf32>
    %58 = arith.addf %50, %57 : vector<256x16xf32>
    %c2_i32_37 = arith.constant 2 : i32
    %59 = arith.addi %1, %c2_i32_37 : i32
    %c0_38 = arith.constant 0 : index
    %60 = arith.index_cast %59 : i32 to index
    %c1_39 = arith.constant 1 : index
    %c0_40 = arith.constant 0 : index
    %61 = vector.load %arg2[%c0_38, %60, %c1_39, %c0_40] : memref<1x18x18x4xf32, #tpu.memory_space<vmem>>, vector<1x16x16x4xf32>
    %62 = vector.shape_cast %61 : vector<1x16x16x4xf32> to vector<16x16x4xf32>
    %63 = vector.shape_cast %62 : vector<16x16x4xf32> to vector<256x4xf32>
    %c28 = arith.constant 28 : index
    %c0_41 = arith.constant 0 : index
    %64 = vector.load %arg3[%c28, %c0_41] : memref<36x16xf32, #tpu.memory_space<vmem>>, vector<4x16xf32>
    %cst_42 = arith.constant dense<0.000000e+00> : vector<256x16xf32>
    %65 = tpu.matmul %63, %64, %cst_42 {dimension_numbers = #tpu.dot_dimension_numbers<[1], [0], [0], [1], [0, 0, 1, 1], [], []>} : vector<256x4xf32>, vector<4x16xf32>, vector<256x16xf32> -> vector<256x16xf32>
    %66 = arith.addf %58, %65 : vector<256x16xf32>
    %c2_i32_43 = arith.constant 2 : i32
    %67 = arith.addi %1, %c2_i32_43 : i32
    %c0_44 = arith.constant 0 : index
    %68 = arith.index_cast %67 : i32 to index
    %c2_45 = arith.constant 2 : index
    %c0_46 = arith.constant 0 : index
    %69 = vector.load %arg2[%c0_44, %68, %c2_45, %c0_46] : memref<1x18x18x4xf32, #tpu.memory_space<vmem>>, vector<1x16x16x4xf32>
    %70 = vector.shape_cast %69 : vector<1x16x16x4xf32> to vector<16x16x4xf32>
    %71 = vector.shape_cast %70 : vector<16x16x4xf32> to vector<256x4xf32>
    %c32 = arith.constant 32 : index
    %c0_47 = arith.constant 0 : index
    %72 = vector.load %arg3[%c32, %c0_47] : memref<36x16xf32, #tpu.memory_space<vmem>>, vector<4x16xf32>
    %cst_48 = arith.constant dense<0.000000e+00> : vector<256x16xf32>
    %73 = tpu.matmul %71, %72, %cst_48 {dimension_numbers = #tpu.dot_dimension_numbers<[1], [0], [0], [1], [0, 0, 1, 1], [], []>} : vector<256x4xf32>, vector<4x16xf32>, vector<256x16xf32> -> vector<256x16xf32>
    %74 = arith.addf %66, %73 : vector<256x16xf32>
    %c0_49 = arith.constant 0 : index
    %c0_50 = arith.constant 0 : index
    %75 = vector.load %arg4[%c0_49, %c0_50] : memref<1x16xf32, #tpu.memory_space<vmem>>, vector<1x16xf32>
    %76 = vector.broadcast %75 : vector<1x16xf32> to vector<256x16xf32>
    %77 = arith.addf %74, %76 : vector<256x16xf32>
    %cst_51 = arith.constant 0.000000e+00 : f32
    %78 = vector.broadcast %cst_51 : f32 to vector<256x16xf32>
    %79 = arith.maximumf %77, %78 : vector<256x16xf32>
    %c0_52 = arith.constant 0 : index
    %c0_53 = arith.constant 0 : index
    %c0_54 = arith.constant 0 : index
    %80 = vector.load %arg7[%c0_52, %c0_53, %c0_54] : memref<1x256x16xf32, #tpu.memory_space<vmem>>, vector<1x256x16xf32>
    %81 = vector.shape_cast %80 : vector<1x256x16xf32> to vector<256x16xf32>
    %82 = vector.shape_cast %79 : vector<256x16xf32> to vector<1x256x16xf32>
    tpu.vector_store %arg7[%c0_52, %c0_53, %c0_54], %82 {strides = array<i32>} : memref<1x256x16xf32, #tpu.memory_space<vmem>>, vector<1x256x16xf32>,
    %c0_55 = arith.constant 0 : index
    %c0_56 = arith.constant 0 : index
    %83 = vector.load %arg5[%c0_55, %c0_56] : memref<16x128xf32, #tpu.memory_space<vmem>>, vector<16x128xf32>
    %cst_57 = arith.constant dense<0.000000e+00> : vector<256x128xf32>
    %84 = tpu.matmul %79, %83, %cst_57 {dimension_numbers = #tpu.dot_dimension_numbers<[1], [0], [0], [1], [0, 0, 1, 1], [], []>} : vector<256x16xf32>, vector<16x128xf32>, vector<256x128xf32> -> vector<256x128xf32>
    %c0_58 = arith.constant 0 : index
    %c0_59 = arith.constant 0 : index
    %85 = vector.load %arg6[%c0_58, %c0_59] : memref<1x128xf32, #tpu.memory_space<vmem>>, vector<1x128xf32>
    %86 = vector.broadcast %85 : vector<1x128xf32> to vector<256x128xf32>
    %87 = arith.addf %84, %86 : vector<256x128xf32>
    %c0_60 = arith.constant 0 : index
    %c0_61 = arith.constant 0 : index
    %c0_62 = arith.constant 0 : index
    %88 = vector.load %arg8[%c0_60, %c0_61, %c0_62] : memref<1x256x128xf32, #tpu.memory_space<vmem>>, vector<1x256x128xf32>
    %89 = vector.shape_cast %88 : vector<1x256x128xf32> to vector<256x128xf32>
    %90 = vector.shape_cast %87 : vector<256x128xf32> to vector<1x256x128xf32>
    tpu.vector_store %arg8[%c0_60, %c0_61, %c0_62], %90 {strides = array<i32>} : memref<1x256x128xf32, #tpu.memory_space<vmem>>, vector<1x256x128xf32>,
    return
  }
  func.func @transform_0(%arg0: i32, %arg1: i32) -> (i32, i32, i32, i32) {
    %c0_i32 = arith.constant 0 : i32
    %c0_i32_0 = arith.constant 0 : i32
    %c0_i32_1 = arith.constant 0 : i32
    %c0_i32_2 = arith.constant 0 : i32
    return %arg0, %c0_i32, %c0_i32_0, %c0_i32_1 : i32, i32, i32, i32
  }
  func.func @transform_1(%arg0: i32, %arg1: i32) -> (i32, i32) {
    %c0_i32 = arith.constant 0 : i32
    %c0_i32_0 = arith.constant 0 : i32
    %c0_i32_1 = arith.constant 0 : i32
    return %c0_i32, %c0_i32_0 : i32, i32
  }
  func.func @transform_2(%arg0: i32, %arg1: i32) -> (i32, i32) {
    %c0_i32 = arith.constant 0 : i32
    %c0_i32_0 = arith.constant 0 : i32
    %c0_i32_1 = arith.constant 0 : i32
    return %c0_i32, %c0_i32_0 : i32, i32
  }
  func.func @transform_3(%arg0: i32, %arg1: i32) -> (i32, i32) {
    %c0_i32 = arith.constant 0 : i32
    %c0_i32_0 = arith.constant 0 : i32
    %c0_i32_1 = arith.constant 0 : i32
    return %c0_i32, %c0_i32_0 : i32, i32
  }
  func.func @transform_4(%arg0: i32, %arg1: i32) -> (i32, i32) {
    %c0_i32 = arith.constant 0 : i32
    %c0_i32_0 = arith.constant 0 : i32
    %c0_i32_1 = arith.constant 0 : i32
    return %c0_i32, %c0_i32_0 : i32, i32
  }
  func.func @transform_5(%arg0: i32, %arg1: i32) -> (i32, i32, i32) {
    %c0_i32 = arith.constant 0 : i32
    %c0_i32_0 = arith.constant 0 : i32
    return %arg0, %arg1, %c0_i32 : i32, i32, i32
  }
  func.func @transform_6(%arg0: i32, %arg1: i32) -> (i32, i32, i32) {
    %c0_i32 = arith.constant 0 : i32
    %c0_i32_0 = arith.constant 0 : i32
    return %arg0, %arg1, %c0_i32 : i32, i32, i32
  }
}

module attributes {stable_mosaic.version = 11 : i64} {
  func.func @_fused_conv_heads_kernel(%arg0: i32, %arg1: i32, %arg2: memref<1x9x9x16xf32, #tpu.memory_space<vmem>>, %arg3: memref<1x9x9x16xf32, #tpu.memory_space<vmem>>, %arg4: memref<1x9x9x16xf32, #tpu.memory_space<vmem>>, %arg5: memref<1x9x9x16xf32, #tpu.memory_space<vmem>>, %arg6: memref<144x32xf32, #tpu.memory_space<vmem>>, %arg7: memref<1x32xf32, #tpu.memory_space<vmem>>, %arg8: memref<32x128xf32, #tpu.memory_space<vmem>>, %arg9: memref<1x128xf32, #tpu.memory_space<vmem>>, %arg10: memref<1x64x128xf32, #tpu.memory_space<vmem>>) attributes {dimension_semantics = [#tpu.dimension_semantics<parallel>, #tpu.dimension_semantics<parallel>], iteration_bounds = array<i64: 2, 1>, scalar_prefetch = 0 : i64, scratch_operands = 0 : i64, tpu.core_type = #tpu.core_type<tc>, window_params = [{transform_indices = @transform_0, window_bounds = array<i64: 1, 9, 9, 16>}, {transform_indices = @transform_1, window_bounds = array<i64: 1, 9, 9, 16>}, {transform_indices = @transform_2, window_bounds = array<i64: 1, 9, 9, 16>}, {transform_indices = @transform_3, window_bounds = array<i64: 1, 9, 9, 16>}, {pipeline_mode = #tpu.pipeline_mode<synchronous>, transform_indices = @transform_4, window_bounds = array<i64: 144, 32>}, {pipeline_mode = #tpu.pipeline_mode<synchronous>, transform_indices = @transform_5, window_bounds = array<i64: 1, 32>}, {pipeline_mode = #tpu.pipeline_mode<synchronous>, transform_indices = @transform_6, window_bounds = array<i64: 32, 128>}, {pipeline_mode = #tpu.pipeline_mode<synchronous>, transform_indices = @transform_7, window_bounds = array<i64: 1, 128>}, {transform_indices = @transform_8, window_bounds = array<i64: 1, 64, 128>}]} {
    %c8_i32 = arith.constant 8 : i32
    %0 = arith.muli %arg1, %c8_i32 : i32
    %1 = tpu.assume_multiple %0, 8 : i32
    %cst = arith.constant 0.000000e+00 : f32
    %2 = vector.broadcast %cst : f32 to vector<64x32xf32>
    %c0_i32 = arith.constant 0 : i32
    %3 = arith.addi %1, %c0_i32 : i32
    %c0 = arith.constant 0 : index
    %4 = arith.index_cast %3 : i32 to index
    %c0_0 = arith.constant 0 : index
    %c0_1 = arith.constant 0 : index
    %5 = vector.load %arg2[%c0, %4, %c0_0, %c0_1] : memref<1x9x9x16xf32, #tpu.memory_space<vmem>>, vector<1x8x8x16xf32>
    %6 = vector.shape_cast %5 : vector<1x8x8x16xf32> to vector<8x8x16xf32>
    %7 = vector.shape_cast %6 : vector<8x8x16xf32> to vector<64x16xf32>
    %c0_2 = arith.constant 0 : index
    %c0_3 = arith.constant 0 : index
    %8 = vector.load %arg6[%c0_2, %c0_3] : memref<144x32xf32, #tpu.memory_space<vmem>>, vector<16x32xf32>
    %cst_4 = arith.constant dense<0.000000e+00> : vector<64x32xf32>
    %9 = tpu.matmul %7, %8, %cst_4 {dimension_numbers = #tpu.dot_dimension_numbers<[1], [0], [0], [1], [0, 0, 1, 1], [], []>} : vector<64x16xf32>, vector<16x32xf32>, vector<64x32xf32> -> vector<64x32xf32>
    %10 = arith.addf %2, %9 : vector<64x32xf32>
    %c0_i32_5 = arith.constant 0 : i32
    %11 = arith.addi %1, %c0_i32_5 : i32
    %c0_6 = arith.constant 0 : index
    %12 = arith.index_cast %11 : i32 to index
    %c0_7 = arith.constant 0 : index
    %c0_8 = arith.constant 0 : index
    %13 = vector.load %arg3[%c0_6, %12, %c0_7, %c0_8] : memref<1x9x9x16xf32, #tpu.memory_space<vmem>>, vector<1x8x8x16xf32>
    %14 = vector.shape_cast %13 : vector<1x8x8x16xf32> to vector<8x8x16xf32>
    %15 = vector.shape_cast %14 : vector<8x8x16xf32> to vector<64x16xf32>
    %c16 = arith.constant 16 : index
    %c0_9 = arith.constant 0 : index
    %16 = vector.load %arg6[%c16, %c0_9] : memref<144x32xf32, #tpu.memory_space<vmem>>, vector<16x32xf32>
    %cst_10 = arith.constant dense<0.000000e+00> : vector<64x32xf32>
    %17 = tpu.matmul %15, %16, %cst_10 {dimension_numbers = #tpu.dot_dimension_numbers<[1], [0], [0], [1], [0, 0, 1, 1], [], []>} : vector<64x16xf32>, vector<16x32xf32>, vector<64x32xf32> -> vector<64x32xf32>
    %18 = arith.addf %10, %17 : vector<64x32xf32>
    %c0_i32_11 = arith.constant 0 : i32
    %19 = arith.addi %1, %c0_i32_11 : i32
    %c0_12 = arith.constant 0 : index
    %20 = arith.index_cast %19 : i32 to index
    %c1 = arith.constant 1 : index
    %c0_13 = arith.constant 0 : index
    %21 = vector.load %arg2[%c0_12, %20, %c1, %c0_13] : memref<1x9x9x16xf32, #tpu.memory_space<vmem>>, vector<1x8x8x16xf32>
    %22 = vector.shape_cast %21 : vector<1x8x8x16xf32> to vector<8x8x16xf32>
    %23 = vector.shape_cast %22 : vector<8x8x16xf32> to vector<64x16xf32>
    %c32 = arith.constant 32 : index
    %c0_14 = arith.constant 0 : index
    %24 = vector.load %arg6[%c32, %c0_14] : memref<144x32xf32, #tpu.memory_space<vmem>>, vector<16x32xf32>
    %cst_15 = arith.constant dense<0.000000e+00> : vector<64x32xf32>
    %25 = tpu.matmul %23, %24, %cst_15 {dimension_numbers = #tpu.dot_dimension_numbers<[1], [0], [0], [1], [0, 0, 1, 1], [], []>} : vector<64x16xf32>, vector<16x32xf32>, vector<64x32xf32> -> vector<64x32xf32>
    %26 = arith.addf %18, %25 : vector<64x32xf32>
    %c0_i32_16 = arith.constant 0 : i32
    %27 = arith.addi %1, %c0_i32_16 : i32
    %c0_17 = arith.constant 0 : index
    %28 = arith.index_cast %27 : i32 to index
    %c0_18 = arith.constant 0 : index
    %c0_19 = arith.constant 0 : index
    %29 = vector.load %arg4[%c0_17, %28, %c0_18, %c0_19] : memref<1x9x9x16xf32, #tpu.memory_space<vmem>>, vector<1x8x8x16xf32>
    %30 = vector.shape_cast %29 : vector<1x8x8x16xf32> to vector<8x8x16xf32>
    %31 = vector.shape_cast %30 : vector<8x8x16xf32> to vector<64x16xf32>
    %c48 = arith.constant 48 : index
    %c0_20 = arith.constant 0 : index
    %32 = vector.load %arg6[%c48, %c0_20] : memref<144x32xf32, #tpu.memory_space<vmem>>, vector<16x32xf32>
    %cst_21 = arith.constant dense<0.000000e+00> : vector<64x32xf32>
    %33 = tpu.matmul %31, %32, %cst_21 {dimension_numbers = #tpu.dot_dimension_numbers<[1], [0], [0], [1], [0, 0, 1, 1], [], []>} : vector<64x16xf32>, vector<16x32xf32>, vector<64x32xf32> -> vector<64x32xf32>
    %34 = arith.addf %26, %33 : vector<64x32xf32>
    %c0_i32_22 = arith.constant 0 : i32
    %35 = arith.addi %1, %c0_i32_22 : i32
    %c0_23 = arith.constant 0 : index
    %36 = arith.index_cast %35 : i32 to index
    %c0_24 = arith.constant 0 : index
    %c0_25 = arith.constant 0 : index
    %37 = vector.load %arg5[%c0_23, %36, %c0_24, %c0_25] : memref<1x9x9x16xf32, #tpu.memory_space<vmem>>, vector<1x8x8x16xf32>
    %38 = vector.shape_cast %37 : vector<1x8x8x16xf32> to vector<8x8x16xf32>
    %39 = vector.shape_cast %38 : vector<8x8x16xf32> to vector<64x16xf32>
    %c64 = arith.constant 64 : index
    %c0_26 = arith.constant 0 : index
    %40 = vector.load %arg6[%c64, %c0_26] : memref<144x32xf32, #tpu.memory_space<vmem>>, vector<16x32xf32>
    %cst_27 = arith.constant dense<0.000000e+00> : vector<64x32xf32>
    %41 = tpu.matmul %39, %40, %cst_27 {dimension_numbers = #tpu.dot_dimension_numbers<[1], [0], [0], [1], [0, 0, 1, 1], [], []>} : vector<64x16xf32>, vector<16x32xf32>, vector<64x32xf32> -> vector<64x32xf32>
    %42 = arith.addf %34, %41 : vector<64x32xf32>
    %c0_i32_28 = arith.constant 0 : i32
    %43 = arith.addi %1, %c0_i32_28 : i32
    %c0_29 = arith.constant 0 : index
    %44 = arith.index_cast %43 : i32 to index
    %c1_30 = arith.constant 1 : index
    %c0_31 = arith.constant 0 : index
    %45 = vector.load %arg4[%c0_29, %44, %c1_30, %c0_31] : memref<1x9x9x16xf32, #tpu.memory_space<vmem>>, vector<1x8x8x16xf32>
    %46 = vector.shape_cast %45 : vector<1x8x8x16xf32> to vector<8x8x16xf32>
    %47 = vector.shape_cast %46 : vector<8x8x16xf32> to vector<64x16xf32>
    %c80 = arith.constant 80 : index
    %c0_32 = arith.constant 0 : index
    %48 = vector.load %arg6[%c80, %c0_32] : memref<144x32xf32, #tpu.memory_space<vmem>>, vector<16x32xf32>
    %cst_33 = arith.constant dense<0.000000e+00> : vector<64x32xf32>
    %49 = tpu.matmul %47, %48, %cst_33 {dimension_numbers = #tpu.dot_dimension_numbers<[1], [0], [0], [1], [0, 0, 1, 1], [], []>} : vector<64x16xf32>, vector<16x32xf32>, vector<64x32xf32> -> vector<64x32xf32>
    %50 = arith.addf %42, %49 : vector<64x32xf32>
    %c1_i32 = arith.constant 1 : i32
    %51 = arith.addi %1, %c1_i32 : i32
    %c0_34 = arith.constant 0 : index
    %52 = arith.index_cast %51 : i32 to index
    %c0_35 = arith.constant 0 : index
    %c0_36 = arith.constant 0 : index
    %53 = vector.load %arg2[%c0_34, %52, %c0_35, %c0_36] : memref<1x9x9x16xf32, #tpu.memory_space<vmem>>, vector<1x8x8x16xf32>
    %54 = vector.shape_cast %53 : vector<1x8x8x16xf32> to vector<8x8x16xf32>
    %55 = vector.shape_cast %54 : vector<8x8x16xf32> to vector<64x16xf32>
    %c96 = arith.constant 96 : index
    %c0_37 = arith.constant 0 : index
    %56 = vector.load %arg6[%c96, %c0_37] : memref<144x32xf32, #tpu.memory_space<vmem>>, vector<16x32xf32>
    %cst_38 = arith.constant dense<0.000000e+00> : vector<64x32xf32>
    %57 = tpu.matmul %55, %56, %cst_38 {dimension_numbers = #tpu.dot_dimension_numbers<[1], [0], [0], [1], [0, 0, 1, 1], [], []>} : vector<64x16xf32>, vector<16x32xf32>, vector<64x32xf32> -> vector<64x32xf32>
    %58 = arith.addf %50, %57 : vector<64x32xf32>
    %c1_i32_39 = arith.constant 1 : i32
    %59 = arith.addi %1, %c1_i32_39 : i32
    %c0_40 = arith.constant 0 : index
    %60 = arith.index_cast %59 : i32 to index
    %c0_41 = arith.constant 0 : index
    %c0_42 = arith.constant 0 : index
    %61 = vector.load %arg3[%c0_40, %60, %c0_41, %c0_42] : memref<1x9x9x16xf32, #tpu.memory_space<vmem>>, vector<1x8x8x16xf32>
    %62 = vector.shape_cast %61 : vector<1x8x8x16xf32> to vector<8x8x16xf32>
    %63 = vector.shape_cast %62 : vector<8x8x16xf32> to vector<64x16xf32>
    %c112 = arith.constant 112 : index
    %c0_43 = arith.constant 0 : index
    %64 = vector.load %arg6[%c112, %c0_43] : memref<144x32xf32, #tpu.memory_space<vmem>>, vector<16x32xf32>
    %cst_44 = arith.constant dense<0.000000e+00> : vector<64x32xf32>
    %65 = tpu.matmul %63, %64, %cst_44 {dimension_numbers = #tpu.dot_dimension_numbers<[1], [0], [0], [1], [0, 0, 1, 1], [], []>} : vector<64x16xf32>, vector<16x32xf32>, vector<64x32xf32> -> vector<64x32xf32>
    %66 = arith.addf %58, %65 : vector<64x32xf32>
    %c1_i32_45 = arith.constant 1 : i32
    %67 = arith.addi %1, %c1_i32_45 : i32
    %c0_46 = arith.constant 0 : index
    %68 = arith.index_cast %67 : i32 to index
    %c1_47 = arith.constant 1 : index
    %c0_48 = arith.constant 0 : index
    %69 = vector.load %arg2[%c0_46, %68, %c1_47, %c0_48] : memref<1x9x9x16xf32, #tpu.memory_space<vmem>>, vector<1x8x8x16xf32>
    %70 = vector.shape_cast %69 : vector<1x8x8x16xf32> to vector<8x8x16xf32>
    %71 = vector.shape_cast %70 : vector<8x8x16xf32> to vector<64x16xf32>
    %c128 = arith.constant 128 : index
    %c0_49 = arith.constant 0 : index
    %72 = vector.load %arg6[%c128, %c0_49] : memref<144x32xf32, #tpu.memory_space<vmem>>, vector<16x32xf32>
    %cst_50 = arith.constant dense<0.000000e+00> : vector<64x32xf32>
    %73 = tpu.matmul %71, %72, %cst_50 {dimension_numbers = #tpu.dot_dimension_numbers<[1], [0], [0], [1], [0, 0, 1, 1], [], []>} : vector<64x16xf32>, vector<16x32xf32>, vector<64x32xf32> -> vector<64x32xf32>
    %74 = arith.addf %66, %73 : vector<64x32xf32>
    %c0_51 = arith.constant 0 : index
    %c0_52 = arith.constant 0 : index
    %75 = vector.load %arg7[%c0_51, %c0_52] : memref<1x32xf32, #tpu.memory_space<vmem>>, vector<1x32xf32>
    %76 = vector.broadcast %75 : vector<1x32xf32> to vector<64x32xf32>
    %77 = arith.addf %74, %76 : vector<64x32xf32>
    %cst_53 = arith.constant 0.000000e+00 : f32
    %78 = vector.broadcast %cst_53 : f32 to vector<64x32xf32>
    %79 = arith.maximumf %77, %78 : vector<64x32xf32>
    %c0_54 = arith.constant 0 : index
    %c0_55 = arith.constant 0 : index
    %80 = vector.load %arg8[%c0_54, %c0_55] : memref<32x128xf32, #tpu.memory_space<vmem>>, vector<32x128xf32>
    %cst_56 = arith.constant dense<0.000000e+00> : vector<64x128xf32>
    %81 = tpu.matmul %79, %80, %cst_56 {dimension_numbers = #tpu.dot_dimension_numbers<[1], [0], [0], [1], [0, 0, 1, 1], [], []>} : vector<64x32xf32>, vector<32x128xf32>, vector<64x128xf32> -> vector<64x128xf32>
    %c0_57 = arith.constant 0 : index
    %c0_58 = arith.constant 0 : index
    %82 = vector.load %arg9[%c0_57, %c0_58] : memref<1x128xf32, #tpu.memory_space<vmem>>, vector<1x128xf32>
    %83 = vector.broadcast %82 : vector<1x128xf32> to vector<64x128xf32>
    %84 = arith.addf %81, %83 : vector<64x128xf32>
    %c0_59 = arith.constant 0 : index
    %c0_60 = arith.constant 0 : index
    %c0_61 = arith.constant 0 : index
    %85 = vector.load %arg10[%c0_59, %c0_60, %c0_61] : memref<1x64x128xf32, #tpu.memory_space<vmem>>, vector<1x64x128xf32>
    %86 = vector.shape_cast %85 : vector<1x64x128xf32> to vector<64x128xf32>
    %87 = vector.shape_cast %84 : vector<64x128xf32> to vector<1x64x128xf32>
    tpu.vector_store %arg10[%c0_59, %c0_60, %c0_61], %87 {strides = array<i32>} : memref<1x64x128xf32, #tpu.memory_space<vmem>>, vector<1x64x128xf32>,
    return
  }
  func.func @transform_0(%arg0: i32, %arg1: i32) -> (i32, i32, i32, i32) {
    %c0_i32 = arith.constant 0 : i32
    %c0_i32_0 = arith.constant 0 : i32
    %c0_i32_1 = arith.constant 0 : i32
    %c0_i32_2 = arith.constant 0 : i32
    return %arg0, %c0_i32, %c0_i32_0, %c0_i32_1 : i32, i32, i32, i32
  }
  func.func @transform_1(%arg0: i32, %arg1: i32) -> (i32, i32, i32, i32) {
    %c0_i32 = arith.constant 0 : i32
    %c0_i32_0 = arith.constant 0 : i32
    %c0_i32_1 = arith.constant 0 : i32
    %c0_i32_2 = arith.constant 0 : i32
    return %arg0, %c0_i32, %c0_i32_0, %c0_i32_1 : i32, i32, i32, i32
  }
  func.func @transform_2(%arg0: i32, %arg1: i32) -> (i32, i32, i32, i32) {
    %c0_i32 = arith.constant 0 : i32
    %c0_i32_0 = arith.constant 0 : i32
    %c0_i32_1 = arith.constant 0 : i32
    %c0_i32_2 = arith.constant 0 : i32
    return %arg0, %c0_i32, %c0_i32_0, %c0_i32_1 : i32, i32, i32, i32
  }
  func.func @transform_3(%arg0: i32, %arg1: i32) -> (i32, i32, i32, i32) {
    %c0_i32 = arith.constant 0 : i32
    %c0_i32_0 = arith.constant 0 : i32
    %c0_i32_1 = arith.constant 0 : i32
    %c0_i32_2 = arith.constant 0 : i32
    return %arg0, %c0_i32, %c0_i32_0, %c0_i32_1 : i32, i32, i32, i32
  }
  func.func @transform_4(%arg0: i32, %arg1: i32) -> (i32, i32) {
    %c0_i32 = arith.constant 0 : i32
    %c0_i32_0 = arith.constant 0 : i32
    %c0_i32_1 = arith.constant 0 : i32
    return %c0_i32, %c0_i32_0 : i32, i32
  }
  func.func @transform_5(%arg0: i32, %arg1: i32) -> (i32, i32) {
    %c0_i32 = arith.constant 0 : i32
    %c0_i32_0 = arith.constant 0 : i32
    %c0_i32_1 = arith.constant 0 : i32
    return %c0_i32, %c0_i32_0 : i32, i32
  }
  func.func @transform_6(%arg0: i32, %arg1: i32) -> (i32, i32) {
    %c0_i32 = arith.constant 0 : i32
    %c0_i32_0 = arith.constant 0 : i32
    %c0_i32_1 = arith.constant 0 : i32
    return %c0_i32, %c0_i32_0 : i32, i32
  }
  func.func @transform_7(%arg0: i32, %arg1: i32) -> (i32, i32) {
    %c0_i32 = arith.constant 0 : i32
    %c0_i32_0 = arith.constant 0 : i32
    %c0_i32_1 = arith.constant 0 : i32
    return %c0_i32, %c0_i32_0 : i32, i32
  }
  func.func @transform_8(%arg0: i32, %arg1: i32) -> (i32, i32, i32) {
    %c0_i32 = arith.constant 0 : i32
    %c0_i32_0 = arith.constant 0 : i32
    return %arg0, %arg1, %c0_i32 : i32, i32, i32
  }
}

</mosaic_0001>

<llo_original>
// kernel: shell2stage_forward.3
$region0: #{shell2stage_forward.3}
  #allocation0 [shape = 'u32[]', space=smem, size = 0x4, offset = 0x4, fixed_abs, tag = 'smem constant byte address 0x4 - core index']
  #allocation1 [shape = 'u32[144,128]{1,0:T(1,128)}', space=vmem, size = 0x12000, scoped, tag = 'internal scratch']
  %s0 = inlined_call_operand.vmem [shape: f32[2,9,9,16], index: 0, kind: input, shape index: {}]
  %s1 = inlined_call_operand.vmem [shape: f32[2,9,9,16], index: 1, kind: input, shape index: {}]
  %s2 = inlined_call_operand.vmem [shape: f32[2,9,9,16], index: 2, kind: input, shape index: {}]
  %s3 = inlined_call_operand.vmem [shape: f32[2,9,9,16], index: 3, kind: input, shape index: {}]
  %s4 = inlined_call_operand.vmem [shape: f32[144,32], index: 4, kind: input, shape index: {}]
  %s5 = inlined_call_operand.vmem [shape: f32[1,32], index: 5, kind: input, shape index: {}]
  %s6 = inlined_call_operand.vmem [shape: f32[32,128], index: 6, kind: input, shape index: {}]
  %s7 = inlined_call_operand.vmem [shape: f32[1,128], index: 7, kind: input, shape index: {}]
  %s8 = inlined_call_operand.vmem [shape: f32[2,64,128], index: 8, kind: output, shape index: {}]
  %s9 = sld [smem:[#allocation0]]
  $region65: #{shell2stage_forward.3} parent=0
    _
  %s11 = ssub.s32 1, %s9
  %s12 = scalar_select 0, %s11, %s9
  loop: start=0, step=1, limit=4
  $region2: #{shell2stage_forward.3} parent=0 // loop_pre_header
    _
  $region3: #{shell2stage_forward.3} parent=0 // loop_header
    %s14 = sphi 0, %s18
    %p15 = scmp.ge.s32.totalorder %s14, 4
    %s21 = sphi 0, %s33
    %s22 = sphi 0, %s29
    %s23 = sphi 0, %s21
    %s24 = sphi 0, %s22
    %s25 = sphi 0, %s23
    %s26 = sphi 0, %s24
    %s36 = sphi 0, %s38
    %s39 = sphi 0, %s36
    %s40 = sphi 0, %s39
    %s56 = sphi 0, %s40
    %s62 = sphi 0, %s64
    %s65 = sphi 0, %s62
    %s66 = sphi 0, %s65
    %s82 = sphi 0, %s66
    %s88 = sphi 0, %s90
    %s91 = sphi 0, %s88
    %s92 = sphi 0, %s91
    %s108 = sphi 0, %s92
    %s114 = sphi 0, %s116
    %s117 = sphi 0, %s114
    %s118 = sphi 0, %s117
    %s134 = sphi 0, %s118
    %s138 = sphi 0, %s138
    %s140 = sphi 0, %s138
    %s141 = sphi 0, %s140
    %s155 = sphi 0, %s141
    %s159 = sphi 0, %s159
    %s161 = sphi 0, %s159
    %s162 = sphi 0, %s161
    %s176 = sphi 0, %s162
    %s180 = sphi 0, %s180
    %s182 = sphi 0, %s180
    %s183 = sphi 0, %s182
    %s197 = sphi 0, %s183
    %s201 = sphi 0, %s201
    %s203 = sphi 0, %s201
    %s204 = sphi 0, %s203
    %s218 = sphi 0, %s204
    %s226 = sphi 0, %s228
    %s229 = sphi 0, %s226
    %s230 = sphi 0, %s229
    %s246 = sphi 0, %s230
  $region4: #{shell2stage_forward.3} parent=0 // loop_header_branch
    %17 = sbr.rel (%p15) target = $region8
  $region5: #{shell2stage_forward.3} parent=0 // loop_body
    %s19 = ssub.s32 %s14, 1
    %s20 = ssub.s32 %s14, 2
    %s27 = sadd.s32 1, %s22
    %p28 = scmp.ge.s32.totalorder %s27, 1
    %s29 = scalar_select %p28, 0, %s27
    %s30 = sadd.s32 1, %s21
    %s31 = scalar_select %p28, %s30, %s21
    %p32 = scmp.ge.s32.totalorder %s31, 2
    %s33 = scalar_select %p32, 0, %s31
    %s34 = ssub.s32 %s21, %s33
    %p35 = scmp.eq.s32.totalorder %s34, 0
    %s37 = sadd.s32 %s36, 1
    %s38 = scalar_select %p35, %s36, %s37
    %p41 = pneg %p35
    %p42 = scmp.eq.s32.totalorder %s14, 1
    %p43 = por %p41, %p42
    %p44 = scmp.ne.s32.totalorder %s36, %s39
    %p45 = scmp.eq.s32.totalorder %s14, 0
    %p46 = por %p44, %p45
    %p47 = scmp.ne.s32.totalorder %s36, %s39
    %p48 = scmp.eq.s32.totalorder %s19, 1
    %p49 = por %p47, %p48
    %p50 = scmp.ne.s32.totalorder %s39, %s40
    %p51 = scmp.eq.s32.totalorder %s19, 0
    %p52 = por %p50, %p51
    %p53 = scmp.ne.s32.totalorder %s39, %s40
    %p54 = scmp.eq.s32.totalorder %s20, 1
    %p55 = por %p53, %p54
    %p57 = scmp.ne.s32.totalorder %s40, %s56
    %p58 = scmp.eq.s32.totalorder %s20, 0
    %p59 = por %p57, %p58
    %s60 = ssub.s32 %s21, %s33
    %p61 = scmp.eq.s32.totalorder %s60, 0
    %s63 = sadd.s32 %s62, 1
    %s64 = scalar_select %p61, %s62, %s63
    %p67 = pneg %p61
    %p68 = scmp.eq.s32.totalorder %s14, 1
    %p69 = por %p67, %p68
    %p70 = scmp.ne.s32.totalorder %s62, %s65
    %p71 = scmp.eq.s32.totalorder %s14, 0
    %p72 = por %p70, %p71
    %p73 = scmp.ne.s32.totalorder %s62, %s65
    %p74 = scmp.eq.s32.totalorder %s19, 1
    %p75 = por %p73, %p74
    %p76 = scmp.ne.s32.totalorder %s65, %s66
    %p77 = scmp.eq.s32.totalorder %s19, 0
    %p78 = por %p76, %p77
    %p79 = scmp.ne.s32.totalorder %s65, %s66
    %p80 = scmp.eq.s32.totalorder %s20, 1
    %p81 = por %p79, %p80
    %p83 = scmp.ne.s32.totalorder %s66, %s82
    %p84 = scmp.eq.s32.totalorder %s20, 0
    %p85 = por %p83, %p84
    %s86 = ssub.s32 %s21, %s33
    %p87 = scmp.eq.s32.totalorder %s86, 0
    %s89 = sadd.s32 %s88, 1
    %s90 = scalar_select %p87, %s88, %s89
    %p93 = pneg %p87
    %p94 = scmp.eq.s32.totalorder %s14, 1
    %p95 = por %p93, %p94
    %p96 = scmp.ne.s32.totalorder %s88, %s91
    %p97 = scmp.eq.s32.totalorder %s14, 0
    %p98 = por %p96, %p97
    %p99 = scmp.ne.s32.totalorder %s88, %s91
    %p100 = scmp.eq.s32.totalorder %s19, 1
    %p101 = por %p99, %p100
    %p102 = scmp.ne.s32.totalorder %s91, %s92
    %p103 = scmp.eq.s32.totalorder %s19, 0
    %p104 = por %p102, %p103
    %p105 = scmp.ne.s32.totalorder %s91, %s92
    %p106 = scmp.eq.s32.totalorder %s20, 1
    %p107 = por %p105, %p106
    %p109 = scmp.ne.s32.totalorder %s92, %s108
    %p110 = scmp.eq.s32.totalorder %s20, 0
    %p111 = por %p109, %p110
    %s112 = ssub.s32 %s21, %s33
    %p113 = scmp.eq.s32.totalorder %s112, 0
    %s115 = sadd.s32 %s114, 1
    %s116 = scalar_select %p113, %s114, %s115
    %p119 = pneg %p113
    %p120 = scmp.eq.s32.totalorder %s14, 1
    %p121 = por %p119, %p120
    %p122 = scmp.ne.s32.totalorder %s114, %s117
    %p123 = scmp.eq.s32.totalorder %s14, 0
    %p124 = por %p122, %p123
    %p125 = scmp.ne.s32.totalorder %s114, %s117
    %p126 = scmp.eq.s32.totalorder %s19, 1
    %p127 = por %p125, %p126
    %p128 = scmp.ne.s32.totalorder %s117, %s118
    %p129 = scmp.eq.s32.totalorder %s19, 0
    %p130 = por %p128, %p129
    %p131 = scmp.ne.s32.totalorder %s117, %s118
    %p132 = scmp.eq.s32.totalorder %s20, 1
    %p133 = por %p131, %p132
    %p135 = scmp.ne.s32.totalorder %s118, %s134
    %p136 = scmp.eq.s32.totalorder %s20, 0
    %p137 = por %p135, %p136
    %s139 = sadd.s32 %s138, 1
    %p142 = scmp.eq.s32.totalorder %s14, 1
    %p143 = scmp.ne.s32.totalorder %s138, %s140
    %p144 = scmp.eq.s32.totalorder %s14, 0
    %p145 = por %p143, %p144
    %p146 = scmp.ne.s32.totalorder %s138, %s140
    %p147 = scmp.eq.s32.totalorder %s19, 1
    %p148 = por %p146, %p147
    %p149 = scmp.ne.s32.totalorder %s140, %s141
    %p150 = scmp.eq.s32.totalorder %s19, 0
    %p151 = por %p149, %p150
    %p152 = scmp.ne.s32.totalorder %s140, %s141
    %p153 = scmp.eq.s32.totalorder %s20, 1
    %p154 = por %p152, %p153
    %p156 = scmp.ne.s32.totalorder %s141, %s155
    %p157 = scmp.eq.s32.totalorder %s20, 0
    %p158 = por %p156, %p157
    %s160 = sadd.s32 %s159, 1
    %p163 = scmp.eq.s32.totalorder %s14, 1
    %p164 = scmp.ne.s32.totalorder %s159, %s161
    %p165 = scmp.eq.s32.totalorder %s14, 0
    %p166 = por %p164, %p165
    %p167 = scmp.ne.s32.totalorder %s159, %s161
    %p168 = scmp.eq.s32.totalorder %s19, 1
    %p169 = por %p167, %p168
    %p170 = scmp.ne.s32.totalorder %s161, %s162
    %p171 = scmp.eq.s32.totalorder %s19, 0
    %p172 = por %p170, %p171
    %p173 = scmp.ne.s32.totalorder %s161, %s162
    %p174 = scmp.eq.s32.totalorder %s20, 1
    %p175 = por %p173, %p174
    %p177 = scmp.ne.s32.totalorder %s162, %s176
    %p178 = scmp.eq.s32.totalorder %s20, 0
    %p179 = por %p177, %p178
    %s181 = sadd.s32 %s180, 1
    %p184 = scmp.eq.s32.totalorder %s14, 1
    %p185 = scmp.ne.s32.totalorder %s180, %s182
    %p186 = scmp.eq.s32.totalorder %s14, 0
    %p187 = por %p185, %p186
    %p188 = scmp.ne.s32.totalorder %s180, %s182
    %p189 = scmp.eq.s32.totalorder %s19, 1
    %p190 = por %p188, %p189
    %p191 = scmp.ne.s32.totalorder %s182, %s183
    %p192 = scmp.eq.s32.totalorder %s19, 0
    %p193 = por %p191, %p192
    %p194 = scmp.ne.s32.totalorder %s182, %s183
    %p195 = scmp.eq.s32.totalorder %s20, 1
    %p196 = por %p194, %p195
    %p198 = scmp.ne.s32.totalorder %s183, %s197
    %p199 = scmp.eq.s32.totalorder %s20, 0
    %p200 = por %p198, %p199
    %s202 = sadd.s32 %s201, 1
    %p205 = scmp.eq.s32.totalorder %s14, 1
    %p206 = scmp.ne.s32.totalorder %s201, %s203
    %p207 = scmp.eq.s32.totalorder %s14, 0
    %p208 = por %p206, %p207
    %p209 = scmp.ne.s32.totalorder %s201, %s203
    %p210 = scmp.eq.s32.totalorder %s19, 1
    %p211 = por %p209, %p210
    %p212 = scmp.ne.s32.totalorder %s203, %s204
    %p213 = scmp.eq.s32.totalorder %s19, 0
    %p214 = por %p212, %p213
    %p215 = scmp.ne.s32.totalorder %s203, %s204
    %p216 = scmp.eq.s32.totalorder %s20, 1
    %p217 = por %p215, %p216
    %p219 = scmp.ne.s32.totalorder %s204, %s218
    %p220 = scmp.eq.s32.totalorder %s20, 0
    %p221 = por %p219, %p220
    %s222 = ssub.s32 %s21, %s33
    %s223 = ssub.s32 %s22, %s29
    %s224 = sor.u32 %s222, %s223
    %p225 = scmp.eq.s32.totalorder %s224, 0
    %s227 = sadd.s32 %s226, 1
    %s228 = scalar_select %p225, %s226, %s227
    %p231 = pneg %p225
    %p232 = scmp.eq.s32.totalorder %s14, 1
    %p233 = por %p231, %p232
    %p234 = scmp.ne.s32.totalorder %s226, %s229
    %p235 = scmp.eq.s32.totalorder %s14, 0
    %p236 = por %p234, %p235
    %p237 = scmp.ne.s32.totalorder %s226, %s229
    %p238 = scmp.eq.s32.totalorder %s19, 1
    %p239 = por %p237, %p238
    %p240 = scmp.ne.s32.totalorder %s229, %s230
    %p241 = scmp.eq.s32.totalorder %s19, 0
    %p242 = por %p240, %p241
    %p243 = scmp.ne.s32.totalorder %s229, %s230
    %p244 = scmp.eq.s32.totalorder %s20, 1
    %p245 = por %p243, %p244
    %p247 = scmp.ne.s32.totalorder %s230, %s246
    %p248 = scmp.eq.s32.totalorder %s20, 0
    %p249 = por %p247, %p248
    %p250 = scmp.le.s32.totalorder 1, %s14
    %p251 = scmp.lt.s32.totalorder %s14, 3
    %p252 = pnand %p250, %p251
    %p253 = pneg %p252
    // Predicated region
    $region9: #{shell2stage_forward.3} parent=5 // pred_check
      _
    $region10: #{shell2stage_forward.3} parent=5 // pred_check_branch
      %255 = sbr.rel (%p252) target = $region12
    $region11: #{shell2stage_forward.3} parent=5 // pred_region
      %s256 = ssub.s32 %s14, 1
      // Predicated region
      $region13: #{shell2stage_forward.3} parent=11 // pred_check
        %p257 = pneg %p151
      $region14: #{shell2stage_forward.3} parent=11 // pred_check_branch
        %259 = sbr.rel (%p257) target = $region16
      $region15: #{shell2stage_forward.3} parent=11 // pred_region
        _
      $region16: #{shell2stage_forward.3} parent=11 // pred_fallthru
        _
      // Predicated region
      $region17: #{shell2stage_forward.3} parent=11 // pred_check
        %p260 = pneg %p172
      $region18: #{shell2stage_forward.3} parent=11 // pred_check_branch
        %262 = sbr.rel (%p260) target = $region20
      $region19: #{shell2stage_forward.3} parent=11 // pred_region
        _
      $region20: #{shell2stage_forward.3} parent=11 // pred_fallthru
        _
      // Predicated region
      $region21: #{shell2stage_forward.3} parent=11 // pred_check
        %p263 = pneg %p193
      $region22: #{shell2stage_forward.3} parent=11 // pred_check_branch
        %265 = sbr.rel (%p263) target = $region24
      $region23: #{shell2stage_forward.3} parent=11 // pred_region
        _
      $region24: #{shell2stage_forward.3} parent=11 // pred_fallthru
        _
      // Predicated region
      $region25: #{shell2stage_forward.3} parent=11 // pred_check
        %p266 = pneg %p214
      $region26: #{shell2stage_forward.3} parent=11 // pred_check_branch
        %268 = sbr.rel (%p266) target = $region28
      $region27: #{shell2stage_forward.3} parent=11 // pred_region
        _
      $region28: #{shell2stage_forward.3} parent=11 // pred_fallthru
        _
    $region12: #{shell2stage_forward.3} parent=5 // pred_fallthru
      _
    %p269 = scmp.lt.s32.totalorder %s14, 2
    // Predicated region
    $region29: #{shell2stage_forward.3} parent=5 // pred_check
      %p270 = pneg %p269
    $region30: #{shell2stage_forward.3} parent=5 // pred_check_branch
      %272 = sbr.rel (%p270) target = $region32
    $region31: #{shell2stage_forward.3} parent=5 // pred_region
      // Predicated region
      $region33: #{shell2stage_forward.3} parent=31 // pred_check
        %p273 = pneg %p46
      $region34: #{shell2stage_forward.3} parent=31 // pred_check_branch
        %275 = sbr.rel (%p273) target = $region36
      $region35: #{shell2stage_forward.3} parent=31 // pred_region
        %p276 = scmp.lt.s32.totalorder %s21, 1
        %s277 = scalar_select %p276, %s21, 1
        %s278 = smul.addr %s277, 18
        %s279 = smul.addr %s278, 8
        %s280 = scalar_lea.vmem %s0, %s279
      $region36: #{shell2stage_forward.3} parent=31 // pred_fallthru
        _
      // Predicated region
      $region37: #{shell2stage_forward.3} parent=31 // pred_check
        %p281 = pneg %p72
      $region38: #{shell2stage_forward.3} parent=31 // pred_check_branch
        %283 = sbr.rel (%p281) target = $region40
      $region39: #{shell2stage_forward.3} parent=31 // pred_region
        %p284 = scmp.lt.s32.totalorder %s21, 1
        %s285 = scalar_select %p284, %s21, 1
        %s286 = smul.addr %s285, 18
        %s287 = smul.addr %s286, 8
        %s288 = scalar_lea.vmem %s1, %s287
      $region40: #{shell2stage_forward.3} parent=31 // pred_fallthru
        _
      // Predicated region
      $region41: #{shell2stage_forward.3} parent=31 // pred_check
        %p289 = pneg %p98
      $region42: #{shell2stage_forward.3} parent=31 // pred_check_branch
        %291 = sbr.rel (%p289) target = $region44
      $region43: #{shell2stage_forward.3} parent=31 // pred_region
        %p292 = scmp.lt.s32.totalorder %s21, 1
        %s293 = scalar_select %p292, %s21, 1
        %s294 = smul.addr %s293, 18
        %s295 = smul.addr %s294, 8
        %s296 = scalar_lea.vmem %s2, %s295
      $region44: #{shell2stage_forward.3} parent=31 // pred_fallthru
        _
      // Predicated region
      $region45: #{shell2stage_forward.3} parent=31 // pred_check
        %p297 = pneg %p124
      $region46: #{shell2stage_forward.3} parent=31 // pred_check_branch
        %299 = sbr.rel (%p297) target = $region48
      $region47: #{shell2stage_forward.3} parent=31 // pred_region
        %p300 = scmp.lt.s32.totalorder %s21, 1
        %s301 = scalar_select %p300, %s21, 1
        %s302 = smul.addr %s301, 18
        %s303 = smul.addr %s302, 8
        %s304 = scalar_lea.vmem %s3, %s303
      $region48: #{shell2stage_forward.3} parent=31 // pred_fallthru
        _
    $region32: #{shell2stage_forward.3} parent=5 // pred_fallthru
      _
    %p305 = scmp.le.s32.totalorder 1, %s14
    %p306 = scmp.lt.s32.totalorder %s14, 3
    %p307 = pnand %p305, %p306
    %p308 = pneg %p307
    // Predicated region
    $region49: #{shell2stage_forward.3} parent=5 // pred_check
      _
    $region50: #{shell2stage_forward.3} parent=5 // pred_check_branch
      %310 = sbr.rel (%p307) target = $region52
    $region51: #{shell2stage_forward.3} parent=5 // pred_region
      %s311 = ssub.s32 %s14, 1
      %p312 = scmp.lt.s32.totalorder %s23, 1
      %s313 = scalar_select %p312, %s23, 1
      %s314 = smul.addr %s313, 18
      %s315 = smul.addr %s314, 8
      %s316 = scalar_lea.vmem %s0, %s315
      %p317 = pneg %p52
      %p318 = pneg %p49
      %p319 = scmp.lt.s32.totalorder %s23, 1
      %s320 = scalar_select %p319, %s23, 1
      %s321 = smul.addr %s320, 18
      %s322 = smul.addr %s321, 8
      %s323 = scalar_lea.vmem %s1, %s322
      %p324 = pneg %p78
      %p325 = pneg %p75
      %p326 = scmp.lt.s32.totalorder %s23, 1
      %s327 = scalar_select %p326, %s23, 1
      %s328 = smul.addr %s327, 18
      %s329 = smul.addr %s328, 8
      %s330 = scalar_lea.vmem %s2, %s329
      %p331 = pneg %p104
      %p332 = pneg %p101
      %p333 = scmp.lt.s32.totalorder %s23, 1
      %s334 = scalar_select %p333, %s23, 1
      %s335 = smul.addr %s334, 18
      %s336 = smul.addr %s335, 8
      %s337 = scalar_lea.vmem %s3, %s336
      %p338 = pneg %p130
      %p339 = pneg %p127
      %p340 = pneg %p151
      %p341 = pneg %p148
      %p342 = pneg %p172
      %p343 = pneg %p169
      %p344 = pneg %p193
      %p345 = pneg %p190
      %p346 = pneg %p214
      %p347 = pneg %p211
      %p348 = pneg %p242
      %p349 = pneg %p239
      %s350 = smul.u32 8, %s24
      %p351 = scmp.lt.s32.totalorder %s23, 1
      %s352 = scalar_select %p351, %s23, 1
      %p353 = scmp.lt.s32.totalorder %s350, 7
      %s354 = scalar_select %p353, %s350, 7
      %s355 = smul.addr %s352, 8
      %s356 = sadd.s32 %s354, %s355
      %s357 = smul.addr %s356, 8
      %s358 = scalar_lea.vmem %s8, %s357
      %p359 = scmp.lt.s32.totalorder %s23, 1
      %s360 = scalar_select %p359, %s23, 1
      %s361 = smul.addr %s360, 18
      %s362 = smul.addr %s361, 8
      %s363 = scalar_lea.vmem %s0, %s362
      %p364 = scmp.lt.s32.totalorder %s23, 1
      %s365 = scalar_select %p364, %s23, 1
      %s366 = smul.addr %s365, 18
      %s367 = smul.addr %s366, 8
      %s368 = scalar_lea.vmem %s1, %s367
      %p369 = scmp.lt.s32.totalorder %s23, 1
      %s370 = scalar_select %p369, %s23, 1
      %s371 = smul.addr %s370, 18
      %s372 = smul.addr %s371, 8
      %s373 = scalar_lea.vmem %s2, %s372
      %p374 = scmp.lt.s32.totalorder %s23, 1
      %s375 = scalar_select %p374, %s23, 1
      %s376 = smul.addr %s375, 18
      %s377 = smul.addr %s376, 8
      %s378 = scalar_lea.vmem %s3, %s377
      %s379 = smul.u32 8, %s24
      %p380 = scmp.lt.s32.totalorder %s23, 1
      %s381 = scalar_select %p380, %s23, 1
      %p382 = scmp.lt.s32.totalorder %s379, 7
      %s383 = scalar_select %p382, %s379, 7
      %s384 = smul.addr %s381, 8
      %s385 = sadd.s32 %s383, %s384
      %s386 = smul.addr %s385, 8
      %s387 = scalar_lea.vmem %s8, %s386
      %s388 = smul.u32 8, %s24
      %s389 = smul.u32 %s24, 8
      %s390 = smul.u32 %s389, 16
      %s391 = scalar_lea.vmem %s363, %s390
      %v392 = vld [vmem:[%s391] sm:$0xff]
      %v393 = vld [vmem:[%s391 + $0x10] sm:$0xff]
      %v394 = vld [vmem:[%s391 + $0x20] sm:$0xff]
      %v395 = vld [vmem:[%s391 + $0x30] sm:$0xff]
      %v396 = vld [vmem:[%s391 + $0x40] sm:$0xff]
      %v397 = vld [vmem:[%s391 + $0x50] sm:$0xff]
      %v398 = vld [vmem:[%s391 + $0x60] sm:$0xff]
      %v399 = vld [vmem:[%s391 + $0x70] sm:$0xff]
      %v400 = vld [vmem:[%s4] sm:$0xff]
      %v401 = vld [vmem:[%s4 + $0x8] sm:$0xff]
      %s402 = scalar_lea.vmem %s368, %s390
      %v403 = vld [vmem:[%s402] sm:$0xff]
      %v404 = vld [vmem:[%s402 + $0x10] sm:$0xff]
      %v405 = vld [vmem:[%s402 + $0x20] sm:$0xff]
      %v406 = vld [vmem:[%s402 + $0x30] sm:$0xff]
      %v407 = vld [vmem:[%s402 + $0x40] sm:$0xff]
      %v408 = vld [vmem:[%s402 + $0x50] sm:$0xff]
      %v409 = vld [vmem:[%s402 + $0x60] sm:$0xff]
      %v410 = vld [vmem:[%s402 + $0x70] sm:$0xff]
      %v411 = vld [vmem:[%s4 + $0x10] sm:$0xff]
      %v412 = vld [vmem:[%s4 + $0x18] sm:$0xff]
      %vm413 = vcmask 130048
      %v415 = vsel %vm413, %v403, 0
      %v418 = vsel %vm413, %v404, 0
      %v421 = vsel %vm413, %v405, 0
      %v424 = vsel %vm413, %v406, 0
      %v427 = vsel %vm413, %v407, 0
      %v430 = vsel %vm413, %v408, 0
      %v433 = vsel %vm413, %v409, 0
      %v436 = vsel %vm413, %v410, 0
      %438 = vmatprep.subr.mxu0 0.0
      %439 = vmatpush1.msra.mxu0 0.0
      %440 = vmatprep.subr.mxu0 0.0
      %441 = vmatpush1.msra.mxu0 0.0
      %442 = vmatprep.subr.mxu0 0.0
      %443 = vmatpush1.msra.mxu0 0.0
      %444 = vmatprep.subr.mxu0 0.0
      %445 = vmatpush1.msra.mxu0 0.0
      %446 = vmatprep.subr.mxu0 0.0
      %447 = vmatpush1.msra.mxu0 0.0
      %448 = vmatprep.subr.mxu0 0.0
      %449 = vmatpush1.msra.mxu0 0.0
      %450 = vmatprep.subr.mxu0 0.0
      %451 = vmatpush1.msra.mxu0 0.0
      %452 = vmatprep.subr.mxu0 0.0
      %453 = vmatpush1.msra.mxu0 0.0
      %454 = vmatprep.subr.mxu0 0.0
      %455 = vmatpush1.msra.mxu0 0.0
      %456 = vmatprep.subr.mxu0 0.0
      %457 = vmatpush1.msra.mxu0 0.0
      %458 = vmatprep.subr.mxu0 0.0
      %459 = vmatpush1.msra.mxu0 0.0
      %460 = vmatprep.subr.mxu0 0.0
      %461 = vmatpush1.msra.mxu0 0.0
      %462 = vmatprep.subr.mxu0 0.0
      %463 = vmatpush1.msra.mxu0 0.0
      %464 = vmatprep.subr.mxu0 0.0
      %465 = vmatpush1.msra.mxu0 0.0
      %466 = vmatprep.subr.mxu0 0.0
      %467 = vmatpush1.msra.mxu0 %v412
      %468 = vmatprep.subr.mxu0 0.0
      %469 = vmatpush1.msra.mxu0 %v411
      %470 = vmatprep.subr.mxu0 0.0
      %471 = vmatpush2.msra.mxu0 0.0
      %472 = vmatprep.subr.mxu0 0.0
      %473 = vmatpush2.msra.mxu0 0.0
      %474 = vmatprep.subr.mxu0 0.0
      %475 = vmatpush2.msra.mxu0 0.0
      %476 = vmatprep.subr.mxu0 0.0
      %477 = vmatpush2.msra.mxu0 0.0
      %478 = vmatprep.subr.mxu0 0.0
      %479 = vmatpush2.msra.mxu0 0.0
      %480 = vmatprep.subr.mxu0 0.0
      %481 = vmatpush2.msra.mxu0 0.0
      %482 = vmatprep.subr.mxu0 0.0
      %483 = vmatpush2.msra.mxu0 0.0
      %484 = vmatprep.subr.mxu0 0.0
      %485 = vmatpush2.msra.mxu0 0.0
      %486 = vmatprep.subr.mxu0 0.0
      %487 = vmatpush2.msra.mxu0 0.0
      %488 = vmatprep.subr.mxu0 0.0
      %489 = vmatpush2.msra.mxu0 0.0
      %490 = vmatprep.subr.mxu0 0.0
      %491 = vmatpush2.msra.mxu0 0.0
      %492 = vmatprep.subr.mxu0 0.0
      %493 = vmatpush2.msra.mxu0 0.0
      %494 = vmatprep.subr.mxu0 0.0
      %495 = vmatpush2.msra.mxu0 0.0
      %496 = vmatprep.subr.mxu0 0.0
      %497 = vmatpush2.msra.mxu0 0.0
      %498 = vmatprep.subr.mxu0 0.0
      %499 = vmatpush2.msra.mxu0 0.0
      %500 = vmatprep.subr.mxu0 0.0
      %501 = vmatpush2.msra.mxu0 0.0
      %502 = vmatprep.mubr.f32.mxu0 0.0
      %503 = vmatmul.mubr.f32.gmra.mxu0 %v415
      %v504 = vpop.f32.mrf.mxu0
      %v505 = vadd.f32 0.0, %v504
      %v506 = vpop.f32.mrf.mxu0
      %507 = vmatprep.mubr.f32.mxu0 0.0
      %508 = vmatmul.mubr.f32.gmra.mxu0 %v418
      %v509 = vpop.f32.mrf.mxu0
      %v510 = vadd.f32 0.0, %v509
      %v511 = vpop.f32.mrf.mxu0
      %512 = vmatprep.mubr.f32.mxu0 0.0
      %513 = vmatmul.mubr.f32.gmra.mxu0 %v421
      %v514 = vpop.f32.mrf.mxu0
      %v515 = vadd.f32 0.0, %v514
      %v516 = vpop.f32.mrf.mxu0
      %517 = vmatprep.mubr.f32.mxu0 0.0
      %518 = vmatmul.mubr.f32.gmra.mxu0 %v424
      %v519 = vpop.f32.mrf.mxu0
      %v520 = vadd.f32 0.0, %v519
      %v521 = vpop.f32.mrf.mxu0
      %522 = vmatprep.mubr.f32.mxu0 0.0
      %523 = vmatmul.mubr.f32.gmra.mxu0 %v427
      %v524 = vpop.f32.mrf.mxu0
      %v525 = vadd.f32 0.0, %v524
      %v526 = vpop.f32.mrf.mxu0
      %527 = vmatprep.mubr.f32.mxu0 0.0
      %528 = vmatmul.mubr.f32.gmra.mxu0 %v430
      %v529 = vpop.f32.mrf.mxu0
      %v530 = vadd.f32 0.0, %v529
      %v531 = vpop.f32.mrf.mxu0
      %532 = vmatprep.mubr.f32.mxu0 0.0
      %533 = vmatmul.mubr.f32.gmra.mxu0 %v433
      %v534 = vpop.f32.mrf.mxu0
      %v535 = vadd.f32 0.0, %v534
      %v536 = vpop.f32.mrf.mxu0
      %537 = vmatprep.mubr.f32.mxu0 0.0
      %538 = vmatmul.mubr.f32.gmra.mxu0 %v436
      %v539 = vpop.f32.mrf.mxu0
      %v540 = vadd.f32 0.0, %v539
      %v541 = vpop.f32.mrf.mxu0
      %542 = vdwg.mxu0
      %v544 = vsel %vm413, %v392, 0
      %v547 = vsel %vm413, %v393, 0
      %v550 = vsel %vm413, %v394, 0
      %v553 = vsel %vm413, %v395, 0
      %v556 = vsel %vm413, %v396, 0
      %v559 = vsel %vm413, %v397, 0
      %v562 = vsel %vm413, %v398, 0
      %v565 = vsel %vm413, %v399, 0
      %567 = vmatprep.subr.mxu0 0.0
      %568 = vmatpush1.msra.mxu0 0.0
      %569 = vmatprep.subr.mxu0 0.0
      %570 = vmatpush1.msra.mxu0 0.0
      %571 = vmatprep.subr.mxu0 0.0
      %572 = vmatpush1.msra.mxu0 0.0
      %573 = vmatprep.subr.mxu0 0.0
      %574 = vmatpush1.msra.mxu0 0.0
      %575 = vmatprep.subr.mxu0 0.0
      %576 = vmatpush1.msra.mxu0 0.0
      %577 = vmatprep.subr.mxu0 0.0
      %578 = vmatpush1.msra.mxu0 0.0
      %579 = vmatprep.subr.mxu0 0.0
      %580 = vmatpush1.msra.mxu0 0.0
      %581 = vmatprep.subr.mxu0 0.0
      %582 = vmatpush1.msra.mxu0 0.0
      %583 = vmatprep.subr.mxu0 0.0
      %584 = vmatpush1.msra.mxu0 0.0
      %585 = vmatprep.subr.mxu0 0.0
      %586 = vmatpush1.msra.mxu0 0.0
      %587 = vmatprep.subr.mxu0 0.0
      %588 = vmatpush1.msra.mxu0 0.0
      %589 = vmatprep.subr.mxu0 0.0
      %590 = vmatpush1.msra.mxu0 0.0
      %591 = vmatprep.subr.mxu0 0.0
      %592 = vmatpush1.msra.mxu0 0.0
      %593 = vmatprep.subr.mxu0 0.0
      %594 = vmatpush1.msra.mxu0 0.0
      %595 = vmatprep.subr.mxu0 0.0
      %596 = vmatpush1.msra.mxu0 %v401
      %597 = vmatprep.subr.mxu0 0.0
      %598 = vmatpush1.msra.mxu0 %v400
      %599 = vmatprep.subr.mxu0 0.0
      %600 = vmatpush2.msra.mxu0 0.0
      %601 = vmatprep.subr.mxu0 0.0
      %602 = vmatpush2.msra.mxu0 0.0
      %603 = vmatprep.subr.mxu0 0.0
      %604 = vmatpush2.msra.mxu0 0.0
      %605 = vmatprep.subr.mxu0 0.0
      %606 = vmatpush2.msra.mxu0 0.0
      %607 = vmatprep.subr.mxu0 0.0
      %608 = vmatpush2.msra.mxu0 0.0
      %609 = vmatprep.subr.mxu0 0.0
      %610 = vmatpush2.msra.mxu0 0.0
      %611 = vmatprep.subr.mxu0 0.0
      %612 = vmatpush2.msra.mxu0 0.0
      %613 = vmatprep.subr.mxu0 0.0
      %614 = vmatpush2.msra.mxu0 0.0
      %615 = vmatprep.subr.mxu0 0.0
      %616 = vmatpush2.msra.mxu0 0.0
      %617 = vmatprep.subr.mxu0 0.0
      %618 = vmatpush2.msra.mxu0 0.0
      %619 = vmatprep.subr.mxu0 0.0
      %620 = vmatpush2.msra.mxu0 0.0
      %621 = vmatprep.subr.mxu0 0.0
      %622 = vmatpush2.msra.mxu0 0.0
      %623 = vmatprep.subr.mxu0 0.0
      %624 = vmatpush2.msra.mxu0 0.0
      %625 = vmatprep.subr.mxu0 0.0
      %626 = vmatpush2.msra.mxu0 0.0
      %627 = vmatprep.subr.mxu0 0.0
      %628 = vmatpush2.msra.mxu0 0.0
      %629 = vmatprep.subr.mxu0 0.0
      %630 = vmatpush2.msra.mxu0 0.0
      %631 = vmatprep.mubr.f32.mxu0 0.0
      %632 = vmatmul.mubr.f32.gmra.mxu0 %v544
      %v633 = vpop.f32.mrf.mxu0
      %v634 = vadd.f32 %v505, %v633
      %v635 = vpop.f32.mrf.mxu0
      %636 = vmatprep.mubr.f32.mxu0 0.0
      %637 = vmatmul.mubr.f32.gmra.mxu0 %v547
      %v638 = vpop.f32.mrf.mxu0
      %v639 = vadd.f32 %v510, %v638
      %v640 = vpop.f32.mrf.mxu0
      %641 = vmatprep.mubr.f32.mxu0 0.0
      %642 = vmatmul.mubr.f32.gmra.mxu0 %v550
      %v643 = vpop.f32.mrf.mxu0
      %v644 = vadd.f32 %v515, %v643
      %v645 = vpop.f32.mrf.mxu0
      %646 = vmatprep.mubr.f32.mxu0 0.0
      %647 = vmatmul.mubr.f32.gmra.mxu0 %v553
      %v648 = vpop.f32.mrf.mxu0
      %v649 = vadd.f32 %v520, %v648
      %v650 = vpop.f32.mrf.mxu0
      %651 = vmatprep.mubr.f32.mxu0 0.0
      %652 = vmatmul.mubr.f32.gmra.mxu0 %v556
      %v653 = vpop.f32.mrf.mxu0
      %v654 = vadd.f32 %v525, %v653
      %v655 = vpop.f32.mrf.mxu0
      %656 = vmatprep.mubr.f32.mxu0 0.0
      %657 = vmatmul.mubr.f32.gmra.mxu0 %v559
      %v658 = vpop.f32.mrf.mxu0
      %v659 = vadd.f32 %v530, %v658
      %v660 = vpop.f32.mrf.mxu0
      %661 = vmatprep.mubr.f32.mxu0 0.0
      %662 = vmatmul.mubr.f32.gmra.mxu0 %v562
      %v663 = vpop.f32.mrf.mxu0
      %v664 = vadd.f32 %v535, %v663
      %v665 = vpop.f32.mrf.mxu0
      %666 = vmatprep.mubr.f32.mxu0 0.0
      %667 = vmatmul.mubr.f32.gmra.mxu0 %v565
      %v668 = vpop.f32.mrf.mxu0
      %v669 = vadd.f32 %v540, %v668
      %v670 = vpop.f32.mrf.mxu0
      %671 = vdwg.mxu0
      %v672 = vld [vmem:[%s391 + $0x1] sm:$0xff]
      %v673 = vld [vmem:[%s391 + $0x11] sm:$0xff]
      %v674 = vld [vmem:[%s391 + $0x21] sm:$0xff]
      %v675 = vld [vmem:[%s391 + $0x31] sm:$0xff]
      %v676 = vld [vmem:[%s391 + $0x41] sm:$0xff]
      %v677 = vld [vmem:[%s391 + $0x51] sm:$0xff]
      %v678 = vld [vmem:[%s391 + $0x61] sm:$0xff]
      %v679 = vld [vmem:[%s391 + $0x71] sm:$0xff]
      %v680 = vld [vmem:[%s4 + $0x20] sm:$0xff]
      %v681 = vld [vmem:[%s4 + $0x28] sm:$0xff]
      %v683 = vsel %vm413, %v672, 0
      %v686 = vsel %vm413, %v673, 0
      %v689 = vsel %vm413, %v674, 0
      %v692 = vsel %vm413, %v675, 0
      %v695 = vsel %vm413, %v676, 0
      %v698 = vsel %vm413, %v677, 0
      %v701 = vsel %vm413, %v678, 0
      %v704 = vsel %vm413, %v679, 0
      %706 = vmatprep.subr.mxu0 0.0
      %707 = vmatpush1.msra.mxu0 0.0
      %708 = vmatprep.subr.mxu0 0.0
      %709 = vmatpush1.msra.mxu0 0.0
      %710 = vmatprep.subr.mxu0 0.0
      %711 = vmatpush1.msra.mxu0 0.0
      %712 = vmatprep.subr.mxu0 0.0
      %713 = vmatpush1.msra.mxu0 0.0
      %714 = vmatprep.subr.mxu0 0.0
      %715 = vmatpush1.msra.mxu0 0.0
      %716 = vmatprep.subr.mxu0 0.0
      %717 = vmatpush1.msra.mxu0 0.0
      %718 = vmatprep.subr.mxu0 0.0
      %719 = vmatpush1.msra.mxu0 0.0
      %720 = vmatprep.subr.mxu0 0.0
      %721 = vmatpush1.msra.mxu0 0.0
      %722 = vmatprep.subr.mxu0 0.0
      %723 = vmatpush1.msra.mxu0 0.0
      %724 = vmatprep.subr.mxu0 0.0
      %725 = vmatpush1.msra.mxu0 0.0
      %726 = vmatprep.subr.mxu0 0.0
      %727 = vmatpush1.msra.mxu0 0.0
      %728 = vmatprep.subr.mxu0 0.0
      %729 = vmatpush1.msra.mxu0 0.0
      %730 = vmatprep.subr.mxu0 0.0
      %731 = vmatpush1.msra.mxu0 0.0
      %732 = vmatprep.subr.mxu0 0.0
      %733 = vmatpush1.msra.mxu0 0.0
      %734 = vmatprep.subr.mxu0 0.0
      %735 = vmatpush1.msra.mxu0 %v681
      %736 = vmatprep.subr.mxu0 0.0
      %737 = vmatpush1.msra.mxu0 %v680
      %738 = vmatprep.subr.mxu0 0.0
      %739 = vmatpush2.msra.mxu0 0.0
      %740 = vmatprep.subr.mxu0 0.0
      %741 = vmatpush2.msra.mxu0 0.0
      %742 = vmatprep.subr.mxu0 0.0
      %743 = vmatpush2.msra.mxu0 0.0
      %744 = vmatprep.subr.mxu0 0.0
      %745 = vmatpush2.msra.mxu0 0.0
      %746 = vmatprep.subr.mxu0 0.0
      %747 = vmatpush2.msra.mxu0 0.0
      %748 = vmatprep.subr.mxu0 0.0
      %749 = vmatpush2.msra.mxu0 0.0
      %750 = vmatprep.subr.mxu0 0.0
      %751 = vmatpush2.msra.mxu0 0.0
      %752 = vmatprep.subr.mxu0 0.0
      %753 = vmatpush2.msra.mxu0 0.0
      %754 = vmatprep.subr.mxu0 0.0
      %755 = vmatpush2.msra.mxu0 0.0
      %756 = vmatprep.subr.mxu0 0.0
      %757 = vmatpush2.msra.mxu0 0.0
      %758 = vmatprep.subr.mxu0 0.0
      %759 = vmatpush2.msra.mxu0 0.0
      %760 = vmatprep.subr.mxu0 0.0
      %761 = vmatpush2.msra.mxu0 0.0
      %762 = vmatprep.subr.mxu0 0.0
      %763 = vmatpush2.msra.mxu0 0.0
      %764 = vmatprep.subr.mxu0 0.0
      %765 = vmatpush2.msra.mxu0 0.0
      %766 = vmatprep.subr.mxu0 0.0
      %767 = vmatpush2.msra.mxu0 0.0
      %768 = vmatprep.subr.mxu0 0.0
      %769 = vmatpush2.msra.mxu0 0.0
      %770 = vmatprep.mubr.f32.mxu0 0.0
      %771 = vmatmul.mubr.f32.gmra.mxu0 %v683
      %v772 = vpop.f32.mrf.mxu0
      %v773 = vadd.f32 0.0, %v772
      %v774 = vpop.f32.mrf.mxu0
      %775 = vmatprep.mubr.f32.mxu0 0.0
      %776 = vmatmul.mubr.f32.gmra.mxu0 %v686
      %v777 = vpop.f32.mrf.mxu0
      %v778 = vadd.f32 0.0, %v777
      %v779 = vpop.f32.mrf.mxu0
      %780 = vmatprep.mubr.f32.mxu0 0.0
      %781 = vmatmul.mubr.f32.gmra.mxu0 %v689
      %v782 = vpop.f32.mrf.mxu0
      %v783 = vadd.f32 0.0, %v782
      %v784 = vpop.f32.mrf.mxu0
      %785 = vmatprep.mubr.f32.mxu0 0.0
      %786 = vmatmul.mubr.f32.gmra.mxu0 %v692
      %v787 = vpop.f32.mrf.mxu0
      %v788 = vadd.f32 0.0, %v787
      %v789 = vpop.f32.mrf.mxu0
      %790 = vmatprep.mubr.f32.mxu0 0.0
      %791 = vmatmul.mubr.f32.gmra.mxu0 %v695
      %v792 = vpop.f32.mrf.mxu0
      %v793 = vadd.f32 0.0, %v792
      %v794 = vpop.f32.mrf.mxu0
      %795 = vmatprep.mubr.f32.mxu0 0.0
      %796 = vmatmul.mubr.f32.gmra.mxu0 %v698
      %v797 = vpop.f32.mrf.mxu0
      %v798 = vadd.f32 0.0, %v797
      %v799 = vpop.f32.mrf.mxu0
      %800 = vmatprep.mubr.f32.mxu0 0.0
      %801 = vmatmul.mubr.f32.gmra.mxu0 %v701
      %v802 = vpop.f32.mrf.mxu0
      %v803 = vadd.f32 0.0, %v802
      %v804 = vpop.f32.mrf.mxu0
      %805 = vmatprep.mubr.f32.mxu0 0.0
      %806 = vmatmul.mubr.f32.gmra.mxu0 %v704
      %v807 = vpop.f32.mrf.mxu0
      %v808 = vadd.f32 0.0, %v807
      %v809 = vpop.f32.mrf.mxu0
      %810 = vdwg.mxu0
      %v811 = vadd.f32 %v634, %v773
      %v812 = vadd.f32 %v639, %v778
      %v813 = vadd.f32 %v644, %v783
      %v814 = vadd.f32 %v649, %v788
      %v815 = vadd.f32 %v654, %v793
      %v816 = vadd.f32 %v659, %v798
      %v817 = vadd.f32 %v664, %v803
      %v818 = vadd.f32 %v669, %v808
      %s819 = scalar_lea.vmem %s373, %s390
      %v820 = vld [vmem:[%s819] sm:$0xff]
      %v821 = vld [vmem:[%s819 + $0x10] sm:$0xff]
      %v822 = vld [vmem:[%s819 + $0x20] sm:$0xff]
      %v823 = vld [vmem:[%s819 + $0x30] sm:$0xff]
      %v824 = vld [vmem:[%s819 + $0x40] sm:$0xff]
      %v825 = vld [vmem:[%s819 + $0x50] sm:$0xff]
      %v826 = vld [vmem:[%s819 + $0x60] sm:$0xff]
      %v827 = vld [vmem:[%s819 + $0x70] sm:$0xff]
      %v828 = vld [vmem:[%s4 + $0x30] sm:$0xff]
      %v829 = vld [vmem:[%s4 + $0x38] sm:$0xff]
      %v831 = vsel %vm413, %v820, 0
      %v834 = vsel %vm413, %v821, 0
      %v837 = vsel %vm413, %v822, 0
      %v840 = vsel %vm413, %v823, 0
      %v843 = vsel %vm413, %v824, 0
      %v846 = vsel %vm413, %v825, 0
      %v849 = vsel %vm413, %v826, 0
      %v852 = vsel %vm413, %v827, 0
      %854 = vmatprep.subr.mxu0 0.0
      %855 = vmatpush1.msra.mxu0 0.0
      %856 = vmatprep.subr.mxu0 0.0
      %857 = vmatpush1.msra.mxu0 0.0
      %858 = vmatprep.subr.mxu0 0.0
      %859 = vmatpush1.msra.mxu0 0.0
      %860 = vmatprep.subr.mxu0 0.0
      %861 = vmatpush1.msra.mxu0 0.0
      %862 = vmatprep.subr.mxu0 0.0
      %863 = vmatpush1.msra.mxu0 0.0
      %864 = vmatprep.subr.mxu0 0.0
      %865 = vmatpush1.msra.mxu0 0.0
      %866 = vmatprep.subr.mxu0 0.0
      %867 = vmatpush1.msra.mxu0 0.0
      %868 = vmatprep.subr.mxu0 0.0
      %869 = vmatpush1.msra.mxu0 0.0
      %870 = vmatprep.subr.mxu0 0.0
      %871 = vmatpush1.msra.mxu0 0.0
      %872 = vmatprep.subr.mxu0 0.0
      %873 = vmatpush1.msra.mxu0 0.0
      %874 = vmatprep.subr.mxu0 0.0
      %875 = vmatpush1.msra.mxu0 0.0
      %876 = vmatprep.subr.mxu0 0.0
      %877 = vmatpush1.msra.mxu0 0.0
      %878 = vmatprep.subr.mxu0 0.0
      %879 = vmatpush1.msra.mxu0 0.0
      %880 = vmatprep.subr.mxu0 0.0
      %881 = vmatpush1.msra.mxu0 0.0
      %882 = vmatprep.subr.mxu0 0.0
      %883 = vmatpush1.msra.mxu0 %v829
      %884 = vmatprep.subr.mxu0 0.0
      %885 = vmatpush1.msra.mxu0 %v828
      %886 = vmatprep.subr.mxu0 0.0
      %887 = vmatpush2.msra.mxu0 0.0
      %888 = vmatprep.subr.mxu0 0.0
      %889 = vmatpush2.msra.mxu0 0.0
      %890 = vmatprep.subr.mxu0 0.0
      %891 = vmatpush2.msra.mxu0 0.0
      %892 = vmatprep.subr.mxu0 0.0
      %893 = vmatpush2.msra.mxu0 0.0
      %894 = vmatprep.subr.mxu0 0.0
      %895 = vmatpush2.msra.mxu0 0.0
      %896 = vmatprep.subr.mxu0 0.0
      %897 = vmatpush2.msra.mxu0 0.0
      %898 = vmatprep.subr.mxu0 0.0
      %899 = vmatpush2.msra.mxu0 0.0
      %900 = vmatprep.subr.mxu0 0.0
      %901 = vmatpush2.msra.mxu0 0.0
      %902 = vmatprep.subr.mxu0 0.0
      %903 = vmatpush2.msra.mxu0 0.0
      %904 = vmatprep.subr.mxu0 0.0
      %905 = vmatpush2.msra.mxu0 0.0
      %906 = vmatprep.subr.mxu0 0.0
      %907 = vmatpush2.msra.mxu0 0.0
      %908 = vmatprep.subr.mxu0 0.0
      %909 = vmatpush2.msra.mxu0 0.0
      %910 = vmatprep.subr.mxu0 0.0
      %911 = vmatpush2.msra.mxu0 0.0
      %912 = vmatprep.subr.mxu0 0.0
      %913 = vmatpush2.msra.mxu0 0.0
      %914 = vmatprep.subr.mxu0 0.0
      %915 = vmatpush2.msra.mxu0 0.0
      %916 = vmatprep.subr.mxu0 0.0
      %917 = vmatpush2.msra.mxu0 0.0
      %918 = vmatprep.mubr.f32.mxu0 0.0
      %919 = vmatmul.mubr.f32.gmra.mxu0 %v831
      %v920 = vpop.f32.mrf.mxu0
      %v921 = vadd.f32 0.0, %v920
      %v922 = vpop.f32.mrf.mxu0
      %923 = vmatprep.mubr.f32.mxu0 0.0
      %924 = vmatmul.mubr.f32.gmra.mxu0 %v834
      %v925 = vpop.f32.mrf.mxu0
      %v926 = vadd.f32 0.0, %v925
      %v927 = vpop.f32.mrf.mxu0
      %928 = vmatprep.mubr.f32.mxu0 0.0
      %929 = vmatmul.mubr.f32.gmra.mxu0 %v837
      %v930 = vpop.f32.mrf.mxu0
      %v931 = vadd.f32 0.0, %v930
      %v932 = vpop.f32.mrf.mxu0
      %933 = vmatprep.mubr.f32.mxu0 0.0
      %934 = vmatmul.mubr.f32.gmra.mxu0 %v840
      %v935 = vpop.f32.mrf.mxu0
      %v936 = vadd.f32 0.0, %v935
      %v937 = vpop.f32.mrf.mxu0
      %938 = vmatprep.mubr.f32.mxu0 0.0
      %939 = vmatmul.mubr.f32.gmra.mxu0 %v843
      %v940 = vpop.f32.mrf.mxu0
      %v941 = vadd.f32 0.0, %v940
      %v942 = vpop.f32.mrf.mxu0
      %943 = vmatprep.mubr.f32.mxu0 0.0
      %944 = vmatmul.mubr.f32.gmra.mxu0 %v846
      %v945 = vpop.f32.mrf.mxu0
      %v946 = vadd.f32 0.0, %v945
      %v947 = vpop.f32.mrf.mxu0
      %948 = vmatprep.mubr.f32.mxu0 0.0
      %949 = vmatmul.mubr.f32.gmra.mxu0 %v849
      %v950 = vpop.f32.mrf.mxu0
      %v951 = vadd.f32 0.0, %v950
      %v952 = vpop.f32.mrf.mxu0
      %953 = vmatprep.mubr.f32.mxu0 0.0
      %954 = vmatmul.mubr.f32.gmra.mxu0 %v852
      %v955 = vpop.f32.mrf.mxu0
      %v956 = vadd.f32 0.0, %v955
      %v957 = vpop.f32.mrf.mxu0
      %958 = vdwg.mxu0
      %v959 = vadd.f32 %v811, %v921
      %v960 = vadd.f32 %v812, %v926
      %v961 = vadd.f32 %v813, %v931
      %v962 = vadd.f32 %v814, %v936
      %v963 = vadd.f32 %v815, %v941
      %v964 = vadd.f32 %v816, %v946
      %v965 = vadd.f32 %v817, %v951
      %v966 = vadd.f32 %v818, %v956
      %s967 = scalar_lea.vmem %s378, %s390
      %v968 = vld [vmem:[%s967] sm:$0xff]
      %v969 = vld [vmem:[%s967 + $0x10] sm:$0xff]
      %v970 = vld [vmem:[%s967 + $0x20] sm:$0xff]
      %v971 = vld [vmem:[%s967 + $0x30] sm:$0xff]
      %v972 = vld [vmem:[%s967 + $0x40] sm:$0xff]
      %v973 = vld [vmem:[%s967 + $0x50] sm:$0xff]
      %v974 = vld [vmem:[%s967 + $0x60] sm:$0xff]
      %v975 = vld [vmem:[%s967 + $0x70] sm:$0xff]
      %v976 = vld [vmem:[%s4 + $0x40] sm:$0xff]
      %v977 = vld [vmem:[%s4 + $0x48] sm:$0xff]
      %v979 = vsel %vm413, %v968, 0
      %v982 = vsel %vm413, %v969, 0
      %v985 = vsel %vm413, %v970, 0
      %v988 = vsel %vm413, %v971, 0
      %v991 = vsel %vm413, %v972, 0
      %v994 = vsel %vm413, %v973, 0
      %v997 = vsel %vm413, %v974, 0
      %v1000 = vsel %vm413, %v975, 0
      %1002 = vmatprep.subr.mxu0 0.0
      %1003 = vmatpush1.msra.mxu0 0.0
      %1004 = vmatprep.subr.mxu0 0.0
      %1005 = vmatpush1.msra.mxu0 0.0
      %1006 = vmatprep.subr.mxu0 0.0
      %1007 = vmatpush1.msra.mxu0 0.0
      %1008 = vmatprep.subr.mxu0 0.0
      %1009 = vmatpush1.msra.mxu0 0.0
      %1010 = vmatprep.subr.mxu0 0.0
      %1011 = vmatpush1.msra.mxu0 0.0
      %1012 = vmatprep.subr.mxu0 0.0
      %1013 = vmatpush1.msra.mxu0 0.0
      %1014 = vmatprep.subr.mxu0 0.0
      %1015 = vmatpush1.msra.mxu0 0.0
      %1016 = vmatprep.subr.mxu0 0.0
      %1017 = vmatpush1.msra.mxu0 0.0
      %1018 = vmatprep.subr.mxu0 0.0
      %1019 = vmatpush1.msra.mxu0 0.0
      %1020 = vmatprep.subr.mxu0 0.0
      %1021 = vmatpush1.msra.mxu0 0.0
      %1022 = vmatprep.subr.mxu0 0.0
      %1023 = vmatpush1.msra.mxu0 0.0
      %1024 = vmatprep.subr.mxu0 0.0
      %1025 = vmatpush1.msra.mxu0 0.0
      %1026 = vmatprep.subr.mxu0 0.0
      %1027 = vmatpush1.msra.mxu0 0.0
      %1028 = vmatprep.subr.mxu0 0.0
      %1029 = vmatpush1.msra.mxu0 0.0
      %1030 = vmatprep.subr.mxu0 0.0
      %1031 = vmatpush1.msra.mxu0 %v977
      %1032 = vmatprep.subr.mxu0 0.0
      %1033 = vmatpush1.msra.mxu0 %v976
      %1034 = vmatprep.subr.mxu0 0.0
      %1035 = vmatpush2.msra.mxu0 0.0
      %1036 = vmatprep.subr.mxu0 0.0
      %1037 = vmatpush2.msra.mxu0 0.0
      %1038 = vmatprep.subr.mxu0 0.0
      %1039 = vmatpush2.msra.mxu0 0.0
      %1040 = vmatprep.subr.mxu0 0.0
      %1041 = vmatpush2.msra.mxu0 0.0
      %1042 = vmatprep.subr.mxu0 0.0
      %1043 = vmatpush2.msra.mxu0 0.0
      %1044 = vmatprep.subr.mxu0 0.0
      %1045 = vmatpush2.msra.mxu0 0.0
      %1046 = vmatprep.subr.mxu0 0.0
      %1047 = vmatpush2.msra.mxu0 0.0
      %1048 = vmatprep.subr.mxu0 0.0
      %1049 = vmatpush2.msra.mxu0 0.0
      %1050 = vmatprep.subr.mxu0 0.0
      %1051 = vmatpush2.msra.mxu0 0.0
      %1052 = vmatprep.subr.mxu0 0.0
      %1053 = vmatpush2.msra.mxu0 0.0
      %1054 = vmatprep.subr.mxu0 0.0
      %1055 = vmatpush2.msra.mxu0 0.0
      %1056 = vmatprep.subr.mxu0 0.0
      %1057 = vmatpush2.msra.mxu0 0.0
      %1058 = vmatprep.subr.mxu0 0.0
      %1059 = vmatpush2.msra.mxu0 0.0
      %1060 = vmatprep.subr.mxu0 0.0
      %1061 = vmatpush2.msra.mxu0 0.0
      %1062 = vmatprep.subr.mxu0 0.0
      %1063 = vmatpush2.msra.mxu0 0.0
      %1064 = vmatprep.subr.mxu0 0.0
      %1065 = vmatpush2.msra.mxu0 0.0
      %1066 = vmatprep.mubr.f32.mxu0 0.0
      %1067 = vmatmul.mubr.f32.gmra.mxu0 %v979
      %v1068 = vpop.f32.mrf.mxu0
      %v1069 = vadd.f32 0.0, %v1068
      %v1070 = vpop.f32.mrf.mxu0
      %1071 = vmatprep.mubr.f32.mxu0 0.0
      %1072 = vmatmul.mubr.f32.gmra.mxu0 %v982
      %v1073 = vpop.f32.mrf.mxu0
      %v1074 = vadd.f32 0.0, %v1073
      %v1075 = vpop.f32.mrf.mxu0
      %1076 = vmatprep.mubr.f32.mxu0 0.0
      %1077 = vmatmul.mubr.f32.gmra.mxu0 %v985
      %v1078 = vpop.f32.mrf.mxu0
      %v1079 = vadd.f32 0.0, %v1078
      %v1080 = vpop.f32.mrf.mxu0
      %1081 = vmatprep.mubr.f32.mxu0 0.0
      %1082 = vmatmul.mubr.f32.gmra.mxu0 %v988
      %v1083 = vpop.f32.mrf.mxu0
      %v1084 = vadd.f32 0.0, %v1083
      %v1085 = vpop.f32.mrf.mxu0
      %1086 = vmatprep.mubr.f32.mxu0 0.0
      %1087 = vmatmul.mubr.f32.gmra.mxu0 %v991
      %v1088 = vpop.f32.mrf.mxu0
      %v1089 = vadd.f32 0.0, %v1088
      %v1090 = vpop.f32.mrf.mxu0
      %1091 = vmatprep.mubr.f32.mxu0 0.0
      %1092 = vmatmul.mubr.f32.gmra.mxu0 %v994
      %v1093 = vpop.f32.mrf.mxu0
      %v1094 = vadd.f32 0.0, %v1093
      %v1095 = vpop.f32.mrf.mxu0
      %1096 = vmatprep.mubr.f32.mxu0 0.0
      %1097 = vmatmul.mubr.f32.gmra.mxu0 %v997
      %v1098 = vpop.f32.mrf.mxu0
      %v1099 = vadd.f32 0.0, %v1098
      %v1100 = vpop.f32.mrf.mxu0
      %1101 = vmatprep.mubr.f32.mxu0 0.0
      %1102 = vmatmul.mubr.f32.gmra.mxu0 %v1000
      %v1103 = vpop.f32.mrf.mxu0
      %v1104 = vadd.f32 0.0, %v1103
      %v1105 = vpop.f32.mrf.mxu0
      %1106 = vdwg.mxu0
      %v1107 = vadd.f32 %v959, %v1069
      %v1108 = vadd.f32 %v960, %v1074
      %v1109 = vadd.f32 %v961, %v1079
      %v1110 = vadd.f32 %v962, %v1084
      %v1111 = vadd.f32 %v963, %v1089
      %v1112 = vadd.f32 %v964, %v1094
      %v1113 = vadd.f32 %v965, %v1099
      %v1114 = vadd.f32 %v966, %v1104
      %v1115 = vld [vmem:[%s819 + $0x1] sm:$0xff]
      %v1116 = vld [vmem:[%s819 + $0x11] sm:$0xff]
      %v1117 = vld [vmem:[%s819 + $0x21] sm:$0xff]
      %v1118 = vld [vmem:[%s819 + $0x31] sm:$0xff]
      %v1119 = vld [vmem:[%s819 + $0x41] sm:$0xff]
      %v1120 = vld [vmem:[%s819 + $0x51] sm:$0xff]
      %v1121 = vld [vmem:[%s819 + $0x61] sm:$0xff]
      %v1122 = vld [vmem:[%s819 + $0x71] sm:$0xff]
      %v1123 = vld [vmem:[%s4 + $0x50] sm:$0xff]
      %v1124 = vld [vmem:[%s4 + $0x58] sm:$0xff]
      %v1126 = vsel %vm413, %v1115, 0
      %v1129 = vsel %vm413, %v1116, 0
      %v1132 = vsel %vm413, %v1117, 0
      %v1135 = vsel %vm413, %v1118, 0
      %v1138 = vsel %vm413, %v1119, 0
      %v1141 = vsel %vm413, %v1120, 0
      %v1144 = vsel %vm413, %v1121, 0
      %v1147 = vsel %vm413, %v1122, 0
      %1149 = vmatprep.subr.mxu0 0.0
      %1150 = vmatpush1.msra.mxu0 0.0
      %1151 = vmatprep.subr.mxu0 0.0
      %1152 = vmatpush1.msra.mxu0 0.0
      %1153 = vmatprep.subr.mxu0 0.0
      %1154 = vmatpush1.msra.mxu0 0.0
      %1155 = vmatprep.subr.mxu0 0.0
      %1156 = vmatpush1.msra.mxu0 0.0
      %1157 = vmatprep.subr.mxu0 0.0
      %1158 = vmatpush1.msra.mxu0 0.0
      %1159 = vmatprep.subr.mxu0 0.0
      %1160 = vmatpush1.msra.mxu0 0.0
      %1161 = vmatprep.subr.mxu0 0.0
      %1162 = vmatpush1.msra.mxu0 0.0
      %1163 = vmatprep.subr.mxu0 0.0
      %1164 = vmatpush1.msra.mxu0 0.0
      %1165 = vmatprep.subr.mxu0 0.0
      %1166 = vmatpush1.msra.mxu0 0.0
      %1167 = vmatprep.subr.mxu0 0.0
      %1168 = vmatpush1.msra.mxu0 0.0
      %1169 = vmatprep.subr.mxu0 0.0
      %1170 = vmatpush1.msra.mxu0 0.0
      %1171 = vmatprep.subr.mxu0 0.0
      %1172 = vmatpush1.msra.mxu0 0.0
      %1173 = vmatprep.subr.mxu0 0.0
      %1174 = vmatpush1.msra.mxu0 0.0
      %1175 = vmatprep.subr.mxu0 0.0
      %1176 = vmatpush1.msra.mxu0 0.0
      %1177 = vmatprep.subr.mxu0 0.0
      %1178 = vmatpush1.msra.mxu0 %v1124
      %1179 = vmatprep.subr.mxu0 0.0
      %1180 = vmatpush1.msra.mxu0 %v1123
      %1181 = vmatprep.subr.mxu0 0.0
      %1182 = vmatpush2.msra.mxu0 0.0
      %1183 = vmatprep.subr.mxu0 0.0
      %1184 = vmatpush2.msra.mxu0 0.0
      %1185 = vmatprep.subr.mxu0 0.0
      %1186 = vmatpush2.msra.mxu0 0.0
      %1187 = vmatprep.subr.mxu0 0.0
      %1188 = vmatpush2.msra.mxu0 0.0
      %1189 = vmatprep.subr.mxu0 0.0
      %1190 = vmatpush2.msra.mxu0 0.0
      %1191 = vmatprep.subr.mxu0 0.0
      %1192 = vmatpush2.msra.mxu0 0.0
      %1193 = vmatprep.subr.mxu0 0.0
      %1194 = vmatpush2.msra.mxu0 0.0
      %1195 = vmatprep.subr.mxu0 0.0
      %1196 = vmatpush2.msra.mxu0 0.0
      %1197 = vmatprep.subr.mxu0 0.0
      %1198 = vmatpush2.msra.mxu0 0.0
      %1199 = vmatprep.subr.mxu0 0.0
      %1200 = vmatpush2.msra.mxu0 0.0
      %1201 = vmatprep.subr.mxu0 0.0
      %1202 = vmatpush2.msra.mxu0 0.0
      %1203 = vmatprep.subr.mxu0 0.0
      %1204 = vmatpush2.msra.mxu0 0.0
      %1205 = vmatprep.subr.mxu0 0.0
      %1206 = vmatpush2.msra.mxu0 0.0
      %1207 = vmatprep.subr.mxu0 0.0
      %1208 = vmatpush2.msra.mxu0 0.0
      %1209 = vmatprep.subr.mxu0 0.0
      %1210 = vmatpush2.msra.mxu0 0.0
      %1211 = vmatprep.subr.mxu0 0.0
      %1212 = vmatpush2.msra.mxu0 0.0
      %1213 = vmatprep.mubr.f32.mxu0 0.0
      %1214 = vmatmul.mubr.f32.gmra.mxu0 %v1126
      %v1215 = vpop.f32.mrf.mxu0
      %v1216 = vadd.f32 0.0, %v1215
      %v1217 = vpop.f32.mrf.mxu0
      %1218 = vmatprep.mubr.f32.mxu0 0.0
      %1219 = vmatmul.mubr.f32.gmra.mxu0 %v1129
      %v1220 = vpop.f32.mrf.mxu0
      %v1221 = vadd.f32 0.0, %v1220
      %v1222 = vpop.f32.mrf.mxu0
      %1223 = vmatprep.mubr.f32.mxu0 0.0
      %1224 = vmatmul.mubr.f32.gmra.mxu0 %v1132
      %v1225 = vpop.f32.mrf.mxu0
      %v1226 = vadd.f32 0.0, %v1225
      %v1227 = vpop.f32.mrf.mxu0
      %1228 = vmatprep.mubr.f32.mxu0 0.0
      %1229 = vmatmul.mubr.f32.gmra.mxu0 %v1135
      %v1230 = vpop.f32.mrf.mxu0
      %v1231 = vadd.f32 0.0, %v1230
      %v1232 = vpop.f32.mrf.mxu0
      %1233 = vmatprep.mubr.f32.mxu0 0.0
      %1234 = vmatmul.mubr.f32.gmra.mxu0 %v1138
      %v1235 = vpop.f32.mrf.mxu0
      %v1236 = vadd.f32 0.0, %v1235
      %v1237 = vpop.f32.mrf.mxu0
      %1238 = vmatprep.mubr.f32.mxu0 0.0
      %1239 = vmatmul.mubr.f32.gmra.mxu0 %v1141
      %v1240 = vpop.f32.mrf.mxu0
      %v1241 = vadd.f32 0.0, %v1240
      %v1242 = vpop.f32.mrf.mxu0
      %1243 = vmatprep.mubr.f32.mxu0 0.0
      %1244 = vmatmul.mubr.f32.gmra.mxu0 %v1144
      %v1245 = vpop.f32.mrf.mxu0
      %v1246 = vadd.f32 0.0, %v1245
      %v1247 = vpop.f32.mrf.mxu0
      %1248 = vmatprep.mubr.f32.mxu0 0.0
      %1249 = vmatmul.mubr.f32.gmra.mxu0 %v1147
      %v1250 = vpop.f32.mrf.mxu0
      %v1251 = vadd.f32 0.0, %v1250
      %v1252 = vpop.f32.mrf.mxu0
      %1253 = vdwg.mxu0
      %v1254 = vadd.f32 %v1107, %v1216
      %v1255 = vadd.f32 %v1108, %v1221
      %v1256 = vadd.f32 %v1109, %v1226
      %v1257 = vadd.f32 %v1110, %v1231
      %v1258 = vadd.f32 %v1111, %v1236
      %v1259 = vadd.f32 %v1112, %v1241
      %v1260 = vadd.f32 %v1113, %v1246
      %v1261 = vadd.f32 %v1114, %v1251
      %s1262 = sadd.s32 %s389, 1
      %s1263 = smul.u32 %s1262, 16
      %s1264 = scalar_lea.vmem %s363, %s1263
      %v1265 = vld [vmem:[%s1264] sm:$0xff]
      %v1266 = vld [vmem:[%s1264 + $0x10] sm:$0xff]
      %v1267 = vld [vmem:[%s1264 + $0x20] sm:$0xff]
      %v1268 = vld [vmem:[%s1264 + $0x30] sm:$0xff]
      %v1269 = vld [vmem:[%s1264 + $0x40] sm:$0xff]
      %v1270 = vld [vmem:[%s1264 + $0x50] sm:$0xff]
      %v1271 = vld [vmem:[%s1264 + $0x60] sm:$0xff]
      %v1272 = vld [vmem:[%s1264 + $0x70] sm:$0xff]
      %v1273 = vld [vmem:[%s4 + $0x60] sm:$0xff]
      %v1274 = vld [vmem:[%s4 + $0x68] sm:$0xff]
      %v1276 = vsel %vm413, %v1265, 0
      %v1279 = vsel %vm413, %v1266, 0
      %v1282 = vsel %vm413, %v1267, 0
      %v1285 = vsel %vm413, %v1268, 0
      %v1288 = vsel %vm413, %v1269, 0
      %v1291 = vsel %vm413, %v1270, 0
      %v1294 = vsel %vm413, %v1271, 0
      %v1297 = vsel %vm413, %v1272, 0
      %1299 = vmatprep.subr.mxu0 0.0
      %1300 = vmatpush1.msra.mxu0 0.0
      %1301 = vmatprep.subr.mxu0 0.0
      %1302 = vmatpush1.msra.mxu0 0.0
      %1303 = vmatprep.subr.mxu0 0.0
      %1304 = vmatpush1.msra.mxu0 0.0
      %1305 = vmatprep.subr.mxu0 0.0
      %1306 = vmatpush1.msra.mxu0 0.0
      %1307 = vmatprep.subr.mxu0 0.0
      %1308 = vmatpush1.msra.mxu0 0.0
      %1309 = vmatprep.subr.mxu0 0.0
      %1310 = vmatpush1.msra.mxu0 0.0
      %1311 = vmatprep.subr.mxu0 0.0
      %1312 = vmatpush1.msra.mxu0 0.0
      %1313 = vmatprep.subr.mxu0 0.0
      %1314 = vmatpush1.msra.mxu0 0.0
      %1315 = vmatprep.subr.mxu0 0.0
      %1316 = vmatpush1.msra.mxu0 0.0
      %1317 = vmatprep.subr.mxu0 0.0
      %1318 = vmatpush1.msra.mxu0 0.0
      %1319 = vmatprep.subr.mxu0 0.0
      %1320 = vmatpush1.msra.mxu0 0.0
      %1321 = vmatprep.subr.mxu0 0.0
      %1322 = vmatpush1.msra.mxu0 0.0
      %1323 = vmatprep.subr.mxu0 0.0
      %1324 = vmatpush1.msra.mxu0 0.0
      %1325 = vmatprep.subr.mxu0 0.0
      %1326 = vmatpush1.msra.mxu0 0.0
      %1327 = vmatprep.subr.mxu0 0.0
      %1328 = vmatpush1.msra.mxu0 %v1274
      %1329 = vmatprep.subr.mxu0 0.0
      %1330 = vmatpush1.msra.mxu0 %v1273
      %1331 = vmatprep.subr.mxu0 0.0
      %1332 = vmatpush2.msra.mxu0 0.0
      %1333 = vmatprep.subr.mxu0 0.0
      %1334 = vmatpush2.msra.mxu0 0.0
      %1335 = vmatprep.subr.mxu0 0.0
      %1336 = vmatpush2.msra.mxu0 0.0
      %1337 = vmatprep.subr.mxu0 0.0
      %1338 = vmatpush2.msra.mxu0 0.0
      %1339 = vmatprep.subr.mxu0 0.0
      %1340 = vmatpush2.msra.mxu0 0.0
      %1341 = vmatprep.subr.mxu0 0.0
      %1342 = vmatpush2.msra.mxu0 0.0
      %1343 = vmatprep.subr.mxu0 0.0
      %1344 = vmatpush2.msra.mxu0 0.0
      %1345 = vmatprep.subr.mxu0 0.0
      %1346 = vmatpush2.msra.mxu0 0.0
      %1347 = vmatprep.subr.mxu0 0.0
      %1348 = vmatpush2.msra.mxu0 0.0
      %1349 = vmatprep.subr.mxu0 0.0
      %1350 = vmatpush2.msra.mxu0 0.0
      %1351 = vmatprep.subr.mxu0 0.0
      %1352 = vmatpush2.msra.mxu0 0.0
      %1353 = vmatprep.subr.mxu0 0.0
      %1354 = vmatpush2.msra.mxu0 0.0
      %1355 = vmatprep.subr.mxu0 0.0
      %1356 = vmatpush2.msra.mxu0 0.0
      %1357 = vmatprep.subr.mxu0 0.0
      %1358 = vmatpush2.msra.mxu0 0.0
      %1359 = vmatprep.subr.mxu0 0.0
      %1360 = vmatpush2.msra.mxu0 0.0
      %1361 = vmatprep.subr.mxu0 0.0
      %1362 = vmatpush2.msra.mxu0 0.0
      %1363 = vmatprep.mubr.f32.mxu0 0.0
      %1364 = vmatmul.mubr.f32.gmra.mxu0 %v1276
      %v1365 = vpop.f32.mrf.mxu0
      %v1366 = vadd.f32 0.0, %v1365
      %v1367 = vpop.f32.mrf.mxu0
      %1368 = vmatprep.mubr.f32.mxu0 0.0
      %1369 = vmatmul.mubr.f32.gmra.mxu0 %v1279
      %v1370 = vpop.f32.mrf.mxu0
      %v1371 = vadd.f32 0.0, %v1370
      %v1372 = vpop.f32.mrf.mxu0
      %1373 = vmatprep.mubr.f32.mxu0 0.0
      %1374 = vmatmul.mubr.f32.gmra.mxu0 %v1282
      %v1375 = vpop.f32.mrf.mxu0
      %v1376 = vadd.f32 0.0, %v1375
      %v1377 = vpop.f32.mrf.mxu0
      %1378 = vmatprep.mubr.f32.mxu0 0.0
      %1379 = vmatmul.mubr.f32.gmra.mxu0 %v1285
      %v1380 = vpop.f32.mrf.mxu0
      %v1381 = vadd.f32 0.0, %v1380
      %v1382 = vpop.f32.mrf.mxu0
      %1383 = vmatprep.mubr.f32.mxu0 0.0
      %1384 = vmatmul.mubr.f32.gmra.mxu0 %v1288
      %v1385 = vpop.f32.mrf.mxu0
      %v1386 = vadd.f32 0.0, %v1385
      %v1387 = vpop.f32.mrf.mxu0
      %1388 = vmatprep.mubr.f32.mxu0 0.0
      %1389 = vmatmul.mubr.f32.gmra.mxu0 %v1291
      %v1390 = vpop.f32.mrf.mxu0
      %v1391 = vadd.f32 0.0, %v1390
      %v1392 = vpop.f32.mrf.mxu0
      %1393 = vmatprep.mubr.f32.mxu0 0.0
      %1394 = vmatmul.mubr.f32.gmra.mxu0 %v1294
      %v1395 = vpop.f32.mrf.mxu0
      %v1396 = vadd.f32 0.0, %v1395
      %v1397 = vpop.f32.mrf.mxu0
      %1398 = vmatprep.mubr.f32.mxu0 0.0
      %1399 = vmatmul.mubr.f32.gmra.mxu0 %v1297
      %v1400 = vpop.f32.mrf.mxu0
      %v1401 = vadd.f32 0.0, %v1400
      %v1402 = vpop.f32.mrf.mxu0
      %1403 = vdwg.mxu0
      %v1404 = vadd.f32 %v1254, %v1366
      %v1405 = vadd.f32 %v1255, %v1371
      %v1406 = vadd.f32 %v1256, %v1376
      %v1407 = vadd.f32 %v1257, %v1381
      %v1408 = vadd.f32 %v1258, %v1386
      %v1409 = vadd.f32 %v1259, %v1391
      %v1410 = vadd.f32 %v1260, %v1396
      %v1411 = vadd.f32 %v1261, %v1401
      %s1412 = scalar_lea.vmem %s368, %s1263
      %v1413 = vld [vmem:[%s1412] sm:$0xff]
      %v1414 = vld [vmem:[%s1412 + $0x10] sm:$0xff]
      %v1415 = vld [vmem:[%s1412 + $0x20] sm:$0xff]
      %v1416 = vld [vmem:[%s1412 + $0x30] sm:$0xff]
      %v1417 = vld [vmem:[%s1412 + $0x40] sm:$0xff]
      %v1418 = vld [vmem:[%s1412 + $0x50] sm:$0xff]
      %v1419 = vld [vmem:[%s1412 + $0x60] sm:$0xff]
      %v1420 = vld [vmem:[%s1412 + $0x70] sm:$0xff]
      %v1421 = vld [vmem:[%s4 + $0x70] sm:$0xff]
      %v1422 = vld [vmem:[%s4 + $0x78] sm:$0xff]
      %v1424 = vsel %vm413, %v1413, 0
      %v1427 = vsel %vm413, %v1414, 0
      %v1430 = vsel %vm413, %v1415, 0
      %v1433 = vsel %vm413, %v1416, 0
      %v1436 = vsel %vm413, %v1417, 0
      %v1439 = vsel %vm413, %v1418, 0
      %v1442 = vsel %vm413, %v1419, 0
      %v1445 = vsel %vm413, %v1420, 0
      %1447 = vmatprep.subr.mxu0 0.0
      %1448 = vmatpush1.msra.mxu0 0.0
      %1449 = vmatprep.subr.mxu0 0.0
      %1450 = vmatpush1.msra.mxu0 0.0
      %1451 = vmatprep.subr.mxu0 0.0
      %1452 = vmatpush1.msra.mxu0 0.0
      %1453 = vmatprep.subr.mxu0 0.0
      %1454 = vmatpush1.msra.mxu0 0.0
      %1455 = vmatprep.subr.mxu0 0.0
      %1456 = vmatpush1.msra.mxu0 0.0
      %1457 = vmatprep.subr.mxu0 0.0
      %1458 = vmatpush1.msra.mxu0 0.0
      %1459 = vmatprep.subr.mxu0 0.0
      %1460 = vmatpush1.msra.mxu0 0.0
      %1461 = vmatprep.subr.mxu0 0.0
      %1462 = vmatpush1.msra.mxu0 0.0
      %1463 = vmatprep.subr.mxu0 0.0
      %1464 = vmatpush1.msra.mxu0 0.0
      %1465 = vmatprep.subr.mxu0 0.0
      %1466 = vmatpush1.msra.mxu0 0.0
      %1467 = vmatprep.subr.mxu0 0.0
      %1468 = vmatpush1.msra.mxu0 0.0
      %1469 = vmatprep.subr.mxu0 0.0
      %1470 = vmatpush1.msra.mxu0 0.0
      %1471 = vmatprep.subr.mxu0 0.0
      %1472 = vmatpush1.msra.mxu0 0.0
      %1473 = vmatprep.subr.mxu0 0.0
      %1474 = vmatpush1.msra.mxu0 0.0
      %1475 = vmatprep.subr.mxu0 0.0
      %1476 = vmatpush1.msra.mxu0 %v1422
      %1477 = vmatprep.subr.mxu0 0.0
      %1478 = vmatpush1.msra.mxu0 %v1421
      %1479 = vmatprep.subr.mxu0 0.0
      %1480 = vmatpush2.msra.mxu0 0.0
      %1481 = vmatprep.subr.mxu0 0.0
      %1482 = vmatpush2.msra.mxu0 0.0
      %1483 = vmatprep.subr.mxu0 0.0
      %1484 = vmatpush2.msra.mxu0 0.0
      %1485 = vmatprep.subr.mxu0 0.0
      %1486 = vmatpush2.msra.mxu0 0.0
      %1487 = vmatprep.subr.mxu0 0.0
      %1488 = vmatpush2.msra.mxu0 0.0
      %1489 = vmatprep.subr.mxu0 0.0
      %1490 = vmatpush2.msra.mxu0 0.0
      %1491 = vmatprep.subr.mxu0 0.0
      %1492 = vmatpush2.msra.mxu0 0.0
      %1493 = vmatprep.subr.mxu0 0.0
      %1494 = vmatpush2.msra.mxu0 0.0
      %1495 = vmatprep.subr.mxu0 0.0
      %1496 = vmatpush2.msra.mxu0 0.0
      %1497 = vmatprep.subr.mxu0 0.0
      %1498 = vmatpush2.msra.mxu0 0.0
      %1499 = vmatprep.subr.mxu0 0.0
      %1500 = vmatpush2.msra.mxu0 0.0
      %1501 = vmatprep.subr.mxu0 0.0
      %1502 = vmatpush2.msra.mxu0 0.0
      %1503 = vmatprep.subr.mxu0 0.0
      %1504 = vmatpush2.msra.mxu0 0.0
      %1505 = vmatprep.subr.mxu0 0.0
      %1506 = vmatpush2.msra.mxu0 0.0
      %1507 = vmatprep.subr.mxu0 0.0
      %1508 = vmatpush2.msra.mxu0 0.0
      %1509 = vmatprep.subr.mxu0 0.0
      %1510 = vmatpush2.msra.mxu0 0.0
      %1511 = vmatprep.mubr.f32.mxu0 0.0
      %1512 = vmatmul.mubr.f32.gmra.mxu0 %v1424
      %v1513 = vpop.f32.mrf.mxu0
      %v1514 = vadd.f32 0.0, %v1513
      %v1515 = vpop.f32.mrf.mxu0
      %1516 = vmatprep.mubr.f32.mxu0 0.0
      %1517 = vmatmul.mubr.f32.gmra.mxu0 %v1427
      %v1518 = vpop.f32.mrf.mxu0
      %v1519 = vadd.f32 0.0, %v1518
      %v1520 = vpop.f32.mrf.mxu0
      %1521 = vmatprep.mubr.f32.mxu0 0.0
      %1522 = vmatmul.mubr.f32.gmra.mxu0 %v1430
      %v1523 = vpop.f32.mrf.mxu0
      %v1524 = vadd.f32 0.0, %v1523
      %v1525 = vpop.f32.mrf.mxu0
      %1526 = vmatprep.mubr.f32.mxu0 0.0
      %1527 = vmatmul.mubr.f32.gmra.mxu0 %v1433
      %v1528 = vpop.f32.mrf.mxu0
      %v1529 = vadd.f32 0.0, %v1528
      %v1530 = vpop.f32.mrf.mxu0
      %1531 = vmatprep.mubr.f32.mxu0 0.0
      %1532 = vmatmul.mubr.f32.gmra.mxu0 %v1436
      %v1533 = vpop.f32.mrf.mxu0
      %v1534 = vadd.f32 0.0, %v1533
      %v1535 = vpop.f32.mrf.mxu0
      %1536 = vmatprep.mubr.f32.mxu0 0.0
      %1537 = vmatmul.mubr.f32.gmra.mxu0 %v1439
      %v1538 = vpop.f32.mrf.mxu0
      %v1539 = vadd.f32 0.0, %v1538
      %v1540 = vpop.f32.mrf.mxu0
      %1541 = vmatprep.mubr.f32.mxu0 0.0
      %1542 = vmatmul.mubr.f32.gmra.mxu0 %v1442
      %v1543 = vpop.f32.mrf.mxu0
      %v1544 = vadd.f32 0.0, %v1543
      %v1545 = vpop.f32.mrf.mxu0
      %1546 = vmatprep.mubr.f32.mxu0 0.0
      %1547 = vmatmul.mubr.f32.gmra.mxu0 %v1445
      %v1548 = vpop.f32.mrf.mxu0
      %v1549 = vadd.f32 0.0, %v1548
      %v1550 = vpop.f32.mrf.mxu0
      %1551 = vdwg.mxu0
      %v1552 = vadd.f32 %v1404, %v1514
      %v1553 = vadd.f32 %v1405, %v1519
      %v1554 = vadd.f32 %v1406, %v1524
      %v1555 = vadd.f32 %v1407, %v1529
      %v1556 = vadd.f32 %v1408, %v1534
      %v1557 = vadd.f32 %v1409, %v1539
      %v1558 = vadd.f32 %v1410, %v1544
      %v1559 = vadd.f32 %v1411, %v1549
      %v1560 = vld [vmem:[%s1264 + $0x1] sm:$0xff]
      %v1561 = vld [vmem:[%s1264 + $0x11] sm:$0xff]
      %v1562 = vld [vmem:[%s1264 + $0x21] sm:$0xff]
      %v1563 = vld [vmem:[%s1264 + $0x31] sm:$0xff]
      %v1564 = vld [vmem:[%s1264 + $0x41] sm:$0xff]
      %v1565 = vld [vmem:[%s1264 + $0x51] sm:$0xff]
      %v1566 = vld [vmem:[%s1264 + $0x61] sm:$0xff]
      %v1567 = vld [vmem:[%s1264 + $0x71] sm:$0xff]
      %v1568 = vld [vmem:[%s4 + $0x80] sm:$0xff]
      %v1569 = vld [vmem:[%s4 + $0x88] sm:$0xff]
      %v1571 = vsel %vm413, %v1560, 0
      %v1574 = vsel %vm413, %v1561, 0
      %v1577 = vsel %vm413, %v1562, 0
      %v1580 = vsel %vm413, %v1563, 0
      %v1583 = vsel %vm413, %v1564, 0
      %v1586 = vsel %vm413, %v1565, 0
      %v1589 = vsel %vm413, %v1566, 0
      %v1592 = vsel %vm413, %v1567, 0
      %1594 = vmatprep.subr.mxu0 0.0
      %1595 = vmatpush1.msra.mxu0 0.0
      %1596 = vmatprep.subr.mxu0 0.0
      %1597 = vmatpush1.msra.mxu0 0.0
      %1598 = vmatprep.subr.mxu0 0.0
      %1599 = vmatpush1.msra.mxu0 0.0
      %1600 = vmatprep.subr.mxu0 0.0
      %1601 = vmatpush1.msra.mxu0 0.0
      %1602 = vmatprep.subr.mxu0 0.0
      %1603 = vmatpush1.msra.mxu0 0.0
      %1604 = vmatprep.subr.mxu0 0.0
      %1605 = vmatpush1.msra.mxu0 0.0
      %1606 = vmatprep.subr.mxu0 0.0
      %1607 = vmatpush1.msra.mxu0 0.0
      %1608 = vmatprep.subr.mxu0 0.0
      %1609 = vmatpush1.msra.mxu0 0.0
      %1610 = vmatprep.subr.mxu0 0.0
      %1611 = vmatpush1.msra.mxu0 0.0
      %1612 = vmatprep.subr.mxu0 0.0
      %1613 = vmatpush1.msra.mxu0 0.0
      %1614 = vmatprep.subr.mxu0 0.0
      %1615 = vmatpush1.msra.mxu0 0.0
      %1616 = vmatprep.subr.mxu0 0.0
      %1617 = vmatpush1.msra.mxu0 0.0
      %1618 = vmatprep.subr.mxu0 0.0
      %1619 = vmatpush1.msra.mxu0 0.0
      %1620 = vmatprep.subr.mxu0 0.0
      %1621 = vmatpush1.msra.mxu0 0.0
      %1622 = vmatprep.subr.mxu0 0.0
      %1623 = vmatpush1.msra.mxu0 %v1569
      %1624 = vmatprep.subr.mxu0 0.0
      %1625 = vmatpush1.msra.mxu0 %v1568
      %1626 = vmatprep.subr.mxu0 0.0
      %1627 = vmatpush2.msra.mxu0 0.0
      %1628 = vmatprep.subr.mxu0 0.0
      %1629 = vmatpush2.msra.mxu0 0.0
      %1630 = vmatprep.subr.mxu0 0.0
      %1631 = vmatpush2.msra.mxu0 0.0
      %1632 = vmatprep.subr.mxu0 0.0
      %1633 = vmatpush2.msra.mxu0 0.0
      %1634 = vmatprep.subr.mxu0 0.0
      %1635 = vmatpush2.msra.mxu0 0.0
      %1636 = vmatprep.subr.mxu0 0.0
      %1637 = vmatpush2.msra.mxu0 0.0
      %1638 = vmatprep.subr.mxu0 0.0
      %1639 = vmatpush2.msra.mxu0 0.0
      %1640 = vmatprep.subr.mxu0 0.0
      %1641 = vmatpush2.msra.mxu0 0.0
      %1642 = vmatprep.subr.mxu0 0.0
      %1643 = vmatpush2.msra.mxu0 0.0
      %1644 = vmatprep.subr.mxu0 0.0
      %1645 = vmatpush2.msra.mxu0 0.0
      %1646 = vmatprep.subr.mxu0 0.0
      %1647 = vmatpush2.msra.mxu0 0.0
      %1648 = vmatprep.subr.mxu0 0.0
      %1649 = vmatpush2.msra.mxu0 0.0
      %1650 = vmatprep.subr.mxu0 0.0
      %1651 = vmatpush2.msra.mxu0 0.0
      %1652 = vmatprep.subr.mxu0 0.0
      %1653 = vmatpush2.msra.mxu0 0.0
      %1654 = vmatprep.subr.mxu0 0.0
      %1655 = vmatpush2.msra.mxu0 0.0
      %1656 = vmatprep.subr.mxu0 0.0
      %1657 = vmatpush2.msra.mxu0 0.0
      %1658 = vmatprep.mubr.f32.mxu0 0.0
      %1659 = vmatmul.mubr.f32.gmra.mxu0 %v1571
      %v1660 = vpop.f32.mrf.mxu0
      %v1661 = vadd.f32 0.0, %v1660
      %v1662 = vpop.f32.mrf.mxu0
      %1663 = vmatprep.mubr.f32.mxu0 0.0
      %1664 = vmatmul.mubr.f32.gmra.mxu0 %v1574
      %v1665 = vpop.f32.mrf.mxu0
      %v1666 = vadd.f32 0.0, %v1665
      %v1667 = vpop.f32.mrf.mxu0
      %1668 = vmatprep.mubr.f32.mxu0 0.0
      %1669 = vmatmul.mubr.f32.gmra.mxu0 %v1577
      %v1670 = vpop.f32.mrf.mxu0
      %v1671 = vadd.f32 0.0, %v1670
      %v1672 = vpop.f32.mrf.mxu0
      %1673 = vmatprep.mubr.f32.mxu0 0.0
      %1674 = vmatmul.mubr.f32.gmra.mxu0 %v1580
      %v1675 = vpop.f32.mrf.mxu0
      %v1676 = vadd.f32 0.0, %v1675
      %v1677 = vpop.f32.mrf.mxu0
      %1678 = vmatprep.mubr.f32.mxu0 0.0
      %1679 = vmatmul.mubr.f32.gmra.mxu0 %v1583
      %v1680 = vpop.f32.mrf.mxu0
      %v1681 = vadd.f32 0.0, %v1680
      %v1682 = vpop.f32.mrf.mxu0
      %1683 = vmatprep.mubr.f32.mxu0 0.0
      %1684 = vmatmul.mubr.f32.gmra.mxu0 %v1586
      %v1685 = vpop.f32.mrf.mxu0
      %v1686 = vadd.f32 0.0, %v1685
      %v1687 = vpop.f32.mrf.mxu0
      %1688 = vmatprep.mubr.f32.mxu0 0.0
      %1689 = vmatmul.mubr.f32.gmra.mxu0 %v1589
      %v1690 = vpop.f32.mrf.mxu0
      %v1691 = vadd.f32 0.0, %v1690
      %v1692 = vpop.f32.mrf.mxu0
      %1693 = vmatprep.mubr.f32.mxu0 0.0
      %1694 = vmatmul.mubr.f32.gmra.mxu0 %v1592
      %v1695 = vpop.f32.mrf.mxu0
      %v1696 = vadd.f32 0.0, %v1695
      %v1697 = vpop.f32.mrf.mxu0
      %1698 = vdwg.mxu0
      %v1699 = vadd.f32 %v1552, %v1661
      %v1700 = vadd.f32 %v1553, %v1666
      %v1701 = vadd.f32 %v1554, %v1671
      %v1702 = vadd.f32 %v1555, %v1676
      %v1703 = vadd.f32 %v1556, %v1681
      %v1704 = vadd.f32 %v1557, %v1686
      %v1705 = vadd.f32 %v1558, %v1691
      %v1706 = vadd.f32 %v1559, %v1696
      %v1707 = vld [vmem:[%s5] sm:$0x1]
      %v1709 = vlaneseq
      %v1710 = vshrl.u32 %v1709, 7
      %v1711 = vsub.s32 0, %v1710
      %v1712 = vrot.slane %v1707, %v1711
      %v1714 = vadd.f32 %v1699, %v1712
      %v1715 = vadd.f32 %v1700, %v1712
      %v1716 = vadd.f32 %v1701, %v1712
      %v1717 = vadd.f32 %v1702, %v1712
      %v1718 = vadd.f32 %v1703, %v1712
      %v1719 = vadd.f32 %v1704, %v1712
      %v1720 = vadd.f32 %v1705, %v1712
      %v1721 = vadd.f32 %v1706, %v1712
      %v1722 = vmax.f32 %v1714, 0.0
      %v1723 = vmax.f32 %v1715, 0.0
      %v1724 = vmax.f32 %v1716, 0.0
      %v1725 = vmax.f32 %v1717, 0.0
      %v1726 = vmax.f32 %v1718, 0.0
      %v1727 = vmax.f32 %v1719, 0.0
      %v1728 = vmax.f32 %v1720, 0.0
      %v1729 = vmax.f32 %v1721, 0.0
      %v1730 = vld [vmem:[%s6] sm:$0xff]
      %v1731 = vld [vmem:[%s6 + $0x8] sm:$0xff]
      %v1732 = vld [vmem:[%s6 + $0x10] sm:$0xff]
      %v1733 = vld [vmem:[%s6 + $0x18] sm:$0xff]
      %v1734 = vld [vmem:[%s7] sm:$0x1]
      %v1736 = vlaneseq
      %v1737 = vshrl.u32 %v1736, 7
      %v1738 = vsub.s32 0, %v1737
      %v1739 = vrot.slane %v1734, %v1738
      %vm1741 = vcmask 261120
      %v1743 = vsel %vm1741, %v1722, 0
      %v1746 = vsel %vm1741, %v1723, 0
      %v1749 = vsel %vm1741, %v1724, 0
      %v1752 = vsel %vm1741, %v1725, 0
      %v1755 = vsel %vm1741, %v1726, 0
      %v1758 = vsel %vm1741, %v1727, 0
      %v1761 = vsel %vm1741, %v1728, 0
      %v1764 = vsel %vm1741, %v1729, 0
      %1766 = vmatprep.subr.mxu0 0.0
      %1767 = vmatpush1.msra.mxu0 0.0
      %1768 = vmatprep.subr.mxu0 0.0
      %1769 = vmatpush1.msra.mxu0 0.0
      %1770 = vmatprep.subr.mxu0 0.0
      %1771 = vmatpush1.msra.mxu0 0.0
      %1772 = vmatprep.subr.mxu0 0.0
      %1773 = vmatpush1.msra.mxu0 0.0
      %1774 = vmatprep.subr.mxu0 0.0
      %1775 = vmatpush1.msra.mxu0 0.0
      %1776 = vmatprep.subr.mxu0 0.0
      %1777 = vmatpush1.msra.mxu0 0.0
      %1778 = vmatprep.subr.mxu0 0.0
      %1779 = vmatpush1.msra.mxu0 0.0
      %1780 = vmatprep.subr.mxu0 0.0
      %1781 = vmatpush1.msra.mxu0 0.0
      %1782 = vmatprep.subr.mxu0 0.0
      %1783 = vmatpush1.msra.mxu0 0.0
      %1784 = vmatprep.subr.mxu0 0.0
      %1785 = vmatpush1.msra.mxu0 0.0
      %1786 = vmatprep.subr.mxu0 0.0
      %1787 = vmatpush1.msra.mxu0 0.0
      %1788 = vmatprep.subr.mxu0 0.0
      %1789 = vmatpush1.msra.mxu0 0.0
      %1790 = vmatprep.subr.mxu0 0.0
      %1791 = vmatpush1.msra.mxu0 %v1733
      %1792 = vmatprep.subr.mxu0 0.0
      %1793 = vmatpush1.msra.mxu0 %v1732
      %1794 = vmatprep.subr.mxu0 0.0
      %1795 = vmatpush1.msra.mxu0 %v1731
      %1796 = vmatprep.subr.mxu0 0.0
      %1797 = vmatpush1.msra.mxu0 %v1730
      %1798 = vmatprep.subr.mxu0 0.0
      %1799 = vmatpush2.msra.mxu0 0.0
      %1800 = vmatprep.subr.mxu0 0.0
      %1801 = vmatpush2.msra.mxu0 0.0
      %1802 = vmatprep.subr.mxu0 0.0
      %1803 = vmatpush2.msra.mxu0 0.0
      %1804 = vmatprep.subr.mxu0 0.0
      %1805 = vmatpush2.msra.mxu0 0.0
      %1806 = vmatprep.subr.mxu0 0.0
      %1807 = vmatpush2.msra.mxu0 0.0
      %1808 = vmatprep.subr.mxu0 0.0
      %1809 = vmatpush2.msra.mxu0 0.0
      %1810 = vmatprep.subr.mxu0 0.0
      %1811 = vmatpush2.msra.mxu0 0.0
      %1812 = vmatprep.subr.mxu0 0.0
      %1813 = vmatpush2.msra.mxu0 0.0
      %1814 = vmatprep.subr.mxu0 0.0
      %1815 = vmatpush2.msra.mxu0 0.0
      %1816 = vmatprep.subr.mxu0 0.0
      %1817 = vmatpush2.msra.mxu0 0.0
      %1818 = vmatprep.subr.mxu0 0.0
      %1819 = vmatpush2.msra.mxu0 0.0
      %1820 = vmatprep.subr.mxu0 0.0
      %1821 = vmatpush2.msra.mxu0 0.0
      %1822 = vmatprep.subr.mxu0 0.0
      %1823 = vmatpush2.msra.mxu0 0.0
      %1824 = vmatprep.subr.mxu0 0.0
      %1825 = vmatpush2.msra.mxu0 0.0
      %1826 = vmatprep.subr.mxu0 0.0
      %1827 = vmatpush2.msra.mxu0 0.0
      %1828 = vmatprep.subr.mxu0 0.0
      %1829 = vmatpush2.msra.mxu0 0.0
      %1830 = vmatprep.mubr.f32.mxu0 0.0
      %1831 = vmatmul.mubr.f32.gmra.mxu0 %v1743
      %v1832 = vpop.f32.mrf.mxu0
      %v1833 = vadd.f32 %v1739, %v1832
      %v1834 = vpop.f32.mrf.mxu0
      %1835 = vmatprep.mubr.f32.mxu0 0.0
      %1836 = vmatmul.mubr.f32.gmra.mxu0 %v1746
      %v1837 = vpop.f32.mrf.mxu0
      %v1838 = vadd.f32 %v1739, %v1837
      %v1839 = vpop.f32.mrf.mxu0
      %1840 = vmatprep.mubr.f32.mxu0 0.0
      %1841 = vmatmul.mubr.f32.gmra.mxu0 %v1749
      %v1842 = vpop.f32.mrf.mxu0
      %v1843 = vadd.f32 %v1739, %v1842
      %v1844 = vpop.f32.mrf.mxu0
      %1845 = vmatprep.mubr.f32.mxu0 0.0
      %1846 = vmatmul.mubr.f32.gmra.mxu0 %v1752
      %v1847 = vpop.f32.mrf.mxu0
      %v1848 = vadd.f32 %v1739, %v1847
      %v1849 = vpop.f32.mrf.mxu0
      %1850 = vmatprep.mubr.f32.mxu0 0.0
      %1851 = vmatmul.mubr.f32.gmra.mxu0 %v1755
      %v1852 = vpop.f32.mrf.mxu0
      %v1853 = vadd.f32 %v1739, %v1852
      %v1854 = vpop.f32.mrf.mxu0
      %1855 = vmatprep.mubr.f32.mxu0 0.0
      %1856 = vmatmul.mubr.f32.gmra.mxu0 %v1758
      %v1857 = vpop.f32.mrf.mxu0
      %v1858 = vadd.f32 %v1739, %v1857
      %v1859 = vpop.f32.mrf.mxu0
      %1860 = vmatprep.mubr.f32.mxu0 0.0
      %1861 = vmatmul.mubr.f32.gmra.mxu0 %v1761
      %v1862 = vpop.f32.mrf.mxu0
      %v1863 = vadd.f32 %v1739, %v1862
      %v1864 = vpop.f32.mrf.mxu0
      %1865 = vmatprep.mubr.f32.mxu0 0.0
      %1866 = vmatmul.mubr.f32.gmra.mxu0 %v1764
      %v1867 = vpop.f32.mrf.mxu0
      %v1868 = vadd.f32 %v1739, %v1867
      %v1869 = vpop.f32.mrf.mxu0
      %1870 = vdwg.mxu0
      %1871 = vst [vmem:[%s387] sm:$0xff] %v1833
      %1872 = vst [vmem:[%s387 + $0x8] sm:$0xff] %v1838
      %1873 = vst [vmem:[%s387 + $0x10] sm:$0xff] %v1843
      %1874 = vst [vmem:[%s387 + $0x18] sm:$0xff] %v1848
      %1875 = vst [vmem:[%s387 + $0x20] sm:$0xff] %v1853
      %1876 = vst [vmem:[%s387 + $0x28] sm:$0xff] %v1858
      %1877 = vst [vmem:[%s387 + $0x30] sm:$0xff] %v1863
      %1878 = vst [vmem:[%s387 + $0x38] sm:$0xff] %v1868
      %s1879 = smul.u32 8, %s24
      %p1880 = scmp.lt.s32.totalorder %s23, 1
      %s1881 = scalar_select %p1880, %s23, 1
      %p1882 = scmp.lt.s32.totalorder %s1879, 7
      %s1883 = scalar_select %p1882, %s1879, 7
      %s1884 = smul.addr %s1881, 8
      %s1885 = sadd.s32 %s1883, %s1884
      %s1886 = smul.addr %s1885, 8
      %s1887 = scalar_lea.vmem %s8, %s1886
      // Predicated region
      $region53: #{shell2stage_forward.3} parent=51 // pred_check
        %p1888 = pneg %p239
      $region54: #{shell2stage_forward.3} parent=51 // pred_check_branch
        %1890 = sbr.rel (%p1888) target = $region56
      $region55: #{shell2stage_forward.3} parent=51 // pred_region
        %s1891 = smul.u32 8, %s24
      $region56: #{shell2stage_forward.3} parent=51 // pred_fallthru
        _
    $region52: #{shell2stage_forward.3} parent=5 // pred_fallthru
      _
    %p1892 = scmp.le.s32.totalorder 2, %s14
    // Predicated region
    $region57: #{shell2stage_forward.3} parent=5 // pred_check
      %p1893 = pneg %p1892
    $region58: #{shell2stage_forward.3} parent=5 // pred_check_branch
      %1895 = sbr.rel (%p1893) target = $region60
    $region59: #{shell2stage_forward.3} parent=5 // pred_region
      %s1896 = ssub.s32 %s14, 2
      // Predicated region
      $region61: #{shell2stage_forward.3} parent=59 // pred_check
        %p1897 = pneg %p245
      $region62: #{shell2stage_forward.3} parent=59 // pred_check_branch
        %1899 = sbr.rel (%p1897) target = $region64
      $region63: #{shell2stage_forward.3} parent=59 // pred_region
        %s1900 = smul.u32 8, %s26
        %p1901 = scmp.lt.s32.totalorder %s25, 1
        %s1902 = scalar_select %p1901, %s25, 1
        %p1903 = scmp.lt.s32.totalorder %s1900, 7
        %s1904 = scalar_select %p1903, %s1900, 7
        %s1905 = smul.addr %s1902, 8
        %s1906 = sadd.s32 %s1904, %s1905
        %s1907 = smul.addr %s1906, 8
        %s1908 = scalar_lea.vmem %s8, %s1907
      $region64: #{shell2stage_forward.3} parent=59 // pred_fallthru
        _
    $region60: #{shell2stage_forward.3} parent=5 // pred_fallthru
      _
  $region6: #{shell2stage_forward.3} parent=0 // loop_footer
    %s18 = sadd.s32 1, %s14
  $region7: #{shell2stage_forward.3} parent=0 // loop_footer_branch
    %13 = sbr.rel target = $region3
  $region8: #{shell2stage_forward.3} parent=0 // loop_exit
    _

// kernel: shell2stage_forward.2
$region0: #{shell2stage_forward.2}
  #allocation0 [shape = 'u32[]', space=smem, size = 0x4, offset = 0x4, fixed_abs, tag = 'smem constant byte address 0x4 - core index']
  #allocation1 [shape = 'u32[144,128]{1,0:T(1,128)}', space=vmem, size = 0x12000, scoped, tag = 'internal scratch']
  %s0 = inlined_call_operand.vmem [shape: f32[2,18,18,4], index: 0, kind: input, shape index: {}]
  %s1 = inlined_call_operand.vmem [shape: f32[36,16], index: 1, kind: input, shape index: {}]
  %s2 = inlined_call_operand.vmem [shape: f32[1,16], index: 2, kind: input, shape index: {}]
  %s3 = inlined_call_operand.vmem [shape: f32[16,128], index: 3, kind: input, shape index: {}]
  %s4 = inlined_call_operand.vmem [shape: f32[1,128], index: 4, kind: input, shape index: {}]
  %s5 = inlined_call_operand.vmem [shape: f32[2,256,16], index: 5, kind: output, shape index: {0}]
  %s6 = inlined_call_operand.vmem [shape: f32[2,256,128], index: 6, kind: output, shape index: {1}]
  %7 = xla_tuple %s5, %s6
  %s8 = sld [smem:[#allocation0]]
  $region61: #{shell2stage_forward.2} parent=0
    _
  %s10 = ssub.s32 1, %s8
  %s11 = scalar_select 0, %s10, %s8
  loop: start=0, step=1, limit=4
  $region2: #{shell2stage_forward.2} parent=0 // loop_pre_header
    _
  $region3: #{shell2stage_forward.2} parent=0 // loop_header
    %s13 = sphi 0, %s17
    %p14 = scmp.ge.s32.totalorder %s13, 4
    %s20 = sphi 0, %s32
    %s21 = sphi 0, %s28
    %s22 = sphi 0, %s20
    %s23 = sphi 0, %s21
    %s24 = sphi 0, %s22
    %s25 = sphi 0, %s23
    %s35 = sphi 0, %s37
    %s38 = sphi 0, %s35
    %s39 = sphi 0, %s38
    %s55 = sphi 0, %s39
    %s59 = sphi 0, %s59
    %s61 = sphi 0, %s59
    %s62 = sphi 0, %s61
    %s76 = sphi 0, %s62
    %s80 = sphi 0, %s80
    %s82 = sphi 0, %s80
    %s83 = sphi 0, %s82
    %s97 = sphi 0, %s83
    %s101 = sphi 0, %s101
    %s103 = sphi 0, %s101
    %s104 = sphi 0, %s103
    %s118 = sphi 0, %s104
    %s122 = sphi 0, %s122
    %s124 = sphi 0, %s122
    %s125 = sphi 0, %s124
    %s139 = sphi 0, %s125
    %s147 = sphi 0, %s149
    %s150 = sphi 0, %s147
    %s151 = sphi 0, %s150
    %s167 = sphi 0, %s151
    %s175 = sphi 0, %s177
    %s178 = sphi 0, %s175
    %s179 = sphi 0, %s178
    %s195 = sphi 0, %s179
  $region4: #{shell2stage_forward.2} parent=0 // loop_header_branch
    %16 = sbr.rel (%p14) target = $region8
  $region5: #{shell2stage_forward.2} parent=0 // loop_body
    %s18 = ssub.s32 %s13, 1
    %s19 = ssub.s32 %s13, 2
    %s26 = sadd.s32 1, %s21
    %p27 = scmp.ge.s32.totalorder %s26, 1
    %s28 = scalar_select %p27, 0, %s26
    %s29 = sadd.s32 1, %s20
    %s30 = scalar_select %p27, %s29, %s20
    %p31 = scmp.ge.s32.totalorder %s30, 2
    %s32 = scalar_select %p31, 0, %s30
    %s33 = ssub.s32 %s20, %s32
    %p34 = scmp.eq.s32.totalorder %s33, 0
    %s36 = sadd.s32 %s35, 1
    %s37 = scalar_select %p34, %s35, %s36
    %p40 = pneg %p34
    %p41 = scmp.eq.s32.totalorder %s13, 1
    %p42 = por %p40, %p41
    %p43 = scmp.ne.s32.totalorder %s35, %s38
    %p44 = scmp.eq.s32.totalorder %s13, 0
    %p45 = por %p43, %p44
    %p46 = scmp.ne.s32.totalorder %s35, %s38
    %p47 = scmp.eq.s32.totalorder %s18, 1
    %p48 = por %p46, %p47
    %p49 = scmp.ne.s32.totalorder %s38, %s39
    %p50 = scmp.eq.s32.totalorder %s18, 0
    %p51 = por %p49, %p50
    %p52 = scmp.ne.s32.totalorder %s38, %s39
    %p53 = scmp.eq.s32.totalorder %s19, 1
    %p54 = por %p52, %p53
    %p56 = scmp.ne.s32.totalorder %s39, %s55
    %p57 = scmp.eq.s32.totalorder %s19, 0
    %p58 = por %p56, %p57
    %s60 = sadd.s32 %s59, 1
    %p63 = scmp.eq.s32.totalorder %s13, 1
    %p64 = scmp.ne.s32.totalorder %s59, %s61
    %p65 = scmp.eq.s32.totalorder %s13, 0
    %p66 = por %p64, %p65
    %p67 = scmp.ne.s32.totalorder %s59, %s61
    %p68 = scmp.eq.s32.totalorder %s18, 1
    %p69 = por %p67, %p68
    %p70 = scmp.ne.s32.totalorder %s61, %s62
    %p71 = scmp.eq.s32.totalorder %s18, 0
    %p72 = por %p70, %p71
    %p73 = scmp.ne.s32.totalorder %s61, %s62
    %p74 = scmp.eq.s32.totalorder %s19, 1
    %p75 = por %p73, %p74
    %p77 = scmp.ne.s32.totalorder %s62, %s76
    %p78 = scmp.eq.s32.totalorder %s19, 0
    %p79 = por %p77, %p78
    %s81 = sadd.s32 %s80, 1
    %p84 = scmp.eq.s32.totalorder %s13, 1
    %p85 = scmp.ne.s32.totalorder %s80, %s82
    %p86 = scmp.eq.s32.totalorder %s13, 0
    %p87 = por %p85, %p86
    %p88 = scmp.ne.s32.totalorder %s80, %s82
    %p89 = scmp.eq.s32.totalorder %s18, 1
    %p90 = por %p88, %p89
    %p91 = scmp.ne.s32.totalorder %s82, %s83
    %p92 = scmp.eq.s32.totalorder %s18, 0
    %p93 = por %p91, %p92
    %p94 = scmp.ne.s32.totalorder %s82, %s83
    %p95 = scmp.eq.s32.totalorder %s19, 1
    %p96 = por %p94, %p95
    %p98 = scmp.ne.s32.totalorder %s83, %s97
    %p99 = scmp.eq.s32.totalorder %s19, 0
    %p100 = por %p98, %p99
    %s102 = sadd.s32 %s101, 1
    %p105 = scmp.eq.s32.totalorder %s13, 1
    %p106 = scmp.ne.s32.totalorder %s101, %s103
    %p107 = scmp.eq.s32.totalorder %s13, 0
    %p108 = por %p106, %p107
    %p109 = scmp.ne.s32.totalorder %s101, %s103
    %p110 = scmp.eq.s32.totalorder %s18, 1
    %p111 = por %p109, %p110
    %p112 = scmp.ne.s32.totalorder %s103, %s104
    %p113 = scmp.eq.s32.totalorder %s18, 0
    %p114 = por %p112, %p113
    %p115 = scmp.ne.s32.totalorder %s103, %s104
    %p116 = scmp.eq.s32.totalorder %s19, 1
    %p117 = por %p115, %p116
    %p119 = scmp.ne.s32.totalorder %s104, %s118
    %p120 = scmp.eq.s32.totalorder %s19, 0
    %p121 = por %p119, %p120
    %s123 = sadd.s32 %s122, 1
    %p126 = scmp.eq.s32.totalorder %s13, 1
    %p127 = scmp.ne.s32.totalorder %s122, %s124
    %p128 = scmp.eq.s32.totalorder %s13, 0
    %p129 = por %p127, %p128
    %p130 = scmp.ne.s32.totalorder %s122, %s124
    %p131 = scmp.eq.s32.totalorder %s18, 1
    %p132 = por %p130, %p131
    %p133 = scmp.ne.s32.totalorder %s124, %s125
    %p134 = scmp.eq.s32.totalorder %s18, 0
    %p135 = por %p133, %p134
    %p136 = scmp.ne.s32.totalorder %s124, %s125
    %p137 = scmp.eq.s32.totalorder %s19, 1
    %p138 = por %p136, %p137
    %p140 = scmp.ne.s32.totalorder %s125, %s139
    %p141 = scmp.eq.s32.totalorder %s19, 0
    %p142 = por %p140, %p141
    %s143 = ssub.s32 %s20, %s32
    %s144 = ssub.s32 %s21, %s28
    %s145 = sor.u32 %s143, %s144
    %p146 = scmp.eq.s32.totalorder %s145, 0
    %s148 = sadd.s32 %s147, 1
    %s149 = scalar_select %p146, %s147, %s148
    %p152 = pneg %p146
    %p153 = scmp.eq.s32.totalorder %s13, 1
    %p154 = por %p152, %p153
    %p155 = scmp.ne.s32.totalorder %s147, %s150
    %p156 = scmp.eq.s32.totalorder %s13, 0
    %p157 = por %p155, %p156
    %p158 = scmp.ne.s32.totalorder %s147, %s150
    %p159 = scmp.eq.s32.totalorder %s18, 1
    %p160 = por %p158, %p159
    %p161 = scmp.ne.s32.totalorder %s150, %s151
    %p162 = scmp.eq.s32.totalorder %s18, 0
    %p163 = por %p161, %p162
    %p164 = scmp.ne.s32.totalorder %s150, %s151
    %p165 = scmp.eq.s32.totalorder %s19, 1
    %p166 = por %p164, %p165
    %p168 = scmp.ne.s32.totalorder %s151, %s167
    %p169 = scmp.eq.s32.totalorder %s19, 0
    %p170 = por %p168, %p169
    %s171 = ssub.s32 %s20, %s32
    %s172 = ssub.s32 %s21, %s28
    %s173 = sor.u32 %s171, %s172
    %p174 = scmp.eq.s32.totalorder %s173, 0
    %s176 = sadd.s32 %s175, 1
    %s177 = scalar_select %p174, %s175, %s176
    %p180 = pneg %p174
    %p181 = scmp.eq.s32.totalorder %s13, 1
    %p182 = por %p180, %p181
    %p183 = scmp.ne.s32.totalorder %s175, %s178
    %p184 = scmp.eq.s32.totalorder %s13, 0
    %p185 = por %p183, %p184
    %p186 = scmp.ne.s32.totalorder %s175, %s178
    %p187 = scmp.eq.s32.totalorder %s18, 1
    %p188 = por %p186, %p187
    %p189 = scmp.ne.s32.totalorder %s178, %s179
    %p190 = scmp.eq.s32.totalorder %s18, 0
    %p191 = por %p189, %p190
    %p192 = scmp.ne.s32.totalorder %s178, %s179
    %p193 = scmp.eq.s32.totalorder %s19, 1
    %p194 = por %p192, %p193
    %p196 = scmp.ne.s32.totalorder %s179, %s195
    %p197 = scmp.eq.s32.totalorder %s19, 0
    %p198 = por %p196, %p197
    %p199 = scmp.le.s32.totalorder 1, %s13
    %p200 = scmp.lt.s32.totalorder %s13, 3
    %p201 = pnand %p199, %p200
    %p202 = pneg %p201
    // Predicated region
    $region9: #{shell2stage_forward.2} parent=5 // pred_check
      _
    $region10: #{shell2stage_forward.2} parent=5 // pred_check_branch
      %204 = sbr.rel (%p201) target = $region12
    $region11: #{shell2stage_forward.2} parent=5 // pred_region
      %s205 = ssub.s32 %s13, 1
      // Predicated region
      $region13: #{shell2stage_forward.2} parent=11 // pred_check
        %p206 = pneg %p72
      $region14: #{shell2stage_forward.2} parent=11 // pred_check_branch
        %208 = sbr.rel (%p206) target = $region16
      $region15: #{shell2stage_forward.2} parent=11 // pred_region
        _
      $region16: #{shell2stage_forward.2} parent=11 // pred_fallthru
        _
      // Predicated region
      $region17: #{shell2stage_forward.2} parent=11 // pred_check
        %p209 = pneg %p93
      $region18: #{shell2stage_forward.2} parent=11 // pred_check_branch
        %211 = sbr.rel (%p209) target = $region20
      $region19: #{shell2stage_forward.2} parent=11 // pred_region
        _
      $region20: #{shell2stage_forward.2} parent=11 // pred_fallthru
        _
      // Predicated region
      $region21: #{shell2stage_forward.2} parent=11 // pred_check
        %p212 = pneg %p114
      $region22: #{shell2stage_forward.2} parent=11 // pred_check_branch
        %214 = sbr.rel (%p212) target = $region24
      $region23: #{shell2stage_forward.2} parent=11 // pred_region
        _
      $region24: #{shell2stage_forward.2} parent=11 // pred_fallthru
        _
      // Predicated region
      $region25: #{shell2stage_forward.2} parent=11 // pred_check
        %p215 = pneg %p135
      $region26: #{shell2stage_forward.2} parent=11 // pred_check_branch
        %217 = sbr.rel (%p215) target = $region28
      $region27: #{shell2stage_forward.2} parent=11 // pred_region
        _
      $region28: #{shell2stage_forward.2} parent=11 // pred_fallthru
        _
    $region12: #{shell2stage_forward.2} parent=5 // pred_fallthru
      _
    %p218 = scmp.lt.s32.totalorder %s13, 2
    // Predicated region
    $region29: #{shell2stage_forward.2} parent=5 // pred_check
      %p219 = pneg %p218
    $region30: #{shell2stage_forward.2} parent=5 // pred_check_branch
      %221 = sbr.rel (%p219) target = $region32
    $region31: #{shell2stage_forward.2} parent=5 // pred_region
      // Predicated region
      $region33: #{shell2stage_forward.2} parent=31 // pred_check
        %p222 = pneg %p45
      $region34: #{shell2stage_forward.2} parent=31 // pred_check_branch
        %224 = sbr.rel (%p222) target = $region36
      $region35: #{shell2stage_forward.2} parent=31 // pred_region
        %p225 = scmp.lt.s32.totalorder %s20, 1
        %s226 = scalar_select %p225, %s20, 1
        %s227 = smul.addr %s226, 54
        %s228 = smul.addr %s227, 8
        %s229 = scalar_lea.vmem %s0, %s228
      $region36: #{shell2stage_forward.2} parent=31 // pred_fallthru
        _
    $region32: #{shell2stage_forward.2} parent=5 // pred_fallthru
      _
    %p230 = scmp.le.s32.totalorder 1, %s13
    %p231 = scmp.lt.s32.totalorder %s13, 3
    %p232 = pnand %p230, %p231
    %p233 = pneg %p232
    // Predicated region
    $region37: #{shell2stage_forward.2} parent=5 // pred_check
      _
    $region38: #{shell2stage_forward.2} parent=5 // pred_check_branch
      %235 = sbr.rel (%p232) target = $region40
    $region39: #{shell2stage_forward.2} parent=5 // pred_region
      %s236 = ssub.s32 %s13, 1
      %p237 = scmp.lt.s32.totalorder %s22, 1
      %s238 = scalar_select %p237, %s22, 1
      %s239 = smul.addr %s238, 54
      %s240 = smul.addr %s239, 8
      %s241 = scalar_lea.vmem %s0, %s240
      %p242 = pneg %p51
      %p243 = pneg %p48
      %p244 = pneg %p72
      %p245 = pneg %p69
      %p246 = pneg %p93
      %p247 = pneg %p90
      %p248 = pneg %p114
      %p249 = pneg %p111
      %p250 = pneg %p135
      %p251 = pneg %p132
      %p252 = pneg %p163
      %p253 = pneg %p160
      %s254 = smul.u32 32, %s23
      %p255 = scmp.lt.s32.totalorder %s22, 1
      %s256 = scalar_select %p255, %s22, 1
      %p257 = scmp.lt.s32.totalorder %s254, 31
      %s258 = scalar_select %p257, %s254, 31
      %s259 = smul.addr %s256, 32
      %s260 = sadd.s32 %s258, %s259
      %s261 = smul.addr %s260, 8
      %s262 = scalar_lea.vmem %s5, %s261
      %p263 = pneg %p191
      %p264 = pneg %p188
      %s265 = smul.u32 32, %s23
      %p266 = scmp.lt.s32.totalorder %s22, 1
      %s267 = scalar_select %p266, %s22, 1
      %p268 = scmp.lt.s32.totalorder %s265, 31
      %s269 = scalar_select %p268, %s265, 31
      %s270 = smul.addr %s267, 32
      %s271 = sadd.s32 %s269, %s270
      %s272 = smul.addr %s271, 8
      %s273 = scalar_lea.vmem %s6, %s272
      %p274 = scmp.lt.s32.totalorder %s22, 1
      %s275 = scalar_select %p274, %s22, 1
      %s276 = smul.addr %s275, 54
      %s277 = smul.addr %s276, 8
      %s278 = scalar_lea.vmem %s0, %s277
      %s279 = smul.u32 32, %s23
      %p280 = scmp.lt.s32.totalorder %s22, 1
      %s281 = scalar_select %p280, %s22, 1
      %p282 = scmp.lt.s32.totalorder %s279, 31
      %s283 = scalar_select %p282, %s279, 31
      %s284 = smul.addr %s281, 32
      %s285 = sadd.s32 %s283, %s284
      %s286 = smul.addr %s285, 8
      %s287 = scalar_lea.vmem %s5, %s286
      %s288 = smul.u32 32, %s23
      %s289 = smul.u32 32, %s23
      %p290 = scmp.lt.s32.totalorder %s22, 1
      %s291 = scalar_select %p290, %s22, 1
      %p292 = scmp.lt.s32.totalorder %s289, 31
      %s293 = scalar_select %p292, %s289, 31
      %s294 = smul.addr %s291, 32
      %s295 = sadd.s32 %s293, %s294
      %s296 = smul.addr %s295, 8
      %s297 = scalar_lea.vmem %s6, %s296
      %s298 = smul.u32 32, %s23
      %s299 = smul.u32 %s23, 16
      %s300 = smul.u32 %s299, 24
      %s301 = scalar_lea.vmem %s278, %s300
      %v302 = vld [vmem:[%s301] sm:$0xff]
      %v303 = vld [vmem:[%s301 + $0x8] sm:$0xff]
      %v304 = vld [vmem:[%s301 + $0x18] sm:$0xff]
      %v305 = vld [vmem:[%s301 + $0x20] sm:$0xff]
      %v306 = vld [vmem:[%s301 + $0x30] sm:$0xff]
      %v307 = vld [vmem:[%s301 + $0x38] sm:$0xff]
      %v308 = vld [vmem:[%s301 + $0x48] sm:$0xff]
      %v309 = vld [vmem:[%s301 + $0x50] sm:$0xff]
      %v310 = vld [vmem:[%s301 + $0x60] sm:$0xff]
      %v311 = vld [vmem:[%s301 + $0x68] sm:$0xff]
      %v312 = vld [vmem:[%s301 + $0x78] sm:$0xff]
      %v313 = vld [vmem:[%s301 + $0x80] sm:$0xff]
      %v314 = vld [vmem:[%s301 + $0x90] sm:$0xff]
      %v315 = vld [vmem:[%s301 + $0x98] sm:$0xff]
      %v316 = vld [vmem:[%s301 + $0xa8] sm:$0xff]
      %v317 = vld [vmem:[%s301 + $0xb0] sm:$0xff]
      %v318 = vld [vmem:[%s301 + $0xc0] sm:$0xff]
      %v319 = vld [vmem:[%s301 + $0xc8] sm:$0xff]
      %v320 = vld [vmem:[%s301 + $0xd8] sm:$0xff]
      %v321 = vld [vmem:[%s301 + $0xe0] sm:$0xff]
      %v322 = vld [vmem:[%s301 + $0xf0] sm:$0xff]
      %v323 = vld [vmem:[%s301 + $0xf8] sm:$0xff]
      %v324 = vld [vmem:[%s301 + $0x108] sm:$0xff]
      %v325 = vld [vmem:[%s301 + $0x110] sm:$0xff]
      %v326 = vld [vmem:[%s301 + $0x120] sm:$0xff]
      %v327 = vld [vmem:[%s301 + $0x128] sm:$0xff]
      %v328 = vld [vmem:[%s301 + $0x138] sm:$0xff]
      %v329 = vld [vmem:[%s301 + $0x140] sm:$0xff]
      %v330 = vld [vmem:[%s301 + $0x150] sm:$0xff]
      %v331 = vld [vmem:[%s301 + $0x158] sm:$0xff]
      %v332 = vld [vmem:[%s301 + $0x168] sm:$0xff]
      %v333 = vld [vmem:[%s301 + $0x170] sm:$0xff]
      %v334 = vld [vmem:[%s1] sm:$0xf]
      %v335 = vld [vmem:[%s301 + $0x1] sm:$0xff]
      %v336 = vld [vmem:[%s301 + $0x9] sm:$0xff]
      %v337 = vld [vmem:[%s301 + $0x19] sm:$0xff]
      %v338 = vld [vmem:[%s301 + $0x21] sm:$0xff]
      %v339 = vld [vmem:[%s301 + $0x31] sm:$0xff]
      %v340 = vld [vmem:[%s301 + $0x39] sm:$0xff]
      %v341 = vld [vmem:[%s301 + $0x49] sm:$0xff]
      %v342 = vld [vmem:[%s301 + $0x51] sm:$0xff]
      %v343 = vld [vmem:[%s301 + $0x61] sm:$0xff]
      %v344 = vld [vmem:[%s301 + $0x69] sm:$0xff]
      %v345 = vld [vmem:[%s301 + $0x79] sm:$0xff]
      %v346 = vld [vmem:[%s301 + $0x81] sm:$0xff]
      %v347 = vld [vmem:[%s301 + $0x91] sm:$0xff]
      %v348 = vld [vmem:[%s301 + $0x99] sm:$0xff]
      %v349 = vld [vmem:[%s301 + $0xa9] sm:$0xff]
      %v350 = vld [vmem:[%s301 + $0xb1] sm:$0xff]
      %v351 = vld [vmem:[%s301 + $0xc1] sm:$0xff]
      %v352 = vld [vmem:[%s301 + $0xc9] sm:$0xff]
      %v353 = vld [vmem:[%s301 + $0xd9] sm:$0xff]
      %v354 = vld [vmem:[%s301 + $0xe1] sm:$0xff]
      %v355 = vld [vmem:[%s301 + $0xf1] sm:$0xff]
      %v356 = vld [vmem:[%s301 + $0xf9] sm:$0xff]
      %v357 = vld [vmem:[%s301 + $0x109] sm:$0xff]
      %v358 = vld [vmem:[%s301 + $0x111] sm:$0xff]
      %v359 = vld [vmem:[%s301 + $0x121] sm:$0xff]
      %v360 = vld [vmem:[%s301 + $0x129] sm:$0xff]
      %v361 = vld [vmem:[%s301 + $0x139] sm:$0xff]
      %v362 = vld [vmem:[%s301 + $0x141] sm:$0xff]
      %v363 = vld [vmem:[%s301 + $0x151] sm:$0xff]
      %v364 = vld [vmem:[%s301 + $0x159] sm:$0xff]
      %v365 = vld [vmem:[%s301 + $0x169] sm:$0xff]
      %v366 = vld [vmem:[%s301 + $0x171] sm:$0xff]
      %v367 = vld [vmem:[%s1 + $0x4] sm:$0xf]
      %vm368 = vcmask 31744
      %v370 = vsel %vm368, %v335, 0
      %v373 = vsel %vm368, %v336, 0
      %v376 = vsel %vm368, %v337, 0
      %v379 = vsel %vm368, %v338, 0
      %v382 = vsel %vm368, %v339, 0
      %v385 = vsel %vm368, %v340, 0
      %v388 = vsel %vm368, %v341, 0
      %v391 = vsel %vm368, %v342, 0
      %v394 = vsel %vm368, %v343, 0
      %v397 = vsel %vm368, %v344, 0
      %v400 = vsel %vm368, %v345, 0
      %v403 = vsel %vm368, %v346, 0
      %v406 = vsel %vm368, %v347, 0
      %v409 = vsel %vm368, %v348, 0
      %v412 = vsel %vm368, %v349, 0
      %v415 = vsel %vm368, %v350, 0
      %v418 = vsel %vm368, %v351, 0
      %v421 = vsel %vm368, %v352, 0
      %v424 = vsel %vm368, %v353, 0
      %v427 = vsel %vm368, %v354, 0
      %v430 = vsel %vm368, %v355, 0
      %v433 = vsel %vm368, %v356, 0
      %v436 = vsel %vm368, %v357, 0
      %v439 = vsel %vm368, %v358, 0
      %v442 = vsel %vm368, %v359, 0
      %v445 = vsel %vm368, %v360, 0
      %v448 = vsel %vm368, %v361, 0
      %v451 = vsel %vm368, %v362, 0
      %v454 = vsel %vm368, %v363, 0
      %v457 = vsel %vm368, %v364, 0
      %v460 = vsel %vm368, %v365, 0
      %v463 = vsel %vm368, %v366, 0
      %vm465 = vcmask 1043456
      %v467 = vsel %vm465, %v367, 0
      %469 = vmatprep.subr.mxu0 0.0
      %470 = vmatpush1.msra.mxu0 0.0
      %471 = vmatprep.subr.mxu0 0.0
      %472 = vmatpush1.msra.mxu0 0.0
      %473 = vmatprep.subr.mxu0 0.0
      %474 = vmatpush1.msra.mxu0 0.0
      %475 = vmatprep.subr.mxu0 0.0
      %476 = vmatpush1.msra.mxu0 0.0
      %477 = vmatprep.subr.mxu0 0.0
      %478 = vmatpush1.msra.mxu0 0.0
      %479 = vmatprep.subr.mxu0 0.0
      %480 = vmatpush1.msra.mxu0 0.0
      %481 = vmatprep.subr.mxu0 0.0
      %482 = vmatpush1.msra.mxu0 0.0
      %483 = vmatprep.subr.mxu0 0.0
      %484 = vmatpush1.msra.mxu0 0.0
      %485 = vmatprep.subr.mxu0 0.0
      %486 = vmatpush1.msra.mxu0 0.0
      %487 = vmatprep.subr.mxu0 0.0
      %488 = vmatpush1.msra.mxu0 0.0
      %489 = vmatprep.subr.mxu0 0.0
      %490 = vmatpush1.msra.mxu0 0.0
      %491 = vmatprep.subr.mxu0 0.0
      %492 = vmatpush1.msra.mxu0 0.0
      %493 = vmatprep.subr.mxu0 0.0
      %494 = vmatpush1.msra.mxu0 0.0
      %495 = vmatprep.subr.mxu0 0.0
      %496 = vmatpush1.msra.mxu0 0.0
      %497 = vmatprep.subr.mxu0 0.0
      %498 = vmatpush1.msra.mxu0 0.0
      %499 = vmatprep.subr.mxu0 0.0
      %500 = vmatpush1.msra.mxu0 %v467
      %501 = vmatprep.subr.mxu0 0.0
      %502 = vmatpush2.msra.mxu0 0.0
      %503 = vmatprep.subr.mxu0 0.0
      %504 = vmatpush2.msra.mxu0 0.0
      %505 = vmatprep.subr.mxu0 0.0
      %506 = vmatpush2.msra.mxu0 0.0
      %507 = vmatprep.subr.mxu0 0.0
      %508 = vmatpush2.msra.mxu0 0.0
      %509 = vmatprep.subr.mxu0 0.0
      %510 = vmatpush2.msra.mxu0 0.0
      %511 = vmatprep.subr.mxu0 0.0
      %512 = vmatpush2.msra.mxu0 0.0
      %513 = vmatprep.subr.mxu0 0.0
      %514 = vmatpush2.msra.mxu0 0.0
      %515 = vmatprep.subr.mxu0 0.0
      %516 = vmatpush2.msra.mxu0 0.0
      %517 = vmatprep.subr.mxu0 0.0
      %518 = vmatpush2.msra.mxu0 0.0
      %519 = vmatprep.subr.mxu0 0.0
      %520 = vmatpush2.msra.mxu0 0.0
      %521 = vmatprep.subr.mxu0 0.0
      %522 = vmatpush2.msra.mxu0 0.0
      %523 = vmatprep.subr.mxu0 0.0
      %524 = vmatpush2.msra.mxu0 0.0
      %525 = vmatprep.subr.mxu0 0.0
      %526 = vmatpush2.msra.mxu0 0.0
      %527 = vmatprep.subr.mxu0 0.0
      %528 = vmatpush2.msra.mxu0 0.0
      %529 = vmatprep.subr.mxu0 0.0
      %530 = vmatpush2.msra.mxu0 0.0
      %531 = vmatprep.subr.mxu0 0.0
      %532 = vmatpush2.msra.mxu0 0.0
      %533 = vmatprep.mubr.f32.mxu0 0.0
      %534 = vmatmul.mubr.f32.gmra.mxu0 %v370
      %v535 = vpop.f32.mrf.mxu0
      %v536 = vadd.f32 0.0, %v535
      %v537 = vpop.f32.mrf.mxu0
      %538 = vmatprep.mubr.f32.mxu0 0.0
      %539 = vmatmul.mubr.f32.gmra.mxu0 %v373
      %v540 = vpop.f32.mrf.mxu0
      %v541 = vadd.f32 0.0, %v540
      %v542 = vpop.f32.mrf.mxu0
      %543 = vmatprep.mubr.f32.mxu0 0.0
      %544 = vmatmul.mubr.f32.gmra.mxu0 %v376
      %v545 = vpop.f32.mrf.mxu0
      %v546 = vadd.f32 0.0, %v545
      %v547 = vpop.f32.mrf.mxu0
      %548 = vmatprep.mubr.f32.mxu0 0.0
      %549 = vmatmul.mubr.f32.gmra.mxu0 %v379
      %v550 = vpop.f32.mrf.mxu0
      %v551 = vadd.f32 0.0, %v550
      %v552 = vpop.f32.mrf.mxu0
      %553 = vmatprep.mubr.f32.mxu0 0.0
      %554 = vmatmul.mubr.f32.gmra.mxu0 %v382
      %v555 = vpop.f32.mrf.mxu0
      %v556 = vadd.f32 0.0, %v555
      %v557 = vpop.f32.mrf.mxu0
      %558 = vmatprep.mubr.f32.mxu0 0.0
      %559 = vmatmul.mubr.f32.gmra.mxu0 %v385
      %v560 = vpop.f32.mrf.mxu0
      %v561 = vadd.f32 0.0, %v560
      %v562 = vpop.f32.mrf.mxu0
      %563 = vmatprep.mubr.f32.mxu0 0.0
      %564 = vmatmul.mubr.f32.gmra.mxu0 %v388
      %v565 = vpop.f32.mrf.mxu0
      %v566 = vadd.f32 0.0, %v565
      %v567 = vpop.f32.mrf.mxu0
      %568 = vmatprep.mubr.f32.mxu0 0.0
      %569 = vmatmul.mubr.f32.gmra.mxu0 %v391
      %v570 = vpop.f32.mrf.mxu0
      %v571 = vadd.f32 0.0, %v570
      %v572 = vpop.f32.mrf.mxu0
      %573 = vmatprep.mubr.f32.mxu0 0.0
      %574 = vmatmul.mubr.f32.gmra.mxu0 %v394
      %v575 = vpop.f32.mrf.mxu0
      %v576 = vadd.f32 0.0, %v575
      %v577 = vpop.f32.mrf.mxu0
      %578 = vmatprep.mubr.f32.mxu0 0.0
      %579 = vmatmul.mubr.f32.gmra.mxu0 %v397
      %v580 = vpop.f32.mrf.mxu0
      %v581 = vadd.f32 0.0, %v580
      %v582 = vpop.f32.mrf.mxu0
      %583 = vmatprep.mubr.f32.mxu0 0.0
      %584 = vmatmul.mubr.f32.gmra.mxu0 %v400
      %v585 = vpop.f32.mrf.mxu0
      %v586 = vadd.f32 0.0, %v585
      %v587 = vpop.f32.mrf.mxu0
      %588 = vmatprep.mubr.f32.mxu0 0.0
      %589 = vmatmul.mubr.f32.gmra.mxu0 %v403
      %v590 = vpop.f32.mrf.mxu0
      %v591 = vadd.f32 0.0, %v590
      %v592 = vpop.f32.mrf.mxu0
      %593 = vmatprep.mubr.f32.mxu0 0.0
      %594 = vmatmul.mubr.f32.gmra.mxu0 %v406
      %v595 = vpop.f32.mrf.mxu0
      %v596 = vadd.f32 0.0, %v595
      %v597 = vpop.f32.mrf.mxu0
      %598 = vmatprep.mubr.f32.mxu0 0.0
      %599 = vmatmul.mubr.f32.gmra.mxu0 %v409
      %v600 = vpop.f32.mrf.mxu0
      %v601 = vadd.f32 0.0, %v600
      %v602 = vpop.f32.mrf.mxu0
      %603 = vmatprep.mubr.f32.mxu0 0.0
      %604 = vmatmul.mubr.f32.gmra.mxu0 %v412
      %v605 = vpop.f32.mrf.mxu0
      %v606 = vadd.f32 0.0, %v605
      %v607 = vpop.f32.mrf.mxu0
      %608 = vmatprep.mubr.f32.mxu0 0.0
      %609 = vmatmul.mubr.f32.gmra.mxu0 %v415
      %v610 = vpop.f32.mrf.mxu0
      %v611 = vadd.f32 0.0, %v610
      %v612 = vpop.f32.mrf.mxu0
      %613 = vmatprep.mubr.f32.mxu0 0.0
      %614 = vmatmul.mubr.f32.gmra.mxu0 %v418
      %v615 = vpop.f32.mrf.mxu0
      %v616 = vadd.f32 0.0, %v615
      %v617 = vpop.f32.mrf.mxu0
      %618 = vmatprep.mubr.f32.mxu0 0.0
      %619 = vmatmul.mubr.f32.gmra.mxu0 %v421
      %v620 = vpop.f32.mrf.mxu0
      %v621 = vadd.f32 0.0, %v620
      %v622 = vpop.f32.mrf.mxu0
      %623 = vmatprep.mubr.f32.mxu0 0.0
      %624 = vmatmul.mubr.f32.gmra.mxu0 %v424
      %v625 = vpop.f32.mrf.mxu0
      %v626 = vadd.f32 0.0, %v625
      %v627 = vpop.f32.mrf.mxu0
      %628 = vmatprep.mubr.f32.mxu0 0.0
      %629 = vmatmul.mubr.f32.gmra.mxu0 %v427
      %v630 = vpop.f32.mrf.mxu0
      %v631 = vadd.f32 0.0, %v630
      %v632 = vpop.f32.mrf.mxu0
      %633 = vmatprep.mubr.f32.mxu0 0.0
      %634 = vmatmul.mubr.f32.gmra.mxu0 %v430
      %v635 = vpop.f32.mrf.mxu0
      %v636 = vadd.f32 0.0, %v635
      %v637 = vpop.f32.mrf.mxu0
      %638 = vmatprep.mubr.f32.mxu0 0.0
      %639 = vmatmul.mubr.f32.gmra.mxu0 %v433
      %v640 = vpop.f32.mrf.mxu0
      %v641 = vadd.f32 0.0, %v640
      %v642 = vpop.f32.mrf.mxu0
      %643 = vmatprep.mubr.f32.mxu0 0.0
      %644 = vmatmul.mubr.f32.gmra.mxu0 %v436
      %v645 = vpop.f32.mrf.mxu0
      %v646 = vadd.f32 0.0, %v645
      %v647 = vpop.f32.mrf.mxu0
      %648 = vmatprep.mubr.f32.mxu0 0.0
      %649 = vmatmul.mubr.f32.gmra.mxu0 %v439
      %v650 = vpop.f32.mrf.mxu0
      %v651 = vadd.f32 0.0, %v650
      %v652 = vpop.f32.mrf.mxu0
      %653 = vmatprep.mubr.f32.mxu0 0.0
      %654 = vmatmul.mubr.f32.gmra.mxu0 %v442
      %v655 = vpop.f32.mrf.mxu0
      %v656 = vadd.f32 0.0, %v655
      %v657 = vpop.f32.mrf.mxu0
      %658 = vmatprep.mubr.f32.mxu0 0.0
      %659 = vmatmul.mubr.f32.gmra.mxu0 %v445
      %v660 = vpop.f32.mrf.mxu0
      %v661 = vadd.f32 0.0, %v660
      %v662 = vpop.f32.mrf.mxu0
      %663 = vmatprep.mubr.f32.mxu0 0.0
      %664 = vmatmul.mubr.f32.gmra.mxu0 %v448
      %v665 = vpop.f32.mrf.mxu0
      %v666 = vadd.f32 0.0, %v665
      %v667 = vpop.f32.mrf.mxu0
      %668 = vmatprep.mubr.f32.mxu0 0.0
      %669 = vmatmul.mubr.f32.gmra.mxu0 %v451
      %v670 = vpop.f32.mrf.mxu0
      %v671 = vadd.f32 0.0, %v670
      %v672 = vpop.f32.mrf.mxu0
      %673 = vmatprep.mubr.f32.mxu0 0.0
      %674 = vmatmul.mubr.f32.gmra.mxu0 %v454
      %v675 = vpop.f32.mrf.mxu0
      %v676 = vadd.f32 0.0, %v675
      %v677 = vpop.f32.mrf.mxu0
      %678 = vmatprep.mubr.f32.mxu0 0.0
      %679 = vmatmul.mubr.f32.gmra.mxu0 %v457
      %v680 = vpop.f32.mrf.mxu0
      %v681 = vadd.f32 0.0, %v680
      %v682 = vpop.f32.mrf.mxu0
      %683 = vmatprep.mubr.f32.mxu0 0.0
      %684 = vmatmul.mubr.f32.gmra.mxu0 %v460
      %v685 = vpop.f32.mrf.mxu0
      %v686 = vadd.f32 0.0, %v685
      %v687 = vpop.f32.mrf.mxu0
      %688 = vmatprep.mubr.f32.mxu0 0.0
      %689 = vmatmul.mubr.f32.gmra.mxu0 %v463
      %v690 = vpop.f32.mrf.mxu0
      %v691 = vadd.f32 0.0, %v690
      %v692 = vpop.f32.mrf.mxu0
      %693 = vdwg.mxu0
      %v695 = vsel %vm368, %v302, 0
      %v698 = vsel %vm368, %v303, 0
      %v701 = vsel %vm368, %v304, 0
      %v704 = vsel %vm368, %v305, 0
      %v707 = vsel %vm368, %v306, 0
      %v710 = vsel %vm368, %v307, 0
      %v713 = vsel %vm368, %v308, 0
      %v716 = vsel %vm368, %v309, 0
      %v719 = vsel %vm368, %v310, 0
      %v722 = vsel %vm368, %v311, 0
      %v725 = vsel %vm368, %v312, 0
      %v728 = vsel %vm368, %v313, 0
      %v731 = vsel %vm368, %v314, 0
      %v734 = vsel %vm368, %v315, 0
      %v737 = vsel %vm368, %v316, 0
      %v740 = vsel %vm368, %v317, 0
      %v743 = vsel %vm368, %v318, 0
      %v746 = vsel %vm368, %v319, 0
      %v749 = vsel %vm368, %v320, 0
      %v752 = vsel %vm368, %v321, 0
      %v755 = vsel %vm368, %v322, 0
      %v758 = vsel %vm368, %v323, 0
      %v761 = vsel %vm368, %v324, 0
      %v764 = vsel %vm368, %v325, 0
      %v767 = vsel %vm368, %v326, 0
      %v770 = vsel %vm368, %v327, 0
      %v773 = vsel %vm368, %v328, 0
      %v776 = vsel %vm368, %v329, 0
      %v779 = vsel %vm368, %v330, 0
      %v782 = vsel %vm368, %v331, 0
      %v785 = vsel %vm368, %v332, 0
      %v788 = vsel %vm368, %v333, 0
      %v791 = vsel %vm465, %v334, 0
      %793 = vmatprep.subr.mxu0 0.0
      %794 = vmatpush1.msra.mxu0 0.0
      %795 = vmatprep.subr.mxu0 0.0
      %796 = vmatpush1.msra.mxu0 0.0
      %797 = vmatprep.subr.mxu0 0.0
      %798 = vmatpush1.msra.mxu0 0.0
      %799 = vmatprep.subr.mxu0 0.0
      %800 = vmatpush1.msra.mxu0 0.0
      %801 = vmatprep.subr.mxu0 0.0
      %802 = vmatpush1.msra.mxu0 0.0
      %803 = vmatprep.subr.mxu0 0.0
      %804 = vmatpush1.msra.mxu0 0.0
      %805 = vmatprep.subr.mxu0 0.0
      %806 = vmatpush1.msra.mxu0 0.0
      %807 = vmatprep.subr.mxu0 0.0
      %808 = vmatpush1.msra.mxu0 0.0
      %809 = vmatprep.subr.mxu0 0.0
      %810 = vmatpush1.msra.mxu0 0.0
      %811 = vmatprep.subr.mxu0 0.0
      %812 = vmatpush1.msra.mxu0 0.0
      %813 = vmatprep.subr.mxu0 0.0
      %814 = vmatpush1.msra.mxu0 0.0
      %815 = vmatprep.subr.mxu0 0.0
      %816 = vmatpush1.msra.mxu0 0.0
      %817 = vmatprep.subr.mxu0 0.0
      %818 = vmatpush1.msra.mxu0 0.0
      %819 = vmatprep.subr.mxu0 0.0
      %820 = vmatpush1.msra.mxu0 0.0
      %821 = vmatprep.subr.mxu0 0.0
      %822 = vmatpush1.msra.mxu0 0.0
      %823 = vmatprep.subr.mxu0 0.0
      %824 = vmatpush1.msra.mxu0 %v791
      %825 = vmatprep.subr.mxu0 0.0
      %826 = vmatpush2.msra.mxu0 0.0
      %827 = vmatprep.subr.mxu0 0.0
      %828 = vmatpush2.msra.mxu0 0.0
      %829 = vmatprep.subr.mxu0 0.0
      %830 = vmatpush2.msra.mxu0 0.0
      %831 = vmatprep.subr.mxu0 0.0
      %832 = vmatpush2.msra.mxu0 0.0
      %833 = vmatprep.subr.mxu0 0.0
      %834 = vmatpush2.msra.mxu0 0.0
      %835 = vmatprep.subr.mxu0 0.0
      %836 = vmatpush2.msra.mxu0 0.0
      %837 = vmatprep.subr.mxu0 0.0
      %838 = vmatpush2.msra.mxu0 0.0
      %839 = vmatprep.subr.mxu0 0.0
      %840 = vmatpush2.msra.mxu0 0.0
      %841 = vmatprep.subr.mxu0 0.0
      %842 = vmatpush2.msra.mxu0 0.0
      %843 = vmatprep.subr.mxu0 0.0
      %844 = vmatpush2.msra.mxu0 0.0
      %845 = vmatprep.subr.mxu0 0.0
      %846 = vmatpush2.msra.mxu0 0.0
      %847 = vmatprep.subr.mxu0 0.0
      %848 = vmatpush2.msra.mxu0 0.0
      %849 = vmatprep.subr.mxu0 0.0
      %850 = vmatpush2.msra.mxu0 0.0
      %851 = vmatprep.subr.mxu0 0.0
      %852 = vmatpush2.msra.mxu0 0.0
      %853 = vmatprep.subr.mxu0 0.0
      %854 = vmatpush2.msra.mxu0 0.0
      %855 = vmatprep.subr.mxu0 0.0
      %856 = vmatpush2.msra.mxu0 0.0
      %857 = vmatprep.mubr.f32.mxu0 0.0
      %858 = vmatmul.mubr.f32.gmra.mxu0 %v695
      %v859 = vpop.f32.mrf.mxu0
      %v860 = vadd.f32 %v536, %v859
      %v861 = vpop.f32.mrf.mxu0
      %862 = vmatprep.mubr.f32.mxu0 0.0
      %863 = vmatmul.mubr.f32.gmra.mxu0 %v698
      %v864 = vpop.f32.mrf.mxu0
      %v865 = vadd.f32 %v541, %v864
      %v866 = vpop.f32.mrf.mxu0
      %867 = vmatprep.mubr.f32.mxu0 0.0
      %868 = vmatmul.mubr.f32.gmra.mxu0 %v701
      %v869 = vpop.f32.mrf.mxu0
      %v870 = vadd.f32 %v546, %v869
      %v871 = vpop.f32.mrf.mxu0
      %872 = vmatprep.mubr.f32.mxu0 0.0
      %873 = vmatmul.mubr.f32.gmra.mxu0 %v704
      %v874 = vpop.f32.mrf.mxu0
      %v875 = vadd.f32 %v551, %v874
      %v876 = vpop.f32.mrf.mxu0
      %877 = vmatprep.mubr.f32.mxu0 0.0
      %878 = vmatmul.mubr.f32.gmra.mxu0 %v707
      %v879 = vpop.f32.mrf.mxu0
      %v880 = vadd.f32 %v556, %v879
      %v881 = vpop.f32.mrf.mxu0
      %882 = vmatprep.mubr.f32.mxu0 0.0
      %883 = vmatmul.mubr.f32.gmra.mxu0 %v710
      %v884 = vpop.f32.mrf.mxu0
      %v885 = vadd.f32 %v561, %v884
      %v886 = vpop.f32.mrf.mxu0
      %887 = vmatprep.mubr.f32.mxu0 0.0
      %888 = vmatmul.mubr.f32.gmra.mxu0 %v713
      %v889 = vpop.f32.mrf.mxu0
      %v890 = vadd.f32 %v566, %v889
      %v891 = vpop.f32.mrf.mxu0
      %892 = vmatprep.mubr.f32.mxu0 0.0
      %893 = vmatmul.mubr.f32.gmra.mxu0 %v716
      %v894 = vpop.f32.mrf.mxu0
      %v895 = vadd.f32 %v571, %v894
      %v896 = vpop.f32.mrf.mxu0
      %897 = vmatprep.mubr.f32.mxu0 0.0
      %898 = vmatmul.mubr.f32.gmra.mxu0 %v719
      %v899 = vpop.f32.mrf.mxu0
      %v900 = vadd.f32 %v576, %v899
      %v901 = vpop.f32.mrf.mxu0
      %902 = vmatprep.mubr.f32.mxu0 0.0
      %903 = vmatmul.mubr.f32.gmra.mxu0 %v722
      %v904 = vpop.f32.mrf.mxu0
      %v905 = vadd.f32 %v581, %v904
      %v906 = vpop.f32.mrf.mxu0
      %907 = vmatprep.mubr.f32.mxu0 0.0
      %908 = vmatmul.mubr.f32.gmra.mxu0 %v725
      %v909 = vpop.f32.mrf.mxu0
      %v910 = vadd.f32 %v586, %v909
      %v911 = vpop.f32.mrf.mxu0
      %912 = vmatprep.mubr.f32.mxu0 0.0
      %913 = vmatmul.mubr.f32.gmra.mxu0 %v728
      %v914 = vpop.f32.mrf.mxu0
      %v915 = vadd.f32 %v591, %v914
      %v916 = vpop.f32.mrf.mxu0
      %917 = vmatprep.mubr.f32.mxu0 0.0
      %918 = vmatmul.mubr.f32.gmra.mxu0 %v731
      %v919 = vpop.f32.mrf.mxu0
      %v920 = vadd.f32 %v596, %v919
      %v921 = vpop.f32.mrf.mxu0
      %922 = vmatprep.mubr.f32.mxu0 0.0
      %923 = vmatmul.mubr.f32.gmra.mxu0 %v734
      %v924 = vpop.f32.mrf.mxu0
      %v925 = vadd.f32 %v601, %v924
      %v926 = vpop.f32.mrf.mxu0
      %927 = vmatprep.mubr.f32.mxu0 0.0
      %928 = vmatmul.mubr.f32.gmra.mxu0 %v737
      %v929 = vpop.f32.mrf.mxu0
      %v930 = vadd.f32 %v606, %v929
      %v931 = vpop.f32.mrf.mxu0
      %932 = vmatprep.mubr.f32.mxu0 0.0
      %933 = vmatmul.mubr.f32.gmra.mxu0 %v740
      %v934 = vpop.f32.mrf.mxu0
      %v935 = vadd.f32 %v611, %v934
      %v936 = vpop.f32.mrf.mxu0
      %937 = vmatprep.mubr.f32.mxu0 0.0
      %938 = vmatmul.mubr.f32.gmra.mxu0 %v743
      %v939 = vpop.f32.mrf.mxu0
      %v940 = vadd.f32 %v616, %v939
      %v941 = vpop.f32.mrf.mxu0
      %942 = vmatprep.mubr.f32.mxu0 0.0
      %943 = vmatmul.mubr.f32.gmra.mxu0 %v746
      %v944 = vpop.f32.mrf.mxu0
      %v945 = vadd.f32 %v621, %v944
      %v946 = vpop.f32.mrf.mxu0
      %947 = vmatprep.mubr.f32.mxu0 0.0
      %948 = vmatmul.mubr.f32.gmra.mxu0 %v749
      %v949 = vpop.f32.mrf.mxu0
      %v950 = vadd.f32 %v626, %v949
      %v951 = vpop.f32.mrf.mxu0
      %952 = vmatprep.mubr.f32.mxu0 0.0
      %953 = vmatmul.mubr.f32.gmra.mxu0 %v752
      %v954 = vpop.f32.mrf.mxu0
      %v955 = vadd.f32 %v631, %v954
      %v956 = vpop.f32.mrf.mxu0
      %957 = vmatprep.mubr.f32.mxu0 0.0
      %958 = vmatmul.mubr.f32.gmra.mxu0 %v755
      %v959 = vpop.f32.mrf.mxu0
      %v960 = vadd.f32 %v636, %v959
      %v961 = vpop.f32.mrf.mxu0
      %962 = vmatprep.mubr.f32.mxu0 0.0
      %963 = vmatmul.mubr.f32.gmra.mxu0 %v758
      %v964 = vpop.f32.mrf.mxu0
      %v965 = vadd.f32 %v641, %v964
      %v966 = vpop.f32.mrf.mxu0
      %967 = vmatprep.mubr.f32.mxu0 0.0
      %968 = vmatmul.mubr.f32.gmra.mxu0 %v761
      %v969 = vpop.f32.mrf.mxu0
      %v970 = vadd.f32 %v646, %v969
      %v971 = vpop.f32.mrf.mxu0
      %972 = vmatprep.mubr.f32.mxu0 0.0
      %973 = vmatmul.mubr.f32.gmra.mxu0 %v764
      %v974 = vpop.f32.mrf.mxu0
      %v975 = vadd.f32 %v651, %v974
      %v976 = vpop.f32.mrf.mxu0
      %977 = vmatprep.mubr.f32.mxu0 0.0
      %978 = vmatmul.mubr.f32.gmra.mxu0 %v767
      %v979 = vpop.f32.mrf.mxu0
      %v980 = vadd.f32 %v656, %v979
      %v981 = vpop.f32.mrf.mxu0
      %982 = vmatprep.mubr.f32.mxu0 0.0
      %983 = vmatmul.mubr.f32.gmra.mxu0 %v770
      %v984 = vpop.f32.mrf.mxu0
      %v985 = vadd.f32 %v661, %v984
      %v986 = vpop.f32.mrf.mxu0
      %987 = vmatprep.mubr.f32.mxu0 0.0
      %988 = vmatmul.mubr.f32.gmra.mxu0 %v773
      %v989 = vpop.f32.mrf.mxu0
      %v990 = vadd.f32 %v666, %v989
      %v991 = vpop.f32.mrf.mxu0
      %992 = vmatprep.mubr.f32.mxu0 0.0
      %993 = vmatmul.mubr.f32.gmra.mxu0 %v776
      %v994 = vpop.f32.mrf.mxu0
      %v995 = vadd.f32 %v671, %v994
      %v996 = vpop.f32.mrf.mxu0
      %997 = vmatprep.mubr.f32.mxu0 0.0
      %998 = vmatmul.mubr.f32.gmra.mxu0 %v779
      %v999 = vpop.f32.mrf.mxu0
      %v1000 = vadd.f32 %v676, %v999
      %v1001 = vpop.f32.mrf.mxu0
      %1002 = vmatprep.mubr.f32.mxu0 0.0
      %1003 = vmatmul.mubr.f32.gmra.mxu0 %v782
      %v1004 = vpop.f32.mrf.mxu0
      %v1005 = vadd.f32 %v681, %v1004
      %v1006 = vpop.f32.mrf.mxu0
      %1007 = vmatprep.mubr.f32.mxu0 0.0
      %1008 = vmatmul.mubr.f32.gmra.mxu0 %v785
      %v1009 = vpop.f32.mrf.mxu0
      %v1010 = vadd.f32 %v686, %v1009
      %v1011 = vpop.f32.mrf.mxu0
      %1012 = vmatprep.mubr.f32.mxu0 0.0
      %1013 = vmatmul.mubr.f32.gmra.mxu0 %v788
      %v1014 = vpop.f32.mrf.mxu0
      %v1015 = vadd.f32 %v691, %v1014
      %v1016 = vpop.f32.mrf.mxu0
      %1017 = vdwg.mxu0
      %v1018 = vld [vmem:[%s301 + $0x2] sm:$0xff]
      %v1019 = vld [vmem:[%s301 + $0xa] sm:$0xff]
      %v1020 = vld [vmem:[%s301 + $0x1a] sm:$0xff]
      %v1021 = vld [vmem:[%s301 + $0x22] sm:$0xff]
      %v1022 = vld [vmem:[%s301 + $0x32] sm:$0xff]
      %v1023 = vld [vmem:[%s301 + $0x3a] sm:$0xff]
      %v1024 = vld [vmem:[%s301 + $0x4a] sm:$0xff]
      %v1025 = vld [vmem:[%s301 + $0x52] sm:$0xff]
      %v1026 = vld [vmem:[%s301 + $0x62] sm:$0xff]
      %v1027 = vld [vmem:[%s301 + $0x6a] sm:$0xff]
      %v1028 = vld [vmem:[%s301 + $0x7a] sm:$0xff]
      %v1029 = vld [vmem:[%s301 + $0x82] sm:$0xff]
      %v1030 = vld [vmem:[%s301 + $0x92] sm:$0xff]
      %v1031 = vld [vmem:[%s301 + $0x9a] sm:$0xff]
      %v1032 = vld [vmem:[%s301 + $0xaa] sm:$0xff]
      %v1033 = vld [vmem:[%s301 + $0xb2] sm:$0xff]
      %v1034 = vld [vmem:[%s301 + $0xc2] sm:$0xff]
      %v1035 = vld [vmem:[%s301 + $0xca] sm:$0xff]
      %v1036 = vld [vmem:[%s301 + $0xda] sm:$0xff]
      %v1037 = vld [vmem:[%s301 + $0xe2] sm:$0xff]
      %v1038 = vld [vmem:[%s301 + $0xf2] sm:$0xff]
      %v1039 = vld [vmem:[%s301 + $0xfa] sm:$0xff]
      %v1040 = vld [vmem:[%s301 + $0x10a] sm:$0xff]
      %v1041 = vld [vmem:[%s301 + $0x112] sm:$0xff]
      %v1042 = vld [vmem:[%s301 + $0x122] sm:$0xff]
      %v1043 = vld [vmem:[%s301 + $0x12a] sm:$0xff]
      %v1044 = vld [vmem:[%s301 + $0x13a] sm:$0xff]
      %v1045 = vld [vmem:[%s301 + $0x142] sm:$0xff]
      %v1046 = vld [vmem:[%s301 + $0x152] sm:$0xff]
      %v1047 = vld [vmem:[%s301 + $0x15a] sm:$0xff]
      %v1048 = vld [vmem:[%s301 + $0x16a] sm:$0xff]
      %v1049 = vld [vmem:[%s301 + $0x172] sm:$0xff]
      %v1050 = vld [vmem:[%s1 + $0x8] sm:$0xf]
      %v1052 = vsel %vm368, %v1018, 0
      %v1055 = vsel %vm368, %v1019, 0
      %v1058 = vsel %vm368, %v1020, 0
      %v1061 = vsel %vm368, %v1021, 0
      %v1064 = vsel %vm368, %v1022, 0
      %v1067 = vsel %vm368, %v1023, 0
      %v1070 = vsel %vm368, %v1024, 0
      %v1073 = vsel %vm368, %v1025, 0
      %v1076 = vsel %vm368, %v1026, 0
      %v1079 = vsel %vm368, %v1027, 0
      %v1082 = vsel %vm368, %v1028, 0
      %v1085 = vsel %vm368, %v1029, 0
      %v1088 = vsel %vm368, %v1030, 0
      %v1091 = vsel %vm368, %v1031, 0
      %v1094 = vsel %vm368, %v1032, 0
      %v1097 = vsel %vm368, %v1033, 0
      %v1100 = vsel %vm368, %v1034, 0
      %v1103 = vsel %vm368, %v1035, 0
      %v1106 = vsel %vm368, %v1036, 0
      %v1109 = vsel %vm368, %v1037, 0
      %v1112 = vsel %vm368, %v1038, 0
      %v1115 = vsel %vm368, %v1039, 0
      %v1118 = vsel %vm368, %v1040, 0
      %v1121 = vsel %vm368, %v1041, 0
      %v1124 = vsel %vm368, %v1042, 0
      %v1127 = vsel %vm368, %v1043, 0
      %v1130 = vsel %vm368, %v1044, 0
      %v1133 = vsel %vm368, %v1045, 0
      %v1136 = vsel %vm368, %v1046, 0
      %v1139 = vsel %vm368, %v1047, 0
      %v1142 = vsel %vm368, %v1048, 0
      %v1145 = vsel %vm368, %v1049, 0
      %v1148 = vsel %vm465, %v1050, 0
      %1150 = vmatprep.subr.mxu0 0.0
      %1151 = vmatpush1.msra.mxu0 0.0
      %1152 = vmatprep.subr.mxu0 0.0
      %1153 = vmatpush1.msra.mxu0 0.0
      %1154 = vmatprep.subr.mxu0 0.0
      %1155 = vmatpush1.msra.mxu0 0.0
      %1156 = vmatprep.subr.mxu0 0.0
      %1157 = vmatpush1.msra.mxu0 0.0
      %1158 = vmatprep.subr.mxu0 0.0
      %1159 = vmatpush1.msra.mxu0 0.0
      %1160 = vmatprep.subr.mxu0 0.0
      %1161 = vmatpush1.msra.mxu0 0.0
      %1162 = vmatprep.subr.mxu0 0.0
      %1163 = vmatpush1.msra.mxu0 0.0
      %1164 = vmatprep.subr.mxu0 0.0
      %1165 = vmatpush1.msra.mxu0 0.0
      %1166 = vmatprep.subr.mxu0 0.0
      %1167 = vmatpush1.msra.mxu0 0.0
      %1168 = vmatprep.subr.mxu0 0.0
      %1169 = vmatpush1.msra.mxu0 0.0
      %1170 = vmatprep.subr.mxu0 0.0
      %1171 = vmatpush1.msra.mxu0 0.0
      %1172 = vmatprep.subr.mxu0 0.0
      %1173 = vmatpush1.msra.mxu0 0.0
      %1174 = vmatprep.subr.mxu0 0.0
      %1175 = vmatpush1.msra.mxu0 0.0
      %1176 = vmatprep.subr.mxu0 0.0
      %1177 = vmatpush1.msra.mxu0 0.0
      %1178 = vmatprep.subr.mxu0 0.0
      %1179 = vmatpush1.msra.mxu0 0.0
      %1180 = vmatprep.subr.mxu0 0.0
      %1181 = vmatpush1.msra.mxu0 %v1148
      %1182 = vmatprep.subr.mxu0 0.0
      %1183 = vmatpush2.msra.mxu0 0.0
      %1184 = vmatprep.subr.mxu0 0.0
      %1185 = vmatpush2.msra.mxu0 0.0
      %1186 = vmatprep.subr.mxu0 0.0
      %1187 = vmatpush2.msra.mxu0 0.0
      %1188 = vmatprep.subr.mxu0 0.0
      %1189 = vmatpush2.msra.mxu0 0.0
      %1190 = vmatprep.subr.mxu0 0.0
      %1191 = vmatpush2.msra.mxu0 0.0
      %1192 = vmatprep.subr.mxu0 0.0
      %1193 = vmatpush2.msra.mxu0 0.0
      %1194 = vmatprep.subr.mxu0 0.0
      %1195 = vmatpush2.msra.mxu0 0.0
      %1196 = vmatprep.subr.mxu0 0.0
      %1197 = vmatpush2.msra.mxu0 0.0
      %1198 = vmatprep.subr.mxu0 0.0
      %1199 = vmatpush2.msra.mxu0 0.0
      %1200 = vmatprep.subr.mxu0 0.0
      %1201 = vmatpush2.msra.mxu0 0.0
      %1202 = vmatprep.subr.mxu0 0.0
      %1203 = vmatpush2.msra.mxu0 0.0
      %1204 = vmatprep.subr.mxu0 0.0
      %1205 = vmatpush2.msra.mxu0 0.0
      %1206 = vmatprep.subr.mxu0 0.0
      %1207 = vmatpush2.msra.mxu0 0.0
      %1208 = vmatprep.subr.mxu0 0.0
      %1209 = vmatpush2.msra.mxu0 0.0
      %1210 = vmatprep.subr.mxu0 0.0
      %1211 = vmatpush2.msra.mxu0 0.0
      %1212 = vmatprep.subr.mxu0 0.0
      %1213 = vmatpush2.msra.mxu0 0.0
      %1214 = vmatprep.mubr.f32.mxu0 0.0
      %1215 = vmatmul.mubr.f32.gmra.mxu0 %v1052
      %v1216 = vpop.f32.mrf.mxu0
      %v1217 = vadd.f32 0.0, %v1216
      %v1218 = vpop.f32.mrf.mxu0
      %1219 = vmatprep.mubr.f32.mxu0 0.0
      %1220 = vmatmul.mubr.f32.gmra.mxu0 %v1055
      %v1221 = vpop.f32.mrf.mxu0
      %v1222 = vadd.f32 0.0, %v1221
      %v1223 = vpop.f32.mrf.mxu0
      %1224 = vmatprep.mubr.f32.mxu0 0.0
      %1225 = vmatmul.mubr.f32.gmra.mxu0 %v1058
      %v1226 = vpop.f32.mrf.mxu0
      %v1227 = vadd.f32 0.0, %v1226
      %v1228 = vpop.f32.mrf.mxu0
      %1229 = vmatprep.mubr.f32.mxu0 0.0
      %1230 = vmatmul.mubr.f32.gmra.mxu0 %v1061
      %v1231 = vpop.f32.mrf.mxu0
      %v1232 = vadd.f32 0.0, %v1231
      %v1233 = vpop.f32.mrf.mxu0
      %1234 = vmatprep.mubr.f32.mxu0 0.0
      %1235 = vmatmul.mubr.f32.gmra.mxu0 %v1064
      %v1236 = vpop.f32.mrf.mxu0
      %v1237 = vadd.f32 0.0, %v1236
      %v1238 = vpop.f32.mrf.mxu0
      %1239 = vmatprep.mubr.f32.mxu0 0.0
      %1240 = vmatmul.mubr.f32.gmra.mxu0 %v1067
      %v1241 = vpop.f32.mrf.mxu0
      %v1242 = vadd.f32 0.0, %v1241
      %v1243 = vpop.f32.mrf.mxu0
      %1244 = vmatprep.mubr.f32.mxu0 0.0
      %1245 = vmatmul.mubr.f32.gmra.mxu0 %v1070
      %v1246 = vpop.f32.mrf.mxu0
      %v1247 = vadd.f32 0.0, %v1246
      %v1248 = vpop.f32.mrf.mxu0
      %1249 = vmatprep.mubr.f32.mxu0 0.0
      %1250 = vmatmul.mubr.f32.gmra.mxu0 %v1073
      %v1251 = vpop.f32.mrf.mxu0
      %v1252 = vadd.f32 0.0, %v1251
      %v1253 = vpop.f32.mrf.mxu0
      %1254 = vmatprep.mubr.f32.mxu0 0.0
      %1255 = vmatmul.mubr.f32.gmra.mxu0 %v1076
      %v1256 = vpop.f32.mrf.mxu0
      %v1257 = vadd.f32 0.0, %v1256
      %v1258 = vpop.f32.mrf.mxu0
      %1259 = vmatprep.mubr.f32.mxu0 0.0
      %1260 = vmatmul.mubr.f32.gmra.mxu0 %v1079
      %v1261 = vpop.f32.mrf.mxu0
      %v1262 = vadd.f32 0.0, %v1261
      %v1263 = vpop.f32.mrf.mxu0
      %1264 = vmatprep.mubr.f32.mxu0 0.0
      %1265 = vmatmul.mubr.f32.gmra.mxu0 %v1082
      %v1266 = vpop.f32.mrf.mxu0
      %v1267 = vadd.f32 0.0, %v1266
      %v1268 = vpop.f32.mrf.mxu0
      %1269 = vmatprep.mubr.f32.mxu0 0.0
      %1270 = vmatmul.mubr.f32.gmra.mxu0 %v1085
      %v1271 = vpop.f32.mrf.mxu0
      %v1272 = vadd.f32 0.0, %v1271
      %v1273 = vpop.f32.mrf.mxu0
      %1274 = vmatprep.mubr.f32.mxu0 0.0
      %1275 = vmatmul.mubr.f32.gmra.mxu0 %v1088
      %v1276 = vpop.f32.mrf.mxu0
      %v1277 = vadd.f32 0.0, %v1276
      %v1278 = vpop.f32.mrf.mxu0
      %1279 = vmatprep.mubr.f32.mxu0 0.0
      %1280 = vmatmul.mubr.f32.gmra.mxu0 %v1091
      %v1281 = vpop.f32.mrf.mxu0
      %v1282 = vadd.f32 0.0, %v1281
      %v1283 = vpop.f32.mrf.mxu0
      %1284 = vmatprep.mubr.f32.mxu0 0.0
      %1285 = vmatmul.mubr.f32.gmra.mxu0 %v1094
      %v1286 = vpop.f32.mrf.mxu0
      %v1287 = vadd.f32 0.0, %v1286
      %v1288 = vpop.f32.mrf.mxu0
      %1289 = vmatprep.mubr.f32.mxu0 0.0
      %1290 = vmatmul.mubr.f32.gmra.mxu0 %v1097
      %v1291 = vpop.f32.mrf.mxu0
      %v1292 = vadd.f32 0.0, %v1291
      %v1293 = vpop.f32.mrf.mxu0
      %1294 = vmatprep.mubr.f32.mxu0 0.0
      %1295 = vmatmul.mubr.f32.gmra.mxu0 %v1100
      %v1296 = vpop.f32.mrf.mxu0
      %v1297 = vadd.f32 0.0, %v1296
      %v1298 = vpop.f32.mrf.mxu0
      %1299 = vmatprep.mubr.f32.mxu0 0.0
      %1300 = vmatmul.mubr.f32.gmra.mxu0 %v1103
      %v1301 = vpop.f32.mrf.mxu0
      %v1302 = vadd.f32 0.0, %v1301
      %v1303 = vpop.f32.mrf.mxu0
      %1304 = vmatprep.mubr.f32.mxu0 0.0
      %1305 = vmatmul.mubr.f32.gmra.mxu0 %v1106
      %v1306 = vpop.f32.mrf.mxu0
      %v1307 = vadd.f32 0.0, %v1306
      %v1308 = vpop.f32.mrf.mxu0
      %1309 = vmatprep.mubr.f32.mxu0 0.0
      %1310 = vmatmul.mubr.f32.gmra.mxu0 %v1109
      %v1311 = vpop.f32.mrf.mxu0
      %v1312 = vadd.f32 0.0, %v1311
      %v1313 = vpop.f32.mrf.mxu0
      %1314 = vmatprep.mubr.f32.mxu0 0.0
      %1315 = vmatmul.mubr.f32.gmra.mxu0 %v1112
      %v1316 = vpop.f32.mrf.mxu0
      %v1317 = vadd.f32 0.0, %v1316
      %v1318 = vpop.f32.mrf.mxu0
      %1319 = vmatprep.mubr.f32.mxu0 0.0
      %1320 = vmatmul.mubr.f32.gmra.mxu0 %v1115
      %v1321 = vpop.f32.mrf.mxu0
      %v1322 = vadd.f32 0.0, %v1321
      %v1323 = vpop.f32.mrf.mxu0
      %1324 = vmatprep.mubr.f32.mxu0 0.0
      %1325 = vmatmul.mubr.f32.gmra.mxu0 %v1118
      %v1326 = vpop.f32.mrf.mxu0
      %v1327 = vadd.f32 0.0, %v1326
      %v1328 = vpop.f32.mrf.mxu0
      %1329 = vmatprep.mubr.f32.mxu0 0.0
      %1330 = vmatmul.mubr.f32.gmra.mxu0 %v1121
      %v1331 = vpop.f32.mrf.mxu0
      %v1332 = vadd.f32 0.0, %v1331
      %v1333 = vpop.f32.mrf.mxu0
      %1334 = vmatprep.mubr.f32.mxu0 0.0
      %1335 = vmatmul.mubr.f32.gmra.mxu0 %v1124
      %v1336 = vpop.f32.mrf.mxu0
      %v1337 = vadd.f32 0.0, %v1336
      %v1338 = vpop.f32.mrf.mxu0
      %1339 = vmatprep.mubr.f32.mxu0 0.0
      %1340 = vmatmul.mubr.f32.gmra.mxu0 %v1127
      %v1341 = vpop.f32.mrf.mxu0
      %v1342 = vadd.f32 0.0, %v1341
      %v1343 = vpop.f32.mrf.mxu0
      %1344 = vmatprep.mubr.f32.mxu0 0.0
      %1345 = vmatmul.mubr.f32.gmra.mxu0 %v1130
      %v1346 = vpop.f32.mrf.mxu0
      %v1347 = vadd.f32 0.0, %v1346
      %v1348 = vpop.f32.mrf.mxu0
      %1349 = vmatprep.mubr.f32.mxu0 0.0
      %1350 = vmatmul.mubr.f32.gmra.mxu0 %v1133
      %v1351 = vpop.f32.mrf.mxu0
      %v1352 = vadd.f32 0.0, %v1351
      %v1353 = vpop.f32.mrf.mxu0
      %1354 = vmatprep.mubr.f32.mxu0 0.0
      %1355 = vmatmul.mubr.f32.gmra.mxu0 %v1136
      %v1356 = vpop.f32.mrf.mxu0
      %v1357 = vadd.f32 0.0, %v1356
      %v1358 = vpop.f32.mrf.mxu0
      %1359 = vmatprep.mubr.f32.mxu0 0.0
      %1360 = vmatmul.mubr.f32.gmra.mxu0 %v1139
      %v1361 = vpop.f32.mrf.mxu0
      %v1362 = vadd.f32 0.0, %v1361
      %v1363 = vpop.f32.mrf.mxu0
      %1364 = vmatprep.mubr.f32.mxu0 0.0
      %1365 = vmatmul.mubr.f32.gmra.mxu0 %v1142
      %v1366 = vpop.f32.mrf.mxu0
      %v1367 = vadd.f32 0.0, %v1366
      %v1368 = vpop.f32.mrf.mxu0
      %1369 = vmatprep.mubr.f32.mxu0 0.0
      %1370 = vmatmul.mubr.f32.gmra.mxu0 %v1145
      %v1371 = vpop.f32.mrf.mxu0
      %v1372 = vadd.f32 0.0, %v1371
      %v1373 = vpop.f32.mrf.mxu0
      %1374 = vdwg.mxu0
      %v1375 = vadd.f32 %v860, %v1217
      %v1376 = vadd.f32 %v865, %v1222
      %v1377 = vadd.f32 %v870, %v1227
      %v1378 = vadd.f32 %v875, %v1232
      %v1379 = vadd.f32 %v880, %v1237
      %v1380 = vadd.f32 %v885, %v1242
      %v1381 = vadd.f32 %v890, %v1247
      %v1382 = vadd.f32 %v895, %v1252
      %v1383 = vadd.f32 %v900, %v1257
      %v1384 = vadd.f32 %v905, %v1262
      %v1385 = vadd.f32 %v910, %v1267
      %v1386 = vadd.f32 %v915, %v1272
      %v1387 = vadd.f32 %v920, %v1277
      %v1388 = vadd.f32 %v925, %v1282
      %v1389 = vadd.f32 %v930, %v1287
      %v1390 = vadd.f32 %v935, %v1292
      %v1391 = vadd.f32 %v940, %v1297
      %v1392 = vadd.f32 %v945, %v1302
      %v1393 = vadd.f32 %v950, %v1307
      %v1394 = vadd.f32 %v955, %v1312
      %v1395 = vadd.f32 %v960, %v1317
      %v1396 = vadd.f32 %v965, %v1322
      %v1397 = vadd.f32 %v970, %v1327
      %v1398 = vadd.f32 %v975, %v1332
      %v1399 = vadd.f32 %v980, %v1337
      %v1400 = vadd.f32 %v985, %v1342
      %v1401 = vadd.f32 %v990, %v1347
      %v1402 = vadd.f32 %v995, %v1352
      %v1403 = vadd.f32 %v1000, %v1357
      %v1404 = vadd.f32 %v1005, %v1362
      %v1405 = vadd.f32 %v1010, %v1367
      %v1406 = vadd.f32 %v1015, %v1372
      %s1407 = sadd.s32 %s299, 1
      %s1408 = smul.u32 %s1407, 24
      %s1409 = scalar_lea.vmem %s278, %s1408
      %v1410 = vld [vmem:[%s1409] sm:$0xff]
      %v1411 = vld [vmem:[%s1409 + $0x8] sm:$0xff]
      %v1412 = vld [vmem:[%s1409 + $0x18] sm:$0xff]
      %v1413 = vld [vmem:[%s1409 + $0x20] sm:$0xff]
      %v1414 = vld [vmem:[%s1409 + $0x30] sm:$0xff]
      %v1415 = vld [vmem:[%s1409 + $0x38] sm:$0xff]
      %v1416 = vld [vmem:[%s1409 + $0x48] sm:$0xff]
      %v1417 = vld [vmem:[%s1409 + $0x50] sm:$0xff]
      %v1418 = vld [vmem:[%s1409 + $0x60] sm:$0xff]
      %v1419 = vld [vmem:[%s1409 + $0x68] sm:$0xff]
      %v1420 = vld [vmem:[%s1409 + $0x78] sm:$0xff]
      %v1421 = vld [vmem:[%s1409 + $0x80] sm:$0xff]
      %v1422 = vld [vmem:[%s1409 + $0x90] sm:$0xff]
      %v1423 = vld [vmem:[%s1409 + $0x98] sm:$0xff]
      %v1424 = vld [vmem:[%s1409 + $0xa8] sm:$0xff]
      %v1425 = vld [vmem:[%s1409 + $0xb0] sm:$0xff]
      %v1426 = vld [vmem:[%s1409 + $0xc0] sm:$0xff]
      %v1427 = vld [vmem:[%s1409 + $0xc8] sm:$0xff]
      %v1428 = vld [vmem:[%s1409 + $0xd8] sm:$0xff]
      %v1429 = vld [vmem:[%s1409 + $0xe0] sm:$0xff]
      %v1430 = vld [vmem:[%s1409 + $0xf0] sm:$0xff]
      %v1431 = vld [vmem:[%s1409 + $0xf8] sm:$0xff]
      %v1432 = vld [vmem:[%s1409 + $0x108] sm:$0xff]
      %v1433 = vld [vmem:[%s1409 + $0x110] sm:$0xff]
      %v1434 = vld [vmem:[%s1409 + $0x120] sm:$0xff]
      %v1435 = vld [vmem:[%s1409 + $0x128] sm:$0xff]
      %v1436 = vld [vmem:[%s1409 + $0x138] sm:$0xff]
      %v1437 = vld [vmem:[%s1409 + $0x140] sm:$0xff]
      %v1438 = vld [vmem:[%s1409 + $0x150] sm:$0xff]
      %v1439 = vld [vmem:[%s1409 + $0x158] sm:$0xff]
      %v1440 = vld [vmem:[%s1409 + $0x168] sm:$0xff]
      %v1441 = vld [vmem:[%s1409 + $0x170] sm:$0xff]
      %v1442 = vld [vmem:[%s1 + $0xc] sm:$0xf]
      %v1444 = vsel %vm368, %v1410, 0
      %v1447 = vsel %vm368, %v1411, 0
      %v1450 = vsel %vm368, %v1412, 0
      %v1453 = vsel %vm368, %v1413, 0
      %v1456 = vsel %vm368, %v1414, 0
      %v1459 = vsel %vm368, %v1415, 0
      %v1462 = vsel %vm368, %v1416, 0
      %v1465 = vsel %vm368, %v1417, 0
      %v1468 = vsel %vm368, %v1418, 0
      %v1471 = vsel %vm368, %v1419, 0
      %v1474 = vsel %vm368, %v1420, 0
      %v1477 = vsel %vm368, %v1421, 0
      %v1480 = vsel %vm368, %v1422, 0
      %v1483 = vsel %vm368, %v1423, 0
      %v1486 = vsel %vm368, %v1424, 0
      %v1489 = vsel %vm368, %v1425, 0
      %v1492 = vsel %vm368, %v1426, 0
      %v1495 = vsel %vm368, %v1427, 0
      %v1498 = vsel %vm368, %v1428, 0
      %v1501 = vsel %vm368, %v1429, 0
      %v1504 = vsel %vm368, %v1430, 0
      %v1507 = vsel %vm368, %v1431, 0
      %v1510 = vsel %vm368, %v1432, 0
      %v1513 = vsel %vm368, %v1433, 0
      %v1516 = vsel %vm368, %v1434, 0
      %v1519 = vsel %vm368, %v1435, 0
      %v1522 = vsel %vm368, %v1436, 0
      %v1525 = vsel %vm368, %v1437, 0
      %v1528 = vsel %vm368, %v1438, 0
      %v1531 = vsel %vm368, %v1439, 0
      %v1534 = vsel %vm368, %v1440, 0
      %v1537 = vsel %vm368, %v1441, 0
      %v1540 = vsel %vm465, %v1442, 0
      %1542 = vmatprep.subr.mxu0 0.0
      %1543 = vmatpush1.msra.mxu0 0.0
      %1544 = vmatprep.subr.mxu0 0.0
      %1545 = vmatpush1.msra.mxu0 0.0
      %1546 = vmatprep.subr.mxu0 0.0
      %1547 = vmatpush1.msra.mxu0 0.0
      %1548 = vmatprep.subr.mxu0 0.0
      %1549 = vmatpush1.msra.mxu0 0.0
      %1550 = vmatprep.subr.mxu0 0.0
      %1551 = vmatpush1.msra.mxu0 0.0
      %1552 = vmatprep.subr.mxu0 0.0
      %1553 = vmatpush1.msra.mxu0 0.0
      %1554 = vmatprep.subr.mxu0 0.0
      %1555 = vmatpush1.msra.mxu0 0.0
      %1556 = vmatprep.subr.mxu0 0.0
      %1557 = vmatpush1.msra.mxu0 0.0
      %1558 = vmatprep.subr.mxu0 0.0
      %1559 = vmatpush1.msra.mxu0 0.0
      %1560 = vmatprep.subr.mxu0 0.0
      %1561 = vmatpush1.msra.mxu0 0.0
      %1562 = vmatprep.subr.mxu0 0.0
      %1563 = vmatpush1.msra.mxu0 0.0
      %1564 = vmatprep.subr.mxu0 0.0
      %1565 = vmatpush1.msra.mxu0 0.0
      %1566 = vmatprep.subr.mxu0 0.0
      %1567 = vmatpush1.msra.mxu0 0.0
      %1568 = vmatprep.subr.mxu0 0.0
      %1569 = vmatpush1.msra.mxu0 0.0
      %1570 = vmatprep.subr.mxu0 0.0
      %1571 = vmatpush1.msra.mxu0 0.0
      %1572 = vmatprep.subr.mxu0 0.0
      %1573 = vmatpush1.msra.mxu0 %v1540
      %1574 = vmatprep.subr.mxu0 0.0
      %1575 = vmatpush2.msra.mxu0 0.0
      %1576 = vmatprep.subr.mxu0 0.0
      %1577 = vmatpush2.msra.mxu0 0.0
      %1578 = vmatprep.subr.mxu0 0.0
      %1579 = vmatpush2.msra.mxu0 0.0
      %1580 = vmatprep.subr.mxu0 0.0
      %1581 = vmatpush2.msra.mxu0 0.0
      %1582 = vmatprep.subr.mxu0 0.0
      %1583 = vmatpush2.msra.mxu0 0.0
      %1584 = vmatprep.subr.mxu0 0.0
      %1585 = vmatpush2.msra.mxu0 0.0
      %1586 = vmatprep.subr.mxu0 0.0
      %1587 = vmatpush2.msra.mxu0 0.0
      %1588 = vmatprep.subr.mxu0 0.0
      %1589 = vmatpush2.msra.mxu0 0.0
      %1590 = vmatprep.subr.mxu0 0.0
      %1591 = vmatpush2.msra.mxu0 0.0
      %1592 = vmatprep.subr.mxu0 0.0
      %1593 = vmatpush2.msra.mxu0 0.0
      %1594 = vmatprep.subr.mxu0 0.0
      %1595 = vmatpush2.msra.mxu0 0.0
      %1596 = vmatprep.subr.mxu0 0.0
      %1597 = vmatpush2.msra.mxu0 0.0
      %1598 = vmatprep.subr.mxu0 0.0
      %1599 = vmatpush2.msra.mxu0 0.0
      %1600 = vmatprep.subr.mxu0 0.0
      %1601 = vmatpush2.msra.mxu0 0.0
      %1602 = vmatprep.subr.mxu0 0.0
      %1603 = vmatpush2.msra.mxu0 0.0
      %1604 = vmatprep.subr.mxu0 0.0
      %1605 = vmatpush2.msra.mxu0 0.0
      %1606 = vmatprep.mubr.f32.mxu0 0.0
      %1607 = vmatmul.mubr.f32.gmra.mxu0 %v1444
      %v1608 = vpop.f32.mrf.mxu0
      %v1609 = vadd.f32 0.0, %v1608
      %v1610 = vpop.f32.mrf.mxu0
      %1611 = vmatprep.mubr.f32.mxu0 0.0
      %1612 = vmatmul.mubr.f32.gmra.mxu0 %v1447
      %v1613 = vpop.f32.mrf.mxu0
      %v1614 = vadd.f32 0.0, %v1613
      %v1615 = vpop.f32.mrf.mxu0
      %1616 = vmatprep.mubr.f32.mxu0 0.0
      %1617 = vmatmul.mubr.f32.gmra.mxu0 %v1450
      %v1618 = vpop.f32.mrf.mxu0
      %v1619 = vadd.f32 0.0, %v1618
      %v1620 = vpop.f32.mrf.mxu0
      %1621 = vmatprep.mubr.f32.mxu0 0.0
      %1622 = vmatmul.mubr.f32.gmra.mxu0 %v1453
      %v1623 = vpop.f32.mrf.mxu0
      %v1624 = vadd.f32 0.0, %v1623
      %v1625 = vpop.f32.mrf.mxu0
      %1626 = vmatprep.mubr.f32.mxu0 0.0
      %1627 = vmatmul.mubr.f32.gmra.mxu0 %v1456
      %v1628 = vpop.f32.mrf.mxu0
      %v1629 = vadd.f32 0.0, %v1628
      %v1630 = vpop.f32.mrf.mxu0
      %1631 = vmatprep.mubr.f32.mxu0 0.0
      %1632 = vmatmul.mubr.f32.gmra.mxu0 %v1459
      %v1633 = vpop.f32.mrf.mxu0
      %v1634 = vadd.f32 0.0, %v1633
      %v1635 = vpop.f32.mrf.mxu0
      %1636 = vmatprep.mubr.f32.mxu0 0.0
      %1637 = vmatmul.mubr.f32.gmra.mxu0 %v1462
      %v1638 = vpop.f32.mrf.mxu0
      %v1639 = vadd.f32 0.0, %v1638
      %v1640 = vpop.f32.mrf.mxu0
      %1641 = vmatprep.mubr.f32.mxu0 0.0
      %1642 = vmatmul.mubr.f32.gmra.mxu0 %v1465
      %v1643 = vpop.f32.mrf.mxu0
      %v1644 = vadd.f32 0.0, %v1643
      %v1645 = vpop.f32.mrf.mxu0
      %1646 = vmatprep.mubr.f32.mxu0 0.0
      %1647 = vmatmul.mubr.f32.gmra.mxu0 %v1468
      %v1648 = vpop.f32.mrf.mxu0
      %v1649 = vadd.f32 0.0, %v1648
      %v1650 = vpop.f32.mrf.mxu0
      %1651 = vmatprep.mubr.f32.mxu0 0.0
      %1652 = vmatmul.mubr.f32.gmra.mxu0 %v1471
      %v1653 = vpop.f32.mrf.mxu0
      %v1654 = vadd.f32 0.0, %v1653
      %v1655 = vpop.f32.mrf.mxu0
      %1656 = vmatprep.mubr.f32.mxu0 0.0
      %1657 = vmatmul.mubr.f32.gmra.mxu0 %v1474
      %v1658 = vpop.f32.mrf.mxu0
      %v1659 = vadd.f32 0.0, %v1658
      %v1660 = vpop.f32.mrf.mxu0
      %1661 = vmatprep.mubr.f32.mxu0 0.0
      %1662 = vmatmul.mubr.f32.gmra.mxu0 %v1477
      %v1663 = vpop.f32.mrf.mxu0
      %v1664 = vadd.f32 0.0, %v1663
      %v1665 = vpop.f32.mrf.mxu0
      %1666 = vmatprep.mubr.f32.mxu0 0.0
      %1667 = vmatmul.mubr.f32.gmra.mxu0 %v1480
      %v1668 = vpop.f32.mrf.mxu0
      %v1669 = vadd.f32 0.0, %v1668
      %v1670 = vpop.f32.mrf.mxu0
      %1671 = vmatprep.mubr.f32.mxu0 0.0
      %1672 = vmatmul.mubr.f32.gmra.mxu0 %v1483
      %v1673 = vpop.f32.mrf.mxu0
      %v1674 = vadd.f32 0.0, %v1673
      %v1675 = vpop.f32.mrf.mxu0
      %1676 = vmatprep.mubr.f32.mxu0 0.0
      %1677 = vmatmul.mubr.f32.gmra.mxu0 %v1486
      %v1678 = vpop.f32.mrf.mxu0
      %v1679 = vadd.f32 0.0, %v1678
      %v1680 = vpop.f32.mrf.mxu0
      %1681 = vmatprep.mubr.f32.mxu0 0.0
      %1682 = vmatmul.mubr.f32.gmra.mxu0 %v1489
      %v1683 = vpop.f32.mrf.mxu0
      %v1684 = vadd.f32 0.0, %v1683
      %v1685 = vpop.f32.mrf.mxu0
      %1686 = vmatprep.mubr.f32.mxu0 0.0
      %1687 = vmatmul.mubr.f32.gmra.mxu0 %v1492
      %v1688 = vpop.f32.mrf.mxu0
      %v1689 = vadd.f32 0.0, %v1688
      %v1690 = vpop.f32.mrf.mxu0
      %1691 = vmatprep.mubr.f32.mxu0 0.0
      %1692 = vmatmul.mubr.f32.gmra.mxu0 %v1495
      %v1693 = vpop.f32.mrf.mxu0
      %v1694 = vadd.f32 0.0, %v1693
      %v1695 = vpop.f32.mrf.mxu0
      %1696 = vmatprep.mubr.f32.mxu0 0.0
      %1697 = vmatmul.mubr.f32.gmra.mxu0 %v1498
      %v1698 = vpop.f32.mrf.mxu0
      %v1699 = vadd.f32 0.0, %v1698
      %v1700 = vpop.f32.mrf.mxu0
      %1701 = vmatprep.mubr.f32.mxu0 0.0
      %1702 = vmatmul.mubr.f32.gmra.mxu0 %v1501
      %v1703 = vpop.f32.mrf.mxu0
      %v1704 = vadd.f32 0.0, %v1703
      %v1705 = vpop.f32.mrf.mxu0
      %1706 = vmatprep.mubr.f32.mxu0 0.0
      %1707 = vmatmul.mubr.f32.gmra.mxu0 %v1504
      %v1708 = vpop.f32.mrf.mxu0
      %v1709 = vadd.f32 0.0, %v1708
      %v1710 = vpop.f32.mrf.mxu0
      %1711 = vmatprep.mubr.f32.mxu0 0.0
      %1712 = vmatmul.mubr.f32.gmra.mxu0 %v1507
      %v1713 = vpop.f32.mrf.mxu0
      %v1714 = vadd.f32 0.0, %v1713
      %v1715 = vpop.f32.mrf.mxu0
      %1716 = vmatprep.mubr.f32.mxu0 0.0
      %1717 = vmatmul.mubr.f32.gmra.mxu0 %v1510
      %v1718 = vpop.f32.mrf.mxu0
      %v1719 = vadd.f32 0.0, %v1718
      %v1720 = vpop.f32.mrf.mxu0
      %1721 = vmatprep.mubr.f32.mxu0 0.0
      %1722 = vmatmul.mubr.f32.gmra.mxu0 %v1513
      %v1723 = vpop.f32.mrf.mxu0
      %v1724 = vadd.f32 0.0, %v1723
      %v1725 = vpop.f32.mrf.mxu0
      %1726 = vmatprep.mubr.f32.mxu0 0.0
      %1727 = vmatmul.mubr.f32.gmra.mxu0 %v1516
      %v1728 = vpop.f32.mrf.mxu0
      %v1729 = vadd.f32 0.0, %v1728
      %v1730 = vpop.f32.mrf.mxu0
      %1731 = vmatprep.mubr.f32.mxu0 0.0
      %1732 = vmatmul.mubr.f32.gmra.mxu0 %v1519
      %v1733 = vpop.f32.mrf.mxu0
      %v1734 = vadd.f32 0.0, %v1733
      %v1735 = vpop.f32.mrf.mxu0
      %1736 = vmatprep.mubr.f32.mxu0 0.0
      %1737 = vmatmul.mubr.f32.gmra.mxu0 %v1522
      %v1738 = vpop.f32.mrf.mxu0
      %v1739 = vadd.f32 0.0, %v1738
      %v1740 = vpop.f32.mrf.mxu0
      %1741 = vmatprep.mubr.f32.mxu0 0.0
      %1742 = vmatmul.mubr.f32.gmra.mxu0 %v1525
      %v1743 = vpop.f32.mrf.mxu0
      %v1744 = vadd.f32 0.0, %v1743
      %v1745 = vpop.f32.mrf.mxu0
      %1746 = vmatprep.mubr.f32.mxu0 0.0
      %1747 = vmatmul.mubr.f32.gmra.mxu0 %v1528
      %v1748 = vpop.f32.mrf.mxu0
      %v1749 = vadd.f32 0.0, %v1748
      %v1750 = vpop.f32.mrf.mxu0
      %1751 = vmatprep.mubr.f32.mxu0 0.0
      %1752 = vmatmul.mubr.f32.gmra.mxu0 %v1531
      %v1753 = vpop.f32.mrf.mxu0
      %v1754 = vadd.f32 0.0, %v1753
      %v1755 = vpop.f32.mrf.mxu0
      %1756 = vmatprep.mubr.f32.mxu0 0.0
      %1757 = vmatmul.mubr.f32.gmra.mxu0 %v1534
      %v1758 = vpop.f32.mrf.mxu0
      %v1759 = vadd.f32 0.0, %v1758
      %v1760 = vpop.f32.mrf.mxu0
      %1761 = vmatprep.mubr.f32.mxu0 0.0
      %1762 = vmatmul.mubr.f32.gmra.mxu0 %v1537
      %v1763 = vpop.f32.mrf.mxu0
      %v1764 = vadd.f32 0.0, %v1763
      %v1765 = vpop.f32.mrf.mxu0
      %1766 = vdwg.mxu0
      %v1767 = vadd.f32 %v1375, %v1609
      %v1768 = vadd.f32 %v1376, %v1614
      %v1769 = vadd.f32 %v1377, %v1619
      %v1770 = vadd.f32 %v1378, %v1624
      %v1771 = vadd.f32 %v1379, %v1629
      %v1772 = vadd.f32 %v1380, %v1634
      %v1773 = vadd.f32 %v1381, %v1639
      %v1774 = vadd.f32 %v1382, %v1644
      %v1775 = vadd.f32 %v1383, %v1649
      %v1776 = vadd.f32 %v1384, %v1654
      %v1777 = vadd.f32 %v1385, %v1659
      %v1778 = vadd.f32 %v1386, %v1664
      %v1779 = vadd.f32 %v1387, %v1669
      %v1780 = vadd.f32 %v1388, %v1674
      %v1781 = vadd.f32 %v1389, %v1679
      %v1782 = vadd.f32 %v1390, %v1684
      %v1783 = vadd.f32 %v1391, %v1689
      %v1784 = vadd.f32 %v1392, %v1694
      %v1785 = vadd.f32 %v1393, %v1699
      %v1786 = vadd.f32 %v1394, %v1704
      %v1787 = vadd.f32 %v1395, %v1709
      %v1788 = vadd.f32 %v1396, %v1714
      %v1789 = vadd.f32 %v1397, %v1719
      %v1790 = vadd.f32 %v1398, %v1724
      %v1791 = vadd.f32 %v1399, %v1729
      %v1792 = vadd.f32 %v1400, %v1734
      %v1793 = vadd.f32 %v1401, %v1739
      %v1794 = vadd.f32 %v1402, %v1744
      %v1795 = vadd.f32 %v1403, %v1749
      %v1796 = vadd.f32 %v1404, %v1754
      %v1797 = vadd.f32 %v1405, %v1759
      %v1798 = vadd.f32 %v1406, %v1764
      %v1799 = vld [vmem:[%s1409 + $0x1] sm:$0xff]
      %v1800 = vld [vmem:[%s1409 + $0x9] sm:$0xff]
      %v1801 = vld [vmem:[%s1409 + $0x19] sm:$0xff]
      %v1802 = vld [vmem:[%s1409 + $0x21] sm:$0xff]
      %v1803 = vld [vmem:[%s1409 + $0x31] sm:$0xff]
      %v1804 = vld [vmem:[%s1409 + $0x39] sm:$0xff]
      %v1805 = vld [vmem:[%s1409 + $0x49] sm:$0xff]
      %v1806 = vld [vmem:[%s1409 + $0x51] sm:$0xff]
      %v1807 = vld [vmem:[%s1409 + $0x61] sm:$0xff]
      %v1808 = vld [vmem:[%s1409 + $0x69] sm:$0xff]
      %v1809 = vld [vmem:[%s1409 + $0x79] sm:$0xff]
      %v1810 = vld [vmem:[%s1409 + $0x81] sm:$0xff]
      %v1811 = vld [vmem:[%s1409 + $0x91] sm:$0xff]
      %v1812 = vld [vmem:[%s1409 + $0x99] sm:$0xff]
      %v1813 = vld [vmem:[%s1409 + $0xa9] sm:$0xff]
      %v1814 = vld [vmem:[%s1409 + $0xb1] sm:$0xff]
      %v1815 = vld [vmem:[%s1409 + $0xc1] sm:$0xff]
      %v1816 = vld [vmem:[%s1409 + $0xc9] sm:$0xff]
      %v1817 = vld [vmem:[%s1409 + $0xd9] sm:$0xff]
      %v1818 = vld [vmem:[%s1409 + $0xe1] sm:$0xff]
      %v1819 = vld [vmem:[%s1409 + $0xf1] sm:$0xff]
      %v1820 = vld [vmem:[%s1409 + $0xf9] sm:$0xff]
      %v1821 = vld [vmem:[%s1409 + $0x109] sm:$0xff]
      %v1822 = vld [vmem:[%s1409 + $0x111] sm:$0xff]
      %v1823 = vld [vmem:[%s1409 + $0x121] sm:$0xff]
      %v1824 = vld [vmem:[%s1409 + $0x129] sm:$0xff]
      %v1825 = vld [vmem:[%s1409 + $0x139] sm:$0xff]
      %v1826 = vld [vmem:[%s1409 + $0x141] sm:$0xff]
      %v1827 = vld [vmem:[%s1409 + $0x151] sm:$0xff]
      %v1828 = vld [vmem:[%s1409 + $0x159] sm:$0xff]
      %v1829 = vld [vmem:[%s1409 + $0x169] sm:$0xff]
      %v1830 = vld [vmem:[%s1409 + $0x171] sm:$0xff]
      %v1831 = vld [vmem:[%s1 + $0x10] sm:$0xf]
      %v1833 = vsel %vm368, %v1799, 0
      %v1836 = vsel %vm368, %v1800, 0
      %v1839 = vsel %vm368, %v1801, 0
      %v1842 = vsel %vm368, %v1802, 0
      %v1845 = vsel %vm368, %v1803, 0
      %v1848 = vsel %vm368, %v1804, 0
      %v1851 = vsel %vm368, %v1805, 0
      %v1854 = vsel %vm368, %v1806, 0
      %v1857 = vsel %vm368, %v1807, 0
      %v1860 = vsel %vm368, %v1808, 0
      %v1863 = vsel %vm368, %v1809, 0
      %v1866 = vsel %vm368, %v1810, 0
      %v1869 = vsel %vm368, %v1811, 0
      %v1872 = vsel %vm368, %v1812, 0
      %v1875 = vsel %vm368, %v1813, 0
      %v1878 = vsel %vm368, %v1814, 0
      %v1881 = vsel %vm368, %v1815, 0
      %v1884 = vsel %vm368, %v1816, 0
      %v1887 = vsel %vm368, %v1817, 0
      %v1890 = vsel %vm368, %v1818, 0
      %v1893 = vsel %vm368, %v1819, 0
      %v1896 = vsel %vm368, %v1820, 0
      %v1899 = vsel %vm368, %v1821, 0
      %v1902 = vsel %vm368, %v1822, 0
      %v1905 = vsel %vm368, %v1823, 0
      %v1908 = vsel %vm368, %v1824, 0
      %v1911 = vsel %vm368, %v1825, 0
      %v1914 = vsel %vm368, %v1826, 0
      %v1917 = vsel %vm368, %v1827, 0
      %v1920 = vsel %vm368, %v1828, 0
      %v1923 = vsel %vm368, %v1829, 0
      %v1926 = vsel %vm368, %v1830, 0
      %v1929 = vsel %vm465, %v1831, 0
      %1931 = vmatprep.subr.mxu0 0.0
      %1932 = vmatpush1.msra.mxu0 0.0
      %1933 = vmatprep.subr.mxu0 0.0
      %1934 = vmatpush1.msra.mxu0 0.0
      %1935 = vmatprep.subr.mxu0 0.0
      %1936 = vmatpush1.msra.mxu0 0.0
      %1937 = vmatprep.subr.mxu0 0.0
      %1938 = vmatpush1.msra.mxu0 0.0
      %1939 = vmatprep.subr.mxu0 0.0
      %1940 = vmatpush1.msra.mxu0 0.0
      %1941 = vmatprep.subr.mxu0 0.0
      %1942 = vmatpush1.msra.mxu0 0.0
      %1943 = vmatprep.subr.mxu0 0.0
      %1944 = vmatpush1.msra.mxu0 0.0
      %1945 = vmatprep.subr.mxu0 0.0
      %1946 = vmatpush1.msra.mxu0 0.0
      %1947 = vmatprep.subr.mxu0 0.0
      %1948 = vmatpush1.msra.mxu0 0.0
      %1949 = vmatprep.subr.mxu0 0.0
      %1950 = vmatpush1.msra.mxu0 0.0
      %1951 = vmatprep.subr.mxu0 0.0
      %1952 = vmatpush1.msra.mxu0 0.0
      %1953 = vmatprep.subr.mxu0 0.0
      %1954 = vmatpush1.msra.mxu0 0.0
      %1955 = vmatprep.subr.mxu0 0.0
      %1956 = vmatpush1.msra.mxu0 0.0
      %1957 = vmatprep.subr.mxu0 0.0
      %1958 = vmatpush1.msra.mxu0 0.0
      %1959 = vmatprep.subr.mxu0 0.0
      %1960 = vmatpush1.msra.mxu0 0.0
      %1961 = vmatprep.subr.mxu0 0.0
      %1962 = vmatpush1.msra.mxu0 %v1929
      %1963 = vmatprep.subr.mxu0 0.0
      %1964 = vmatpush2.msra.mxu0 0.0
      %1965 = vmatprep.subr.mxu0 0.0
      %1966 = vmatpush2.msra.mxu0 0.0
      %1967 = vmatprep.subr.mxu0 0.0
      %1968 = vmatpush2.msra.mxu0 0.0
      %1969 = vmatprep.subr.mxu0 0.0
      %1970 = vmatpush2.msra.mxu0 0.0
      %1971 = vmatprep.subr.mxu0 0.0
      %1972 = vmatpush2.msra.mxu0 0.0
      %1973 = vmatprep.subr.mxu0 0.0
      %1974 = vmatpush2.msra.mxu0 0.0
      %1975 = vmatprep.subr.mxu0 0.0
      %1976 = vmatpush2.msra.mxu0 0.0
      %1977 = vmatprep.subr.mxu0 0.0
      %1978 = vmatpush2.msra.mxu0 0.0
      %1979 = vmatprep.subr.mxu0 0.0
      %1980 = vmatpush2.msra.mxu0 0.0
      %1981 = vmatprep.subr.mxu0 0.0
      %1982 = vmatpush2.msra.mxu0 0.0
      %1983 = vmatprep.subr.mxu0 0.0
      %1984 = vmatpush2.msra.mxu0 0.0
      %1985 = vmatprep.subr.mxu0 0.0
      %1986 = vmatpush2.msra.mxu0 0.0
      %1987 = vmatprep.subr.mxu0 0.0
      %1988 = vmatpush2.msra.mxu0 0.0
      %1989 = vmatprep.subr.mxu0 0.0
      %1990 = vmatpush2.msra.mxu0 0.0
      %1991 = vmatprep.subr.mxu0 0.0
      %1992 = vmatpush2.msra.mxu0 0.0
      %1993 = vmatprep.subr.mxu0 0.0
      %1994 = vmatpush2.msra.mxu0 0.0
      %1995 = vmatprep.mubr.f32.mxu0 0.0
      %1996 = vmatmul.mubr.f32.gmra.mxu0 %v1833
      %v1997 = vpop.f32.mrf.mxu0
      %v1998 = vadd.f32 0.0, %v1997
      %v1999 = vpop.f32.mrf.mxu0
      %2000 = vmatprep.mubr.f32.mxu0 0.0
      %2001 = vmatmul.mubr.f32.gmra.mxu0 %v1836
      %v2002 = vpop.f32.mrf.mxu0
      %v2003 = vadd.f32 0.0, %v2002
      %v2004 = vpop.f32.mrf.mxu0
      %2005 = vmatprep.mubr.f32.mxu0 0.0
      %2006 = vmatmul.mubr.f32.gmra.mxu0 %v1839
      %v2007 = vpop.f32.mrf.mxu0
      %v2008 = vadd.f32 0.0, %v2007
      %v2009 = vpop.f32.mrf.mxu0
      %2010 = vmatprep.mubr.f32.mxu0 0.0
      %2011 = vmatmul.mubr.f32.gmra.mxu0 %v1842
      %v2012 = vpop.f32.mrf.mxu0
      %v2013 = vadd.f32 0.0, %v2012
      %v2014 = vpop.f32.mrf.mxu0
      %2015 = vmatprep.mubr.f32.mxu0 0.0
      %2016 = vmatmul.mubr.f32.gmra.mxu0 %v1845
      %v2017 = vpop.f32.mrf.mxu0
      %v2018 = vadd.f32 0.0, %v2017
      %v2019 = vpop.f32.mrf.mxu0
      %2020 = vmatprep.mubr.f32.mxu0 0.0
      %2021 = vmatmul.mubr.f32.gmra.mxu0 %v1848
      %v2022 = vpop.f32.mrf.mxu0
      %v2023 = vadd.f32 0.0, %v2022
      %v2024 = vpop.f32.mrf.mxu0
      %2025 = vmatprep.mubr.f32.mxu0 0.0
      %2026 = vmatmul.mubr.f32.gmra.mxu0 %v1851
      %v2027 = vpop.f32.mrf.mxu0
      %v2028 = vadd.f32 0.0, %v2027
      %v2029 = vpop.f32.mrf.mxu0
      %2030 = vmatprep.mubr.f32.mxu0 0.0
      %2031 = vmatmul.mubr.f32.gmra.mxu0 %v1854
      %v2032 = vpop.f32.mrf.mxu0
      %v2033 = vadd.f32 0.0, %v2032
      %v2034 = vpop.f32.mrf.mxu0
      %2035 = vmatprep.mubr.f32.mxu0 0.0
      %2036 = vmatmul.mubr.f32.gmra.mxu0 %v1857
      %v2037 = vpop.f32.mrf.mxu0
      %v2038 = vadd.f32 0.0, %v2037
      %v2039 = vpop.f32.mrf.mxu0
      %2040 = vmatprep.mubr.f32.mxu0 0.0
      %2041 = vmatmul.mubr.f32.gmra.mxu0 %v1860
      %v2042 = vpop.f32.mrf.mxu0
      %v2043 = vadd.f32 0.0, %v2042
      %v2044 = vpop.f32.mrf.mxu0
      %2045 = vmatprep.mubr.f32.mxu0 0.0
      %2046 = vmatmul.mubr.f32.gmra.mxu0 %v1863
      %v2047 = vpop.f32.mrf.mxu0
      %v2048 = vadd.f32 0.0, %v2047
      %v2049 = vpop.f32.mrf.mxu0
      %2050 = vmatprep.mubr.f32.mxu0 0.0
      %2051 = vmatmul.mubr.f32.gmra.mxu0 %v1866
      %v2052 = vpop.f32.mrf.mxu0
      %v2053 = vadd.f32 0.0, %v2052
      %v2054 = vpop.f32.mrf.mxu0
      %2055 = vmatprep.mubr.f32.mxu0 0.0
      %2056 = vmatmul.mubr.f32.gmra.mxu0 %v1869
      %v2057 = vpop.f32.mrf.mxu0
      %v2058 = vadd.f32 0.0, %v2057
      %v2059 = vpop.f32.mrf.mxu0
      %2060 = vmatprep.mubr.f32.mxu0 0.0
      %2061 = vmatmul.mubr.f32.gmra.mxu0 %v1872
      %v2062 = vpop.f32.mrf.mxu0
      %v2063 = vadd.f32 0.0, %v2062
      %v2064 = vpop.f32.mrf.mxu0
      %2065 = vmatprep.mubr.f32.mxu0 0.0
      %2066 = vmatmul.mubr.f32.gmra.mxu0 %v1875
      %v2067 = vpop.f32.mrf.mxu0
      %v2068 = vadd.f32 0.0, %v2067
      %v2069 = vpop.f32.mrf.mxu0
      %2070 = vmatprep.mubr.f32.mxu0 0.0
      %2071 = vmatmul.mubr.f32.gmra.mxu0 %v1878
      %v2072 = vpop.f32.mrf.mxu0
      %v2073 = vadd.f32 0.0, %v2072
      %v2074 = vpop.f32.mrf.mxu0
      %2075 = vmatprep.mubr.f32.mxu0 0.0
      %2076 = vmatmul.mubr.f32.gmra.mxu0 %v1881
      %v2077 = vpop.f32.mrf.mxu0
      %v2078 = vadd.f32 0.0, %v2077
      %v2079 = vpop.f32.mrf.mxu0
      %2080 = vmatprep.mubr.f32.mxu0 0.0
      %2081 = vmatmul.mubr.f32.gmra.mxu0 %v1884
      %v2082 = vpop.f32.mrf.mxu0
      %v2083 = vadd.f32 0.0, %v2082
      %v2084 = vpop.f32.mrf.mxu0
      %2085 = vmatprep.mubr.f32.mxu0 0.0
      %2086 = vmatmul.mubr.f32.gmra.mxu0 %v1887
      %v2087 = vpop.f32.mrf.mxu0
      %v2088 = vadd.f32 0.0, %v2087
      %v2089 = vpop.f32.mrf.mxu0
      %2090 = vmatprep.mubr.f32.mxu0 0.0
      %2091 = vmatmul.mubr.f32.gmra.mxu0 %v1890
      %v2092 = vpop.f32.mrf.mxu0
      %v2093 = vadd.f32 0.0, %v2092
      %v2094 = vpop.f32.mrf.mxu0
      %2095 = vmatprep.mubr.f32.mxu0 0.0
      %2096 = vmatmul.mubr.f32.gmra.mxu0 %v1893
      %v2097 = vpop.f32.mrf.mxu0
      %v2098 = vadd.f32 0.0, %v2097
      %v2099 = vpop.f32.mrf.mxu0
      %2100 = vmatprep.mubr.f32.mxu0 0.0
      %2101 = vmatmul.mubr.f32.gmra.mxu0 %v1896
      %v2102 = vpop.f32.mrf.mxu0
      %v2103 = vadd.f32 0.0, %v2102
      %v2104 = vpop.f32.mrf.mxu0
      %2105 = vmatprep.mubr.f32.mxu0 0.0
      %2106 = vmatmul.mubr.f32.gmra.mxu0 %v1899
      %v2107 = vpop.f32.mrf.mxu0
      %v2108 = vadd.f32 0.0, %v2107
      %v2109 = vpop.f32.mrf.mxu0
      %2110 = vmatprep.mubr.f32.mxu0 0.0
      %2111 = vmatmul.mubr.f32.gmra.mxu0 %v1902
      %v2112 = vpop.f32.mrf.mxu0
      %v2113 = vadd.f32 0.0, %v2112
      %v2114 = vpop.f32.mrf.mxu0
      %2115 = vmatprep.mubr.f32.mxu0 0.0
      %2116 = vmatmul.mubr.f32.gmra.mxu0 %v1905
      %v2117 = vpop.f32.mrf.mxu0
      %v2118 = vadd.f32 0.0, %v2117
      %v2119 = vpop.f32.mrf.mxu0
      %2120 = vmatprep.mubr.f32.mxu0 0.0
      %2121 = vmatmul.mubr.f32.gmra.mxu0 %v1908
      %v2122 = vpop.f32.mrf.mxu0
      %v2123 = vadd.f32 0.0, %v2122
      %v2124 = vpop.f32.mrf.mxu0
      %2125 = vmatprep.mubr.f32.mxu0 0.0
      %2126 = vmatmul.mubr.f32.gmra.mxu0 %v1911
      %v2127 = vpop.f32.mrf.mxu0
      %v2128 = vadd.f32 0.0, %v2127
      %v2129 = vpop.f32.mrf.mxu0
      %2130 = vmatprep.mubr.f32.mxu0 0.0
      %2131 = vmatmul.mubr.f32.gmra.mxu0 %v1914
      %v2132 = vpop.f32.mrf.mxu0
      %v2133 = vadd.f32 0.0, %v2132
      %v2134 = vpop.f32.mrf.mxu0
      %2135 = vmatprep.mubr.f32.mxu0 0.0
      %2136 = vmatmul.mubr.f32.gmra.mxu0 %v1917
      %v2137 = vpop.f32.mrf.mxu0
      %v2138 = vadd.f32 0.0, %v2137
      %v2139 = vpop.f32.mrf.mxu0
      %2140 = vmatprep.mubr.f32.mxu0 0.0
      %2141 = vmatmul.mubr.f32.gmra.mxu0 %v1920
      %v2142 = vpop.f32.mrf.mxu0
      %v2143 = vadd.f32 0.0, %v2142
      %v2144 = vpop.f32.mrf.mxu0
      %2145 = vmatprep.mubr.f32.mxu0 0.0
      %2146 = vmatmul.mubr.f32.gmra.mxu0 %v1923
      %v2147 = vpop.f32.mrf.mxu0
      %v2148 = vadd.f32 0.0, %v2147
      %v2149 = vpop.f32.mrf.mxu0
      %2150 = vmatprep.mubr.f32.mxu0 0.0
      %2151 = vmatmul.mubr.f32.gmra.mxu0 %v1926
      %v2152 = vpop.f32.mrf.mxu0
      %v2153 = vadd.f32 0.0, %v2152
      %v2154 = vpop.f32.mrf.mxu0
      %2155 = vdwg.mxu0
      %v2156 = vadd.f32 %v1767, %v1998
      %v2157 = vadd.f32 %v1768, %v2003
      %v2158 = vadd.f32 %v1769, %v2008
      %v2159 = vadd.f32 %v1770, %v2013
      %v2160 = vadd.f32 %v1771, %v2018
      %v2161 = vadd.f32 %v1772, %v2023
      %v2162 = vadd.f32 %v1773, %v2028
      %v2163 = vadd.f32 %v1774, %v2033
      %v2164 = vadd.f32 %v1775, %v2038
      %v2165 = vadd.f32 %v1776, %v2043
      %v2166 = vadd.f32 %v1777, %v2048
      %v2167 = vadd.f32 %v1778, %v2053
      %v2168 = vadd.f32 %v1779, %v2058
      %v2169 = vadd.f32 %v1780, %v2063
      %v2170 = vadd.f32 %v1781, %v2068
      %v2171 = vadd.f32 %v1782, %v2073
      %v2172 = vadd.f32 %v1783, %v2078
      %v2173 = vadd.f32 %v1784, %v2083
      %v2174 = vadd.f32 %v1785, %v2088
      %v2175 = vadd.f32 %v1786, %v2093
      %v2176 = vadd.f32 %v1787, %v2098
      %v2177 = vadd.f32 %v1788, %v2103
      %v2178 = vadd.f32 %v1789, %v2108
      %v2179 = vadd.f32 %v1790, %v2113
      %v2180 = vadd.f32 %v1791, %v2118
      %v2181 = vadd.f32 %v1792, %v2123
      %v2182 = vadd.f32 %v1793, %v2128
      %v2183 = vadd.f32 %v1794, %v2133
      %v2184 = vadd.f32 %v1795, %v2138
      %v2185 = vadd.f32 %v1796, %v2143
      %v2186 = vadd.f32 %v1797, %v2148
      %v2187 = vadd.f32 %v1798, %v2153
      %v2188 = vld [vmem:[%s1409 + $0x2] sm:$0xff]
      %v2189 = vld [vmem:[%s1409 + $0xa] sm:$0xff]
      %v2190 = vld [vmem:[%s1409 + $0x1a] sm:$0xff]
      %v2191 = vld [vmem:[%s1409 + $0x22] sm:$0xff]
      %v2192 = vld [vmem:[%s1409 + $0x32] sm:$0xff]
      %v2193 = vld [vmem:[%s1409 + $0x3a] sm:$0xff]
      %v2194 = vld [vmem:[%s1409 + $0x4a] sm:$0xff]
      %v2195 = vld [vmem:[%s1409 + $0x52] sm:$0xff]
      %v2196 = vld [vmem:[%s1409 + $0x62] sm:$0xff]
      %v2197 = vld [vmem:[%s1409 + $0x6a] sm:$0xff]
      %v2198 = vld [vmem:[%s1409 + $0x7a] sm:$0xff]
      %v2199 = vld [vmem:[%s1409 + $0x82] sm:$0xff]
      %v2200 = vld [vmem:[%s1409 + $0x92] sm:$0xff]
      %v2201 = vld [vmem:[%s1409 + $0x9a] sm:$0xff]
      %v2202 = vld [vmem:[%s1409 + $0xaa] sm:$0xff]
      %v2203 = vld [vmem:[%s1409 + $0xb2] sm:$0xff]
      %v2204 = vld [vmem:[%s1409 + $0xc2] sm:$0xff]
      %v2205 = vld [vmem:[%s1409 + $0xca] sm:$0xff]
      %v2206 = vld [vmem:[%s1409 + $0xda] sm:$0xff]
      %v2207 = vld [vmem:[%s1409 + $0xe2] sm:$0xff]
      %v2208 = vld [vmem:[%s1409 + $0xf2] sm:$0xff]
      %v2209 = vld [vmem:[%s1409 + $0xfa] sm:$0xff]
      %v2210 = vld [vmem:[%s1409 + $0x10a] sm:$0xff]
      %v2211 = vld [vmem:[%s1409 + $0x112] sm:$0xff]
      %v2212 = vld [vmem:[%s1409 + $0x122] sm:$0xff]
      %v2213 = vld [vmem:[%s1409 + $0x12a] sm:$0xff]
      %v2214 = vld [vmem:[%s1409 + $0x13a] sm:$0xff]
      %v2215 = vld [vmem:[%s1409 + $0x142] sm:$0xff]
      %v2216 = vld [vmem:[%s1409 + $0x152] sm:$0xff]
      %v2217 = vld [vmem:[%s1409 + $0x15a] sm:$0xff]
      %v2218 = vld [vmem:[%s1409 + $0x16a] sm:$0xff]
      %v2219 = vld [vmem:[%s1409 + $0x172] sm:$0xff]
      %v2220 = vld [vmem:[%s1 + $0x14] sm:$0xf]
      %v2222 = vsel %vm368, %v2188, 0
      %v2225 = vsel %vm368, %v2189, 0
      %v2228 = vsel %vm368, %v2190, 0
      %v2231 = vsel %vm368, %v2191, 0
      %v2234 = vsel %vm368, %v2192, 0
      %v2237 = vsel %vm368, %v2193, 0
      %v2240 = vsel %vm368, %v2194, 0
      %v2243 = vsel %vm368, %v2195, 0
      %v2246 = vsel %vm368, %v2196, 0
      %v2249 = vsel %vm368, %v2197, 0
      %v2252 = vsel %vm368, %v2198, 0
      %v2255 = vsel %vm368, %v2199, 0
      %v2258 = vsel %vm368, %v2200, 0
      %v2261 = vsel %vm368, %v2201, 0
      %v2264 = vsel %vm368, %v2202, 0
      %v2267 = vsel %vm368, %v2203, 0
      %v2270 = vsel %vm368, %v2204, 0
      %v2273 = vsel %vm368, %v2205, 0
      %v2276 = vsel %vm368, %v2206, 0
      %v2279 = vsel %vm368, %v2207, 0
      %v2282 = vsel %vm368, %v2208, 0
      %v2285 = vsel %vm368, %v2209, 0
      %v2288 = vsel %vm368, %v2210, 0
      %v2291 = vsel %vm368, %v2211, 0
      %v2294 = vsel %vm368, %v2212, 0
      %v2297 = vsel %vm368, %v2213, 0
      %v2300 = vsel %vm368, %v2214, 0
      %v2303 = vsel %vm368, %v2215, 0
      %v2306 = vsel %vm368, %v2216, 0
      %v2309 = vsel %vm368, %v2217, 0
      %v2312 = vsel %vm368, %v2218, 0
      %v2315 = vsel %vm368, %v2219, 0
      %v2318 = vsel %vm465, %v2220, 0
      %2320 = vmatprep.subr.mxu0 0.0
      %2321 = vmatpush1.msra.mxu0 0.0
      %2322 = vmatprep.subr.mxu0 0.0
      %2323 = vmatpush1.msra.mxu0 0.0
      %2324 = vmatprep.subr.mxu0 0.0
      %2325 = vmatpush1.msra.mxu0 0.0
      %2326 = vmatprep.subr.mxu0 0.0
      %2327 = vmatpush1.msra.mxu0 0.0
      %2328 = vmatprep.subr.mxu0 0.0
      %2329 = vmatpush1.msra.mxu0 0.0
      %2330 = vmatprep.subr.mxu0 0.0
      %2331 = vmatpush1.msra.mxu0 0.0
      %2332 = vmatprep.subr.mxu0 0.0
      %2333 = vmatpush1.msra.mxu0 0.0
      %2334 = vmatprep.subr.mxu0 0.0
      %2335 = vmatpush1.msra.mxu0 0.0
      %2336 = vmatprep.subr.mxu0 0.0
      %2337 = vmatpush1.msra.mxu0 0.0
      %2338 = vmatprep.subr.mxu0 0.0
      %2339 = vmatpush1.msra.mxu0 0.0
      %2340 = vmatprep.subr.mxu0 0.0
      %2341 = vmatpush1.msra.mxu0 0.0
      %2342 = vmatprep.subr.mxu0 0.0
      %2343 = vmatpush1.msra.mxu0 0.0
      %2344 = vmatprep.subr.mxu0 0.0
      %2345 = vmatpush1.msra.mxu0 0.0
      %2346 = vmatprep.subr.mxu0 0.0
      %2347 = vmatpush1.msra.mxu0 0.0
      %2348 = vmatprep.subr.mxu0 0.0
      %2349 = vmatpush1.msra.mxu0 0.0
      %2350 = vmatprep.subr.mxu0 0.0
      %2351 = vmatpush1.msra.mxu0 %v2318
      %2352 = vmatprep.subr.mxu0 0.0
      %2353 = vmatpush2.msra.mxu0 0.0
      %2354 = vmatprep.subr.mxu0 0.0
      %2355 = vmatpush2.msra.mxu0 0.0
      %2356 = vmatprep.subr.mxu0 0.0
      %2357 = vmatpush2.msra.mxu0 0.0
      %2358 = vmatprep.subr.mxu0 0.0
      %2359 = vmatpush2.msra.mxu0 0.0
      %2360 = vmatprep.subr.mxu0 0.0
      %2361 = vmatpush2.msra.mxu0 0.0
      %2362 = vmatprep.subr.mxu0 0.0
      %2363 = vmatpush2.msra.mxu0 0.0
      %2364 = vmatprep.subr.mxu0 0.0
      %2365 = vmatpush2.msra.mxu0 0.0
      %2366 = vmatprep.subr.mxu0 0.0
      %2367 = vmatpush2.msra.mxu0 0.0
      %2368 = vmatprep.subr.mxu0 0.0
      %2369 = vmatpush2.msra.mxu0 0.0
      %2370 = vmatprep.subr.mxu0 0.0
      %2371 = vmatpush2.msra.mxu0 0.0
      %2372 = vmatprep.subr.mxu0 0.0
      %2373 = vmatpush2.msra.mxu0 0.0
      %2374 = vmatprep.subr.mxu0 0.0
      %2375 = vmatpush2.msra.mxu0 0.0
      %2376 = vmatprep.subr.mxu0 0.0
      %2377 = vmatpush2.msra.mxu0 0.0
      %2378 = vmatprep.subr.mxu0 0.0
      %2379 = vmatpush2.msra.mxu0 0.0
      %2380 = vmatprep.subr.mxu0 0.0
      %2381 = vmatpush2.msra.mxu0 0.0
      %2382 = vmatprep.subr.mxu0 0.0
      %2383 = vmatpush2.msra.mxu0 0.0
      %2384 = vmatprep.mubr.f32.mxu0 0.0
      %2385 = vmatmul.mubr.f32.gmra.mxu0 %v2222
      %v2386 = vpop.f32.mrf.mxu0
      %v2387 = vadd.f32 0.0, %v2386
      %v2388 = vpop.f32.mrf.mxu0
      %2389 = vmatprep.mubr.f32.mxu0 0.0
      %2390 = vmatmul.mubr.f32.gmra.mxu0 %v2225
      %v2391 = vpop.f32.mrf.mxu0
      %v2392 = vadd.f32 0.0, %v2391
      %v2393 = vpop.f32.mrf.mxu0
      %2394 = vmatprep.mubr.f32.mxu0 0.0
      %2395 = vmatmul.mubr.f32.gmra.mxu0 %v2228
      %v2396 = vpop.f32.mrf.mxu0
      %v2397 = vadd.f32 0.0, %v2396
      %v2398 = vpop.f32.mrf.mxu0
      %2399 = vmatprep.mubr.f32.mxu0 0.0
      %2400 = vmatmul.mubr.f32.gmra.mxu0 %v2231
      %v2401 = vpop.f32.mrf.mxu0
      %v2402 = vadd.f32 0.0, %v2401
      %v2403 = vpop.f32.mrf.mxu0
      %2404 = vmatprep.mubr.f32.mxu0 0.0
      %2405 = vmatmul.mubr.f32.gmra.mxu0 %v2234
      %v2406 = vpop.f32.mrf.mxu0
      %v2407 = vadd.f32 0.0, %v2406
      %v2408 = vpop.f32.mrf.mxu0
      %2409 = vmatprep.mubr.f32.mxu0 0.0
      %2410 = vmatmul.mubr.f32.gmra.mxu0 %v2237
      %v2411 = vpop.f32.mrf.mxu0
      %v2412 = vadd.f32 0.0, %v2411
      %v2413 = vpop.f32.mrf.mxu0
      %2414 = vmatprep.mubr.f32.mxu0 0.0
      %2415 = vmatmul.mubr.f32.gmra.mxu0 %v2240
      %v2416 = vpop.f32.mrf.mxu0
      %v2417 = vadd.f32 0.0, %v2416
      %v2418 = vpop.f32.mrf.mxu0
      %2419 = vmatprep.mubr.f32.mxu0 0.0
      %2420 = vmatmul.mubr.f32.gmra.mxu0 %v2243
      %v2421 = vpop.f32.mrf.mxu0
      %v2422 = vadd.f32 0.0, %v2421
      %v2423 = vpop.f32.mrf.mxu0
      %2424 = vmatprep.mubr.f32.mxu0 0.0
      %2425 = vmatmul.mubr.f32.gmra.mxu0 %v2246
      %v2426 = vpop.f32.mrf.mxu0
      %v2427 = vadd.f32 0.0, %v2426
      %v2428 = vpop.f32.mrf.mxu0
      %2429 = vmatprep.mubr.f32.mxu0 0.0
      %2430 = vmatmul.mubr.f32.gmra.mxu0 %v2249
      %v2431 = vpop.f32.mrf.mxu0
      %v2432 = vadd.f32 0.0, %v2431
      %v2433 = vpop.f32.mrf.mxu0
      %2434 = vmatprep.mubr.f32.mxu0 0.0
      %2435 = vmatmul.mubr.f32.gmra.mxu0 %v2252
      %v2436 = vpop.f32.mrf.mxu0
      %v2437 = vadd.f32 0.0, %v2436
      %v2438 = vpop.f32.mrf.mxu0
      %2439 = vmatprep.mubr.f32.mxu0 0.0
      %2440 = vmatmul.mubr.f32.gmra.mxu0 %v2255
      %v2441 = vpop.f32.mrf.mxu0
      %v2442 = vadd.f32 0.0, %v2441
      %v2443 = vpop.f32.mrf.mxu0
      %2444 = vmatprep.mubr.f32.mxu0 0.0
      %2445 = vmatmul.mubr.f32.gmra.mxu0 %v2258
      %v2446 = vpop.f32.mrf.mxu0
      %v2447 = vadd.f32 0.0, %v2446
      %v2448 = vpop.f32.mrf.mxu0
      %2449 = vmatprep.mubr.f32.mxu0 0.0
      %2450 = vmatmul.mubr.f32.gmra.mxu0 %v2261
      %v2451 = vpop.f32.mrf.mxu0
      %v2452 = vadd.f32 0.0, %v2451
      %v2453 = vpop.f32.mrf.mxu0
      %2454 = vmatprep.mubr.f32.mxu0 0.0
      %2455 = vmatmul.mubr.f32.gmra.mxu0 %v2264
      %v2456 = vpop.f32.mrf.mxu0
      %v2457 = vadd.f32 0.0, %v2456
      %v2458 = vpop.f32.mrf.mxu0
      %2459 = vmatprep.mubr.f32.mxu0 0.0
      %2460 = vmatmul.mubr.f32.gmra.mxu0 %v2267
      %v2461 = vpop.f32.mrf.mxu0
      %v2462 = vadd.f32 0.0, %v2461
      %v2463 = vpop.f32.mrf.mxu0
      %2464 = vmatprep.mubr.f32.mxu0 0.0
      %2465 = vmatmul.mubr.f32.gmra.mxu0 %v2270
      %v2466 = vpop.f32.mrf.mxu0
      %v2467 = vadd.f32 0.0, %v2466
      %v2468 = vpop.f32.mrf.mxu0
      %2469 = vmatprep.mubr.f32.mxu0 0.0
      %2470 = vmatmul.mubr.f32.gmra.mxu0 %v2273
      %v2471 = vpop.f32.mrf.mxu0
      %v2472 = vadd.f32 0.0, %v2471
      %v2473 = vpop.f32.mrf.mxu0
      %2474 = vmatprep.mubr.f32.mxu0 0.0
      %2475 = vmatmul.mubr.f32.gmra.mxu0 %v2276
      %v2476 = vpop.f32.mrf.mxu0
      %v2477 = vadd.f32 0.0, %v2476
      %v2478 = vpop.f32.mrf.mxu0
      %2479 = vmatprep.mubr.f32.mxu0 0.0
      %2480 = vmatmul.mubr.f32.gmra.mxu0 %v2279
      %v2481 = vpop.f32.mrf.mxu0
      %v2482 = vadd.f32 0.0, %v2481
      %v2483 = vpop.f32.mrf.mxu0
      %2484 = vmatprep.mubr.f32.mxu0 0.0
      %2485 = vmatmul.mubr.f32.gmra.mxu0 %v2282
      %v2486 = vpop.f32.mrf.mxu0
      %v2487 = vadd.f32 0.0, %v2486
      %v2488 = vpop.f32.mrf.mxu0
      %2489 = vmatprep.mubr.f32.mxu0 0.0
      %2490 = vmatmul.mubr.f32.gmra.mxu0 %v2285
      %v2491 = vpop.f32.mrf.mxu0
      %v2492 = vadd.f32 0.0, %v2491
      %v2493 = vpop.f32.mrf.mxu0
      %2494 = vmatprep.mubr.f32.mxu0 0.0
      %2495 = vmatmul.mubr.f32.gmra.mxu0 %v2288
      %v2496 = vpop.f32.mrf.mxu0
      %v2497 = vadd.f32 0.0, %v2496
      %v2498 = vpop.f32.mrf.mxu0
      %2499 = vmatprep.mubr.f32.mxu0 0.0
      %2500 = vmatmul.mubr.f32.gmra.mxu0 %v2291
      %v2501 = vpop.f32.mrf.mxu0
      %v2502 = vadd.f32 0.0, %v2501
      %v2503 = vpop.f32.mrf.mxu0
      %2504 = vmatprep.mubr.f32.mxu0 0.0
      %2505 = vmatmul.mubr.f32.gmra.mxu0 %v2294
      %v2506 = vpop.f32.mrf.mxu0
      %v2507 = vadd.f32 0.0, %v2506
      %v2508 = vpop.f32.mrf.mxu0
      %2509 = vmatprep.mubr.f32.mxu0 0.0
      %2510 = vmatmul.mubr.f32.gmra.mxu0 %v2297
      %v2511 = vpop.f32.mrf.mxu0
      %v2512 = vadd.f32 0.0, %v2511
      %v2513 = vpop.f32.mrf.mxu0
      %2514 = vmatprep.mubr.f32.mxu0 0.0
      %2515 = vmatmul.mubr.f32.gmra.mxu0 %v2300
      %v2516 = vpop.f32.mrf.mxu0
      %v2517 = vadd.f32 0.0, %v2516
      %v2518 = vpop.f32.mrf.mxu0
      %2519 = vmatprep.mubr.f32.mxu0 0.0
      %2520 = vmatmul.mubr.f32.gmra.mxu0 %v2303
      %v2521 = vpop.f32.mrf.mxu0
      %v2522 = vadd.f32 0.0, %v2521
      %v2523 = vpop.f32.mrf.mxu0
      %2524 = vmatprep.mubr.f32.mxu0 0.0
      %2525 = vmatmul.mubr.f32.gmra.mxu0 %v2306
      %v2526 = vpop.f32.mrf.mxu0
      %v2527 = vadd.f32 0.0, %v2526
      %v2528 = vpop.f32.mrf.mxu0
      %2529 = vmatprep.mubr.f32.mxu0 0.0
      %2530 = vmatmul.mubr.f32.gmra.mxu0 %v2309
      %v2531 = vpop.f32.mrf.mxu0
      %v2532 = vadd.f32 0.0, %v2531
      %v2533 = vpop.f32.mrf.mxu0
      %2534 = vmatprep.mubr.f32.mxu0 0.0
      %2535 = vmatmul.mubr.f32.gmra.mxu0 %v2312
      %v2536 = vpop.f32.mrf.mxu0
      %v2537 = vadd.f32 0.0, %v2536
      %v2538 = vpop.f32.mrf.mxu0
      %2539 = vmatprep.mubr.f32.mxu0 0.0
      %2540 = vmatmul.mubr.f32.gmra.mxu0 %v2315
      %v2541 = vpop.f32.mrf.mxu0
      %v2542 = vadd.f32 0.0, %v2541
      %v2543 = vpop.f32.mrf.mxu0
      %2544 = vdwg.mxu0
      %v2545 = vadd.f32 %v2156, %v2387
      %v2546 = vadd.f32 %v2157, %v2392
      %v2547 = vadd.f32 %v2158, %v2397
      %v2548 = vadd.f32 %v2159, %v2402
      %v2549 = vadd.f32 %v2160, %v2407
      %v2550 = vadd.f32 %v2161, %v2412
      %v2551 = vadd.f32 %v2162, %v2417
      %v2552 = vadd.f32 %v2163, %v2422
      %v2553 = vadd.f32 %v2164, %v2427
      %v2554 = vadd.f32 %v2165, %v2432
      %v2555 = vadd.f32 %v2166, %v2437
      %v2556 = vadd.f32 %v2167, %v2442
      %v2557 = vadd.f32 %v2168, %v2447
      %v2558 = vadd.f32 %v2169, %v2452
      %v2559 = vadd.f32 %v2170, %v2457
      %v2560 = vadd.f32 %v2171, %v2462
      %v2561 = vadd.f32 %v2172, %v2467
      %v2562 = vadd.f32 %v2173, %v2472
      %v2563 = vadd.f32 %v2174, %v2477
      %v2564 = vadd.f32 %v2175, %v2482
      %v2565 = vadd.f32 %v2176, %v2487
      %v2566 = vadd.f32 %v2177, %v2492
      %v2567 = vadd.f32 %v2178, %v2497
      %v2568 = vadd.f32 %v2179, %v2502
      %v2569 = vadd.f32 %v2180, %v2507
      %v2570 = vadd.f32 %v2181, %v2512
      %v2571 = vadd.f32 %v2182, %v2517
      %v2572 = vadd.f32 %v2183, %v2522
      %v2573 = vadd.f32 %v2184, %v2527
      %v2574 = vadd.f32 %v2185, %v2532
      %v2575 = vadd.f32 %v2186, %v2537
      %v2576 = vadd.f32 %v2187, %v2542
      %s2577 = sadd.s32 %s299, 2
      %s2578 = smul.u32 %s2577, 24
      %s2579 = scalar_lea.vmem %s278, %s2578
      %v2580 = vld [vmem:[%s2579] sm:$0xff]
      %v2581 = vld [vmem:[%s2579 + $0x8] sm:$0xff]
      %v2582 = vld [vmem:[%s2579 + $0x18] sm:$0xff]
      %v2583 = vld [vmem:[%s2579 + $0x20] sm:$0xff]
      %v2584 = vld [vmem:[%s2579 + $0x30] sm:$0xff]
      %v2585 = vld [vmem:[%s2579 + $0x38] sm:$0xff]
      %v2586 = vld [vmem:[%s2579 + $0x48] sm:$0xff]
      %v2587 = vld [vmem:[%s2579 + $0x50] sm:$0xff]
      %v2588 = vld [vmem:[%s2579 + $0x60] sm:$0xff]
      %v2589 = vld [vmem:[%s2579 + $0x68] sm:$0xff]
      %v2590 = vld [vmem:[%s2579 + $0x78] sm:$0xff]
      %v2591 = vld [vmem:[%s2579 + $0x80] sm:$0xff]
      %v2592 = vld [vmem:[%s2579 + $0x90] sm:$0xff]
      %v2593 = vld [vmem:[%s2579 + $0x98] sm:$0xff]
      %v2594 = vld [vmem:[%s2579 + $0xa8] sm:$0xff]
      %v2595 = vld [vmem:[%s2579 + $0xb0] sm:$0xff]
      %v2596 = vld [vmem:[%s2579 + $0xc0] sm:$0xff]
      %v2597 = vld [vmem:[%s2579 + $0xc8] sm:$0xff]
      %v2598 = vld [vmem:[%s2579 + $0xd8] sm:$0xff]
      %v2599 = vld [vmem:[%s2579 + $0xe0] sm:$0xff]
      %v2600 = vld [vmem:[%s2579 + $0xf0] sm:$0xff]
      %v2601 = vld [vmem:[%s2579 + $0xf8] sm:$0xff]
      %v2602 = vld [vmem:[%s2579 + $0x108] sm:$0xff]
      %v2603 = vld [vmem:[%s2579 + $0x110] sm:$0xff]
      %v2604 = vld [vmem:[%s2579 + $0x120] sm:$0xff]
      %v2605 = vld [vmem:[%s2579 + $0x128] sm:$0xff]
      %v2606 = vld [vmem:[%s2579 + $0x138] sm:$0xff]
      %v2607 = vld [vmem:[%s2579 + $0x140] sm:$0xff]
      %v2608 = vld [vmem:[%s2579 + $0x150] sm:$0xff]
      %v2609 = vld [vmem:[%s2579 + $0x158] sm:$0xff]
      %v2610 = vld [vmem:[%s2579 + $0x168] sm:$0xff]
      %v2611 = vld [vmem:[%s2579 + $0x170] sm:$0xff]
      %v2612 = vld [vmem:[%s1 + $0x18] sm:$0xf]
      %v2614 = vsel %vm368, %v2580, 0
      %v2617 = vsel %vm368, %v2581, 0
      %v2620 = vsel %vm368, %v2582, 0
      %v2623 = vsel %vm368, %v2583, 0
      %v2626 = vsel %vm368, %v2584, 0
      %v2629 = vsel %vm368, %v2585, 0
      %v2632 = vsel %vm368, %v2586, 0
      %v2635 = vsel %vm368, %v2587, 0
      %v2638 = vsel %vm368, %v2588, 0
      %v2641 = vsel %vm368, %v2589, 0
      %v2644 = vsel %vm368, %v2590, 0
      %v2647 = vsel %vm368, %v2591, 0
      %v2650 = vsel %vm368, %v2592, 0
      %v2653 = vsel %vm368, %v2593, 0
      %v2656 = vsel %vm368, %v2594, 0
      %v2659 = vsel %vm368, %v2595, 0
      %v2662 = vsel %vm368, %v2596, 0
      %v2665 = vsel %vm368, %v2597, 0
      %v2668 = vsel %vm368, %v2598, 0
      %v2671 = vsel %vm368, %v2599, 0
      %v2674 = vsel %vm368, %v2600, 0
      %v2677 = vsel %vm368, %v2601, 0
      %v2680 = vsel %vm368, %v2602, 0
      %v2683 = vsel %vm368, %v2603, 0
      %v2686 = vsel %vm368, %v2604, 0
      %v2689 = vsel %vm368, %v2605, 0
      %v2692 = vsel %vm368, %v2606, 0
      %v2695 = vsel %vm368, %v2607, 0
      %v2698 = vsel %vm368, %v2608, 0
      %v2701 = vsel %vm368, %v2609, 0
      %v2704 = vsel %vm368, %v2610, 0
      %v2707 = vsel %vm368, %v2611, 0
      %v2710 = vsel %vm465, %v2612, 0
      %2712 = vmatprep.subr.mxu0 0.0
      %2713 = vmatpush1.msra.mxu0 0.0
      %2714 = vmatprep.subr.mxu0 0.0
      %2715 = vmatpush1.msra.mxu0 0.0
      %2716 = vmatprep.subr.mxu0 0.0
      %2717 = vmatpush1.msra.mxu0 0.0
      %2718 = vmatprep.subr.mxu0 0.0
      %2719 = vmatpush1.msra.mxu0 0.0
      %2720 = vmatprep.subr.mxu0 0.0
      %2721 = vmatpush1.msra.mxu0 0.0
      %2722 = vmatprep.subr.mxu0 0.0
      %2723 = vmatpush1.msra.mxu0 0.0
      %2724 = vmatprep.subr.mxu0 0.0
      %2725 = vmatpush1.msra.mxu0 0.0
      %2726 = vmatprep.subr.mxu0 0.0
      %2727 = vmatpush1.msra.mxu0 0.0
      %2728 = vmatprep.subr.mxu0 0.0
      %2729 = vmatpush1.msra.mxu0 0.0
      %2730 = vmatprep.subr.mxu0 0.0
      %2731 = vmatpush1.msra.mxu0 0.0
      %2732 = vmatprep.subr.mxu0 0.0
      %2733 = vmatpush1.msra.mxu0 0.0
      %2734 = vmatprep.subr.mxu0 0.0
      %2735 = vmatpush1.msra.mxu0 0.0
      %2736 = vmatprep.subr.mxu0 0.0
      %2737 = vmatpush1.msra.mxu0 0.0
      %2738 = vmatprep.subr.mxu0 0.0
      %2739 = vmatpush1.msra.mxu0 0.0
      %2740 = vmatprep.subr.mxu0 0.0
      %2741 = vmatpush1.msra.mxu0 0.0
      %2742 = vmatprep.subr.mxu0 0.0
      %2743 = vmatpush1.msra.mxu0 %v2710
      %2744 = vmatprep.subr.mxu0 0.0
      %2745 = vmatpush2.msra.mxu0 0.0
      %2746 = vmatprep.subr.mxu0 0.0
      %2747 = vmatpush2.msra.mxu0 0.0
      %2748 = vmatprep.subr.mxu0 0.0
      %2749 = vmatpush2.msra.mxu0 0.0
      %2750 = vmatprep.subr.mxu0 0.0
      %2751 = vmatpush2.msra.mxu0 0.0
      %2752 = vmatprep.subr.mxu0 0.0
      %2753 = vmatpush2.msra.mxu0 0.0
      %2754 = vmatprep.subr.mxu0 0.0
      %2755 = vmatpush2.msra.mxu0 0.0
      %2756 = vmatprep.subr.mxu0 0.0
      %2757 = vmatpush2.msra.mxu0 0.0
      %2758 = vmatprep.subr.mxu0 0.0
      %2759 = vmatpush2.msra.mxu0 0.0
      %2760 = vmatprep.subr.mxu0 0.0
      %2761 = vmatpush2.msra.mxu0 0.0
      %2762 = vmatprep.subr.mxu0 0.0
      %2763 = vmatpush2.msra.mxu0 0.0
      %2764 = vmatprep.subr.mxu0 0.0
      %2765 = vmatpush2.msra.mxu0 0.0
      %2766 = vmatprep.subr.mxu0 0.0
      %2767 = vmatpush2.msra.mxu0 0.0
      %2768 = vmatprep.subr.mxu0 0.0
      %2769 = vmatpush2.msra.mxu0 0.0
      %2770 = vmatprep.subr.mxu0 0.0
      %2771 = vmatpush2.msra.mxu0 0.0
      %2772 = vmatprep.subr.mxu0 0.0
      %2773 = vmatpush2.msra.mxu0 0.0
      %2774 = vmatprep.subr.mxu0 0.0
      %2775 = vmatpush2.msra.mxu0 0.0
      %2776 = vmatprep.mubr.f32.mxu0 0.0
      %2777 = vmatmul.mubr.f32.gmra.mxu0 %v2614
      %v2778 = vpop.f32.mrf.mxu0
      %v2779 = vadd.f32 0.0, %v2778
      %v2780 = vpop.f32.mrf.mxu0
      %2781 = vmatprep.mubr.f32.mxu0 0.0
      %2782 = vmatmul.mubr.f32.gmra.mxu0 %v2617
      %v2783 = vpop.f32.mrf.mxu0
      %v2784 = vadd.f32 0.0, %v2783
      %v2785 = vpop.f32.mrf.mxu0
      %2786 = vmatprep.mubr.f32.mxu0 0.0
      %2787 = vmatmul.mubr.f32.gmra.mxu0 %v2620
      %v2788 = vpop.f32.mrf.mxu0
      %v2789 = vadd.f32 0.0, %v2788
      %v2790 = vpop.f32.mrf.mxu0
      %2791 = vmatprep.mubr.f32.mxu0 0.0
      %2792 = vmatmul.mubr.f32.gmra.mxu0 %v2623
      %v2793 = vpop.f32.mrf.mxu0
      %v2794 = vadd.f32 0.0, %v2793
      %v2795 = vpop.f32.mrf.mxu0
      %2796 = vmatprep.mubr.f32.mxu0 0.0
      %2797 = vmatmul.mubr.f32.gmra.mxu0 %v2626
      %v2798 = vpop.f32.mrf.mxu0
      %v2799 = vadd.f32 0.0, %v2798
      %v2800 = vpop.f32.mrf.mxu0
      %2801 = vmatprep.mubr.f32.mxu0 0.0
      %2802 = vmatmul.mubr.f32.gmra.mxu0 %v2629
      %v2803 = vpop.f32.mrf.mxu0
      %v2804 = vadd.f32 0.0, %v2803
      %v2805 = vpop.f32.mrf.mxu0
      %2806 = vmatprep.mubr.f32.mxu0 0.0
      %2807 = vmatmul.mubr.f32.gmra.mxu0 %v2632
      %v2808 = vpop.f32.mrf.mxu0
      %v2809 = vadd.f32 0.0, %v2808
      %v2810 = vpop.f32.mrf.mxu0
      %2811 = vmatprep.mubr.f32.mxu0 0.0
      %2812 = vmatmul.mubr.f32.gmra.mxu0 %v2635
      %v2813 = vpop.f32.mrf.mxu0
      %v2814 = vadd.f32 0.0, %v2813
      %v2815 = vpop.f32.mrf.mxu0
      %2816 = vmatprep.mubr.f32.mxu0 0.0
      %2817 = vmatmul.mubr.f32.gmra.mxu0 %v2638
      %v2818 = vpop.f32.mrf.mxu0
      %v2819 = vadd.f32 0.0, %v2818
      %v2820 = vpop.f32.mrf.mxu0
      %2821 = vmatprep.mubr.f32.mxu0 0.0
      %2822 = vmatmul.mubr.f32.gmra.mxu0 %v2641
      %v2823 = vpop.f32.mrf.mxu0
      %v2824 = vadd.f32 0.0, %v2823
      %v2825 = vpop.f32.mrf.mxu0
      %2826 = vmatprep.mubr.f32.mxu0 0.0
      %2827 = vmatmul.mubr.f32.gmra.mxu0 %v2644
      %v2828 = vpop.f32.mrf.mxu0
      %v2829 = vadd.f32 0.0, %v2828
      %v2830 = vpop.f32.mrf.mxu0
      %2831 = vmatprep.mubr.f32.mxu0 0.0
      %2832 = vmatmul.mubr.f32.gmra.mxu0 %v2647
      %v2833 = vpop.f32.mrf.mxu0
      %v2834 = vadd.f32 0.0, %v2833
      %v2835 = vpop.f32.mrf.mxu0
      %2836 = vmatprep.mubr.f32.mxu0 0.0
      %2837 = vmatmul.mubr.f32.gmra.mxu0 %v2650
      %v2838 = vpop.f32.mrf.mxu0
      %v2839 = vadd.f32 0.0, %v2838
      %v2840 = vpop.f32.mrf.mxu0
      %2841 = vmatprep.mubr.f32.mxu0 0.0
      %2842 = vmatmul.mubr.f32.gmra.mxu0 %v2653
      %v2843 = vpop.f32.mrf.mxu0
      %v2844 = vadd.f32 0.0, %v2843
      %v2845 = vpop.f32.mrf.mxu0
      %2846 = vmatprep.mubr.f32.mxu0 0.0
      %2847 = vmatmul.mubr.f32.gmra.mxu0 %v2656
      %v2848 = vpop.f32.mrf.mxu0
      %v2849 = vadd.f32 0.0, %v2848
      %v2850 = vpop.f32.mrf.mxu0
      %2851 = vmatprep.mubr.f32.mxu0 0.0
      %2852 = vmatmul.mubr.f32.gmra.mxu0 %v2659
      %v2853 = vpop.f32.mrf.mxu0
      %v2854 = vadd.f32 0.0, %v2853
      %v2855 = vpop.f32.mrf.mxu0
      %2856 = vmatprep.mubr.f32.mxu0 0.0
      %2857 = vmatmul.mubr.f32.gmra.mxu0 %v2662
      %v2858 = vpop.f32.mrf.mxu0
      %v2859 = vadd.f32 0.0, %v2858
      %v2860 = vpop.f32.mrf.mxu0
      %2861 = vmatprep.mubr.f32.mxu0 0.0
      %2862 = vmatmul.mubr.f32.gmra.mxu0 %v2665
      %v2863 = vpop.f32.mrf.mxu0
      %v2864 = vadd.f32 0.0, %v2863
      %v2865 = vpop.f32.mrf.mxu0
      %2866 = vmatprep.mubr.f32.mxu0 0.0
      %2867 = vmatmul.mubr.f32.gmra.mxu0 %v2668
      %v2868 = vpop.f32.mrf.mxu0
      %v2869 = vadd.f32 0.0, %v2868
      %v2870 = vpop.f32.mrf.mxu0
      %2871 = vmatprep.mubr.f32.mxu0 0.0
      %2872 = vmatmul.mubr.f32.gmra.mxu0 %v2671
      %v2873 = vpop.f32.mrf.mxu0
      %v2874 = vadd.f32 0.0, %v2873
      %v2875 = vpop.f32.mrf.mxu0
      %2876 = vmatprep.mubr.f32.mxu0 0.0
      %2877 = vmatmul.mubr.f32.gmra.mxu0 %v2674
      %v2878 = vpop.f32.mrf.mxu0
      %v2879 = vadd.f32 0.0, %v2878
      %v2880 = vpop.f32.mrf.mxu0
      %2881 = vmatprep.mubr.f32.mxu0 0.0
      %2882 = vmatmul.mubr.f32.gmra.mxu0 %v2677
      %v2883 = vpop.f32.mrf.mxu0
      %v2884 = vadd.f32 0.0, %v2883
      %v2885 = vpop.f32.mrf.mxu0
      %2886 = vmatprep.mubr.f32.mxu0 0.0
      %2887 = vmatmul.mubr.f32.gmra.mxu0 %v2680
      %v2888 = vpop.f32.mrf.mxu0
      %v2889 = vadd.f32 0.0, %v2888
      %v2890 = vpop.f32.mrf.mxu0
      %2891 = vmatprep.mubr.f32.mxu0 0.0
      %2892 = vmatmul.mubr.f32.gmra.mxu0 %v2683
      %v2893 = vpop.f32.mrf.mxu0
      %v2894 = vadd.f32 0.0, %v2893
      %v2895 = vpop.f32.mrf.mxu0
      %2896 = vmatprep.mubr.f32.mxu0 0.0
      %2897 = vmatmul.mubr.f32.gmra.mxu0 %v2686
      %v2898 = vpop.f32.mrf.mxu0
      %v2899 = vadd.f32 0.0, %v2898
      %v2900 = vpop.f32.mrf.mxu0
      %2901 = vmatprep.mubr.f32.mxu0 0.0
      %2902 = vmatmul.mubr.f32.gmra.mxu0 %v2689
      %v2903 = vpop.f32.mrf.mxu0
      %v2904 = vadd.f32 0.0, %v2903
      %v2905 = vpop.f32.mrf.mxu0
      %2906 = vmatprep.mubr.f32.mxu0 0.0
      %2907 = vmatmul.mubr.f32.gmra.mxu0 %v2692
      %v2908 = vpop.f32.mrf.mxu0
      %v2909 = vadd.f32 0.0, %v2908
      %v2910 = vpop.f32.mrf.mxu0
      %2911 = vmatprep.mubr.f32.mxu0 0.0
      %2912 = vmatmul.mubr.f32.gmra.mxu0 %v2695
      %v2913 = vpop.f32.mrf.mxu0
      %v2914 = vadd.f32 0.0, %v2913
      %v2915 = vpop.f32.mrf.mxu0
      %2916 = vmatprep.mubr.f32.mxu0 0.0
      %2917 = vmatmul.mubr.f32.gmra.mxu0 %v2698
      %v2918 = vpop.f32.mrf.mxu0
      %v2919 = vadd.f32 0.0, %v2918
      %v2920 = vpop.f32.mrf.mxu0
      %2921 = vmatprep.mubr.f32.mxu0 0.0
      %2922 = vmatmul.mubr.f32.gmra.mxu0 %v2701
      %v2923 = vpop.f32.mrf.mxu0
      %v2924 = vadd.f32 0.0, %v2923
      %v2925 = vpop.f32.mrf.mxu0
      %2926 = vmatprep.mubr.f32.mxu0 0.0
      %2927 = vmatmul.mubr.f32.gmra.mxu0 %v2704
      %v2928 = vpop.f32.mrf.mxu0
      %v2929 = vadd.f32 0.0, %v2928
      %v2930 = vpop.f32.mrf.mxu0
      %2931 = vmatprep.mubr.f32.mxu0 0.0
      %2932 = vmatmul.mubr.f32.gmra.mxu0 %v2707
      %v2933 = vpop.f32.mrf.mxu0
      %v2934 = vadd.f32 0.0, %v2933
      %v2935 = vpop.f32.mrf.mxu0
      %2936 = vdwg.mxu0
      %v2937 = vadd.f32 %v2545, %v2779
      %v2938 = vadd.f32 %v2546, %v2784
      %v2939 = vadd.f32 %v2547, %v2789
      %v2940 = vadd.f32 %v2548, %v2794
      %v2941 = vadd.f32 %v2549, %v2799
      %v2942 = vadd.f32 %v2550, %v2804
      %v2943 = vadd.f32 %v2551, %v2809
      %v2944 = vadd.f32 %v2552, %v2814
      %v2945 = vadd.f32 %v2553, %v2819
      %v2946 = vadd.f32 %v2554, %v2824
      %v2947 = vadd.f32 %v2555, %v2829
      %v2948 = vadd.f32 %v2556, %v2834
      %v2949 = vadd.f32 %v2557, %v2839
      %v2950 = vadd.f32 %v2558, %v2844
      %v2951 = vadd.f32 %v2559, %v2849
      %v2952 = vadd.f32 %v2560, %v2854
      %v2953 = vadd.f32 %v2561, %v2859
      %v2954 = vadd.f32 %v2562, %v2864
      %v2955 = vadd.f32 %v2563, %v2869
      %v2956 = vadd.f32 %v2564, %v2874
      %v2957 = vadd.f32 %v2565, %v2879
      %v2958 = vadd.f32 %v2566, %v2884
      %v2959 = vadd.f32 %v2567, %v2889
      %v2960 = vadd.f32 %v2568, %v2894
      %v2961 = vadd.f32 %v2569, %v2899
      %v2962 = vadd.f32 %v2570, %v2904
      %v2963 = vadd.f32 %v2571, %v2909
      %v2964 = vadd.f32 %v2572, %v2914
      %v2965 = vadd.f32 %v2573, %v2919
      %v2966 = vadd.f32 %v2574, %v2924
      %v2967 = vadd.f32 %v2575, %v2929
      %v2968 = vadd.f32 %v2576, %v2934
      %v2969 = vld [vmem:[%s2579 + $0x1] sm:$0xff]
      %v2970 = vld [vmem:[%s2579 + $0x9] sm:$0xff]
      %v2971 = vld [vmem:[%s2579 + $0x19] sm:$0xff]
      %v2972 = vld [vmem:[%s2579 + $0x21] sm:$0xff]
      %v2973 = vld [vmem:[%s2579 + $0x31] sm:$0xff]
      %v2974 = vld [vmem:[%s2579 + $0x39] sm:$0xff]
      %v2975 = vld [vmem:[%s2579 + $0x49] sm:$0xff]
      %v2976 = vld [vmem:[%s2579 + $0x51] sm:$0xff]
      %v2977 = vld [vmem:[%s2579 + $0x61] sm:$0xff]
      %v2978 = vld [vmem:[%s2579 + $0x69] sm:$0xff]
      %v2979 = vld [vmem:[%s2579 + $0x79] sm:$0xff]
      %v2980 = vld [vmem:[%s2579 + $0x81] sm:$0xff]
      %v2981 = vld [vmem:[%s2579 + $0x91] sm:$0xff]
      %v2982 = vld [vmem:[%s2579 + $0x99] sm:$0xff]
      %v2983 = vld [vmem:[%s2579 + $0xa9] sm:$0xff]
      %v2984 = vld [vmem:[%s2579 + $0xb1] sm:$0xff]
      %v2985 = vld [vmem:[%s2579 + $0xc1] sm:$0xff]
      %v2986 = vld [vmem:[%s2579 + $0xc9] sm:$0xff]
      %v2987 = vld [vmem:[%s2579 + $0xd9] sm:$0xff]
      %v2988 = vld [vmem:[%s2579 + $0xe1] sm:$0xff]
      %v2989 = vld [vmem:[%s2579 + $0xf1] sm:$0xff]
      %v2990 = vld [vmem:[%s2579 + $0xf9] sm:$0xff]
      %v2991 = vld [vmem:[%s2579 + $0x109] sm:$0xff]
      %v2992 = vld [vmem:[%s2579 + $0x111] sm:$0xff]
      %v2993 = vld [vmem:[%s2579 + $0x121] sm:$0xff]
      %v2994 = vld [vmem:[%s2579 + $0x129] sm:$0xff]
      %v2995 = vld [vmem:[%s2579 + $0x139] sm:$0xff]
      %v2996 = vld [vmem:[%s2579 + $0x141] sm:$0xff]
      %v2997 = vld [vmem:[%s2579 + $0x151] sm:$0xff]
      %v2998 = vld [vmem:[%s2579 + $0x159] sm:$0xff]
      %v2999 = vld [vmem:[%s2579 + $0x169] sm:$0xff]
      %v3000 = vld [vmem:[%s2579 + $0x171] sm:$0xff]
      %v3001 = vld [vmem:[%s1 + $0x1c] sm:$0xf]
      %v3003 = vsel %vm368, %v2969, 0
      %v3006 = vsel %vm368, %v2970, 0
      %v3009 = vsel %vm368, %v2971, 0
      %v3012 = vsel %vm368, %v2972, 0
      %v3015 = vsel %vm368, %v2973, 0
      %v3018 = vsel %vm368, %v2974, 0
      %v3021 = vsel %vm368, %v2975, 0
      %v3024 = vsel %vm368, %v2976, 0
      %v3027 = vsel %vm368, %v2977, 0
      %v3030 = vsel %vm368, %v2978, 0
      %v3033 = vsel %vm368, %v2979, 0
      %v3036 = vsel %vm368, %v2980, 0
      %v3039 = vsel %vm368, %v2981, 0
      %v3042 = vsel %vm368, %v2982, 0
      %v3045 = vsel %vm368, %v2983, 0
      %v3048 = vsel %vm368, %v2984, 0
      %v3051 = vsel %vm368, %v2985, 0
      %v3054 = vsel %vm368, %v2986, 0
      %v3057 = vsel %vm368, %v2987, 0
      %v3060 = vsel %vm368, %v2988, 0
      %v3063 = vsel %vm368, %v2989, 0
      %v3066 = vsel %vm368, %v2990, 0
      %v3069 = vsel %vm368, %v2991, 0
      %v3072 = vsel %vm368, %v2992, 0
      %v3075 = vsel %vm368, %v2993, 0
      %v3078 = vsel %vm368, %v2994, 0
      %v3081 = vsel %vm368, %v2995, 0
      %v3084 = vsel %vm368, %v2996, 0
      %v3087 = vsel %vm368, %v2997, 0
      %v3090 = vsel %vm368, %v2998, 0
      %v3093 = vsel %vm368, %v2999, 0
      %v3096 = vsel %vm368, %v3000, 0
      %v3099 = vsel %vm465, %v3001, 0
      %3101 = vmatprep.subr.mxu0 0.0
      %3102 = vmatpush1.msra.mxu0 0.0
      %3103 = vmatprep.subr.mxu0 0.0
      %3104 = vmatpush1.msra.mxu0 0.0
      %3105 = vmatprep.subr.mxu0 0.0
      %3106 = vmatpush1.msra.mxu0 0.0
      %3107 = vmatprep.subr.mxu0 0.0
      %3108 = vmatpush1.msra.mxu0 0.0
      %3109 = vmatprep.subr.mxu0 0.0
      %3110 = vmatpush1.msra.mxu0 0.0
      %3111 = vmatprep.subr.mxu0 0.0
      %3112 = vmatpush1.msra.mxu0 0.0
      %3113 = vmatprep.subr.mxu0 0.0
      %3114 = vmatpush1.msra.mxu0 0.0
      %3115 = vmatprep.subr.mxu0 0.0
      %3116 = vmatpush1.msra.mxu0 0.0
      %3117 = vmatprep.subr.mxu0 0.0
      %3118 = vmatpush1.msra.mxu0 0.0
      %3119 = vmatprep.subr.mxu0 0.0
      %3120 = vmatpush1.msra.mxu0 0.0
      %3121 = vmatprep.subr.mxu0 0.0
      %3122 = vmatpush1.msra.mxu0 0.0
      %3123 = vmatprep.subr.mxu0 0.0
      %3124 = vmatpush1.msra.mxu0 0.0
      %3125 = vmatprep.subr.mxu0 0.0
      %3126 = vmatpush1.msra.mxu0 0.0
      %3127 = vmatprep.subr.mxu0 0.0
      %3128 = vmatpush1.msra.mxu0 0.0
      %3129 = vmatprep.subr.mxu0 0.0
      %3130 = vmatpush1.msra.mxu0 0.0
      %3131 = vmatprep.subr.mxu0 0.0
      %3132 = vmatpush1.msra.mxu0 %v3099
      %3133 = vmatprep.subr.mxu0 0.0
      %3134 = vmatpush2.msra.mxu0 0.0
      %3135 = vmatprep.subr.mxu0 0.0
      %3136 = vmatpush2.msra.mxu0 0.0
      %3137 = vmatprep.subr.mxu0 0.0
      %3138 = vmatpush2.msra.mxu0 0.0
      %3139 = vmatprep.subr.mxu0 0.0
      %3140 = vmatpush2.msra.mxu0 0.0
      %3141 = vmatprep.subr.mxu0 0.0
      %3142 = vmatpush2.msra.mxu0 0.0
      %3143 = vmatprep.subr.mxu0 0.0
      %3144 = vmatpush2.msra.mxu0 0.0
      %3145 = vmatprep.subr.mxu0 0.0
      %3146 = vmatpush2.msra.mxu0 0.0
      %3147 = vmatprep.subr.mxu0 0.0
      %3148 = vmatpush2.msra.mxu0 0.0
      %3149 = vmatprep.subr.mxu0 0.0
      %3150 = vmatpush2.msra.mxu0 0.0
      %3151 = vmatprep.subr.mxu0 0.0
      %3152 = vmatpush2.msra.mxu0 0.0
      %3153 = vmatprep.subr.mxu0 0.0
      %3154 = vmatpush2.msra.mxu0 0.0
      %3155 = vmatprep.subr.mxu0 0.0
      %3156 = vmatpush2.msra.mxu0 0.0
      %3157 = vmatprep.subr.mxu0 0.0
      %3158 = vmatpush2.msra.mxu0 0.0
      %3159 = vmatprep.subr.mxu0 0.0
      %3160 = vmatpush2.msra.mxu0 0.0
      %3161 = vmatprep.subr.mxu0 0.0
      %3162 = vmatpush2.msra.mxu0 0.0
      %3163 = vmatprep.subr.mxu0 0.0
      %3164 = vmatpush2.msra.mxu0 0.0
      %3165 = vmatprep.mubr.f32.mxu0 0.0
      %3166 = vmatmul.mubr.f32.gmra.mxu0 %v3003
      %v3167 = vpop.f32.mrf.mxu0
      %v3168 = vadd.f32 0.0, %v3167
      %v3169 = vpop.f32.mrf.mxu0
      %3170 = vmatprep.mubr.f32.mxu0 0.0
      %3171 = vmatmul.mubr.f32.gmra.mxu0 %v3006
      %v3172 = vpop.f32.mrf.mxu0
      %v3173 = vadd.f32 0.0, %v3172
      %v3174 = vpop.f32.mrf.mxu0
      %3175 = vmatprep.mubr.f32.mxu0 0.0
      %3176 = vmatmul.mubr.f32.gmra.mxu0 %v3009
      %v3177 = vpop.f32.mrf.mxu0
      %v3178 = vadd.f32 0.0, %v3177
      %v3179 = vpop.f32.mrf.mxu0
      %3180 = vmatprep.mubr.f32.mxu0 0.0
      %3181 = vmatmul.mubr.f32.gmra.mxu0 %v3012
      %v3182 = vpop.f32.mrf.mxu0
      %v3183 = vadd.f32 0.0, %v3182
      %v3184 = vpop.f32.mrf.mxu0
      %3185 = vmatprep.mubr.f32.mxu0 0.0
      %3186 = vmatmul.mubr.f32.gmra.mxu0 %v3015
      %v3187 = vpop.f32.mrf.mxu0
      %v3188 = vadd.f32 0.0, %v3187
      %v3189 = vpop.f32.mrf.mxu0
      %3190 = vmatprep.mubr.f32.mxu0 0.0
      %3191 = vmatmul.mubr.f32.gmra.mxu0 %v3018
      %v3192 = vpop.f32.mrf.mxu0
      %v3193 = vadd.f32 0.0, %v3192
      %v3194 = vpop.f32.mrf.mxu0
      %3195 = vmatprep.mubr.f32.mxu0 0.0
      %3196 = vmatmul.mubr.f32.gmra.mxu0 %v3021
      %v3197 = vpop.f32.mrf.mxu0
      %v3198 = vadd.f32 0.0, %v3197
      %v3199 = vpop.f32.mrf.mxu0
      %3200 = vmatprep.mubr.f32.mxu0 0.0
      %3201 = vmatmul.mubr.f32.gmra.mxu0 %v3024
      %v3202 = vpop.f32.mrf.mxu0
      %v3203 = vadd.f32 0.0, %v3202
      %v3204 = vpop.f32.mrf.mxu0
      %3205 = vmatprep.mubr.f32.mxu0 0.0
      %3206 = vmatmul.mubr.f32.gmra.mxu0 %v3027
      %v3207 = vpop.f32.mrf.mxu0
      %v3208 = vadd.f32 0.0, %v3207
      %v3209 = vpop.f32.mrf.mxu0
      %3210 = vmatprep.mubr.f32.mxu0 0.0
      %3211 = vmatmul.mubr.f32.gmra.mxu0 %v3030
      %v3212 = vpop.f32.mrf.mxu0
      %v3213 = vadd.f32 0.0, %v3212
      %v3214 = vpop.f32.mrf.mxu0
      %3215 = vmatprep.mubr.f32.mxu0 0.0
      %3216 = vmatmul.mubr.f32.gmra.mxu0 %v3033
      %v3217 = vpop.f32.mrf.mxu0
      %v3218 = vadd.f32 0.0, %v3217
      %v3219 = vpop.f32.mrf.mxu0
      %3220 = vmatprep.mubr.f32.mxu0 0.0
      %3221 = vmatmul.mubr.f32.gmra.mxu0 %v3036
      %v3222 = vpop.f32.mrf.mxu0
      %v3223 = vadd.f32 0.0, %v3222
      %v3224 = vpop.f32.mrf.mxu0
      %3225 = vmatprep.mubr.f32.mxu0 0.0
      %3226 = vmatmul.mubr.f32.gmra.mxu0 %v3039
      %v3227 = vpop.f32.mrf.mxu0
      %v3228 = vadd.f32 0.0, %v3227
      %v3229 = vpop.f32.mrf.mxu0
      %3230 = vmatprep.mubr.f32.mxu0 0.0
      %3231 = vmatmul.mubr.f32.gmra.mxu0 %v3042
      %v3232 = vpop.f32.mrf.mxu0
      %v3233 = vadd.f32 0.0, %v3232
      %v3234 = vpop.f32.mrf.mxu0
      %3235 = vmatprep.mubr.f32.mxu0 0.0
      %3236 = vmatmul.mubr.f32.gmra.mxu0 %v3045
      %v3237 = vpop.f32.mrf.mxu0
      %v3238 = vadd.f32 0.0, %v3237
      %v3239 = vpop.f32.mrf.mxu0
      %3240 = vmatprep.mubr.f32.mxu0 0.0
      %3241 = vmatmul.mubr.f32.gmra.mxu0 %v3048
      %v3242 = vpop.f32.mrf.mxu0
      %v3243 = vadd.f32 0.0, %v3242
      %v3244 = vpop.f32.mrf.mxu0
      %3245 = vmatprep.mubr.f32.mxu0 0.0
      %3246 = vmatmul.mubr.f32.gmra.mxu0 %v3051
      %v3247 = vpop.f32.mrf.mxu0
      %v3248 = vadd.f32 0.0, %v3247
      %v3249 = vpop.f32.mrf.mxu0
      %3250 = vmatprep.mubr.f32.mxu0 0.0
      %3251 = vmatmul.mubr.f32.gmra.mxu0 %v3054
      %v3252 = vpop.f32.mrf.mxu0
      %v3253 = vadd.f32 0.0, %v3252
      %v3254 = vpop.f32.mrf.mxu0
      %3255 = vmatprep.mubr.f32.mxu0 0.0
      %3256 = vmatmul.mubr.f32.gmra.mxu0 %v3057
      %v3257 = vpop.f32.mrf.mxu0
      %v3258 = vadd.f32 0.0, %v3257
      %v3259 = vpop.f32.mrf.mxu0
      %3260 = vmatprep.mubr.f32.mxu0 0.0
      %3261 = vmatmul.mubr.f32.gmra.mxu0 %v3060
      %v3262 = vpop.f32.mrf.mxu0
      %v3263 = vadd.f32 0.0, %v3262
      %v3264 = vpop.f32.mrf.mxu0
      %3265 = vmatprep.mubr.f32.mxu0 0.0
      %3266 = vmatmul.mubr.f32.gmra.mxu0 %v3063
      %v3267 = vpop.f32.mrf.mxu0
      %v3268 = vadd.f32 0.0, %v3267
      %v3269 = vpop.f32.mrf.mxu0
      %3270 = vmatprep.mubr.f32.mxu0 0.0
      %3271 = vmatmul.mubr.f32.gmra.mxu0 %v3066
      %v3272 = vpop.f32.mrf.mxu0
      %v3273 = vadd.f32 0.0, %v3272
      %v3274 = vpop.f32.mrf.mxu0
      %3275 = vmatprep.mubr.f32.mxu0 0.0
      %3276 = vmatmul.mubr.f32.gmra.mxu0 %v3069
      %v3277 = vpop.f32.mrf.mxu0
      %v3278 = vadd.f32 0.0, %v3277
      %v3279 = vpop.f32.mrf.mxu0
      %3280 = vmatprep.mubr.f32.mxu0 0.0
      %3281 = vmatmul.mubr.f32.gmra.mxu0 %v3072
      %v3282 = vpop.f32.mrf.mxu0
      %v3283 = vadd.f32 0.0, %v3282
      %v3284 = vpop.f32.mrf.mxu0
      %3285 = vmatprep.mubr.f32.mxu0 0.0
      %3286 = vmatmul.mubr.f32.gmra.mxu0 %v3075
      %v3287 = vpop.f32.mrf.mxu0
      %v3288 = vadd.f32 0.0, %v3287
      %v3289 = vpop.f32.mrf.mxu0
      %3290 = vmatprep.mubr.f32.mxu0 0.0
      %3291 = vmatmul.mubr.f32.gmra.mxu0 %v3078
      %v3292 = vpop.f32.mrf.mxu0
      %v3293 = vadd.f32 0.0, %v3292
      %v3294 = vpop.f32.mrf.mxu0
      %3295 = vmatprep.mubr.f32.mxu0 0.0
      %3296 = vmatmul.mubr.f32.gmra.mxu0 %v3081
      %v3297 = vpop.f32.mrf.mxu0
      %v3298 = vadd.f32 0.0, %v3297
      %v3299 = vpop.f32.mrf.mxu0
      %3300 = vmatprep.mubr.f32.mxu0 0.0
      %3301 = vmatmul.mubr.f32.gmra.mxu0 %v3084
      %v3302 = vpop.f32.mrf.mxu0
      %v3303 = vadd.f32 0.0, %v3302
      %v3304 = vpop.f32.mrf.mxu0
      %3305 = vmatprep.mubr.f32.mxu0 0.0
      %3306 = vmatmul.mubr.f32.gmra.mxu0 %v3087
      %v3307 = vpop.f32.mrf.mxu0
      %v3308 = vadd.f32 0.0, %v3307
      %v3309 = vpop.f32.mrf.mxu0
      %3310 = vmatprep.mubr.f32.mxu0 0.0
      %3311 = vmatmul.mubr.f32.gmra.mxu0 %v3090
      %v3312 = vpop.f32.mrf.mxu0
      %v3313 = vadd.f32 0.0, %v3312
      %v3314 = vpop.f32.mrf.mxu0
      %3315 = vmatprep.mubr.f32.mxu0 0.0
      %3316 = vmatmul.mubr.f32.gmra.mxu0 %v3093
      %v3317 = vpop.f32.mrf.mxu0
      %v3318 = vadd.f32 0.0, %v3317
      %v3319 = vpop.f32.mrf.mxu0
      %3320 = vmatprep.mubr.f32.mxu0 0.0
      %3321 = vmatmul.mubr.f32.gmra.mxu0 %v3096
      %v3322 = vpop.f32.mrf.mxu0
      %v3323 = vadd.f32 0.0, %v3322
      %v3324 = vpop.f32.mrf.mxu0
      %3325 = vdwg.mxu0
      %v3326 = vadd.f32 %v2937, %v3168
      %v3327 = vadd.f32 %v2938, %v3173
      %v3328 = vadd.f32 %v2939, %v3178
      %v3329 = vadd.f32 %v2940, %v3183
      %v3330 = vadd.f32 %v2941, %v3188
      %v3331 = vadd.f32 %v2942, %v3193
      %v3332 = vadd.f32 %v2943, %v3198
      %v3333 = vadd.f32 %v2944, %v3203
      %v3334 = vadd.f32 %v2945, %v3208
      %v3335 = vadd.f32 %v2946, %v3213
      %v3336 = vadd.f32 %v2947, %v3218
      %v3337 = vadd.f32 %v2948, %v3223
      %v3338 = vadd.f32 %v2949, %v3228
      %v3339 = vadd.f32 %v2950, %v3233
      %v3340 = vadd.f32 %v2951, %v3238
      %v3341 = vadd.f32 %v2952, %v3243
      %v3342 = vadd.f32 %v2953, %v3248
      %v3343 = vadd.f32 %v2954, %v3253
      %v3344 = vadd.f32 %v2955, %v3258
      %v3345 = vadd.f32 %v2956, %v3263
      %v3346 = vadd.f32 %v2957, %v3268
      %v3347 = vadd.f32 %v2958, %v3273
      %v3348 = vadd.f32 %v2959, %v3278
      %v3349 = vadd.f32 %v2960, %v3283
      %v3350 = vadd.f32 %v2961, %v3288
      %v3351 = vadd.f32 %v2962, %v3293
      %v3352 = vadd.f32 %v2963, %v3298
      %v3353 = vadd.f32 %v2964, %v3303
      %v3354 = vadd.f32 %v2965, %v3308
      %v3355 = vadd.f32 %v2966, %v3313
      %v3356 = vadd.f32 %v2967, %v3318
      %v3357 = vadd.f32 %v2968, %v3323
      %v3358 = vld [vmem:[%s2579 + $0x2] sm:$0xff]
      %v3359 = vld [vmem:[%s2579 + $0xa] sm:$0xff]
      %v3360 = vld [vmem:[%s2579 + $0x1a] sm:$0xff]
      %v3361 = vld [vmem:[%s2579 + $0x22] sm:$0xff]
      %v3362 = vld [vmem:[%s2579 + $0x32] sm:$0xff]
      %v3363 = vld [vmem:[%s2579 + $0x3a] sm:$0xff]
      %v3364 = vld [vmem:[%s2579 + $0x4a] sm:$0xff]
      %v3365 = vld [vmem:[%s2579 + $0x52] sm:$0xff]
      %v3366 = vld [vmem:[%s2579 + $0x62] sm:$0xff]
      %v3367 = vld [vmem:[%s2579 + $0x6a] sm:$0xff]
      %v3368 = vld [vmem:[%s2579 + $0x7a] sm:$0xff]
      %v3369 = vld [vmem:[%s2579 + $0x82] sm:$0xff]
      %v3370 = vld [vmem:[%s2579 + $0x92] sm:$0xff]
      %v3371 = vld [vmem:[%s2579 + $0x9a] sm:$0xff]
      %v3372 = vld [vmem:[%s2579 + $0xaa] sm:$0xff]
      %v3373 = vld [vmem:[%s2579 + $0xb2] sm:$0xff]
      %v3374 = vld [vmem:[%s2579 + $0xc2] sm:$0xff]
      %v3375 = vld [vmem:[%s2579 + $0xca] sm:$0xff]
      %v3376 = vld [vmem:[%s2579 + $0xda] sm:$0xff]
      %v3377 = vld [vmem:[%s2579 + $0xe2] sm:$0xff]
      %v3378 = vld [vmem:[%s2579 + $0xf2] sm:$0xff]
      %v3379 = vld [vmem:[%s2579 + $0xfa] sm:$0xff]
      %v3380 = vld [vmem:[%s2579 + $0x10a] sm:$0xff]
      %v3381 = vld [vmem:[%s2579 + $0x112] sm:$0xff]
      %v3382 = vld [vmem:[%s2579 + $0x122] sm:$0xff]
      %v3383 = vld [vmem:[%s2579 + $0x12a] sm:$0xff]
      %v3384 = vld [vmem:[%s2579 + $0x13a] sm:$0xff]
      %v3385 = vld [vmem:[%s2579 + $0x142] sm:$0xff]
      %v3386 = vld [vmem:[%s2579 + $0x152] sm:$0xff]
      %v3387 = vld [vmem:[%s2579 + $0x15a] sm:$0xff]
      %v3388 = vld [vmem:[%s2579 + $0x16a] sm:$0xff]
      %v3389 = vld [vmem:[%s2579 + $0x172] sm:$0xff]
      %v3390 = vld [vmem:[%s1 + $0x20] sm:$0xf]
      %v3392 = vsel %vm368, %v3358, 0
      %v3395 = vsel %vm368, %v3359, 0
      %v3398 = vsel %vm368, %v3360, 0
      %v3401 = vsel %vm368, %v3361, 0
      %v3404 = vsel %vm368, %v3362, 0
      %v3407 = vsel %vm368, %v3363, 0
      %v3410 = vsel %vm368, %v3364, 0
      %v3413 = vsel %vm368, %v3365, 0
      %v3416 = vsel %vm368, %v3366, 0
      %v3419 = vsel %vm368, %v3367, 0
      %v3422 = vsel %vm368, %v3368, 0
      %v3425 = vsel %vm368, %v3369, 0
      %v3428 = vsel %vm368, %v3370, 0
      %v3431 = vsel %vm368, %v3371, 0
      %v3434 = vsel %vm368, %v3372, 0
      %v3437 = vsel %vm368, %v3373, 0
      %v3440 = vsel %vm368, %v3374, 0
      %v3443 = vsel %vm368, %v3375, 0
      %v3446 = vsel %vm368, %v3376, 0
      %v3449 = vsel %vm368, %v3377, 0
      %v3452 = vsel %vm368, %v3378, 0
      %v3455 = vsel %vm368, %v3379, 0
      %v3458 = vsel %vm368, %v3380, 0
      %v3461 = vsel %vm368, %v3381, 0
      %v3464 = vsel %vm368, %v3382, 0
      %v3467 = vsel %vm368, %v3383, 0
      %v3470 = vsel %vm368, %v3384, 0
      %v3473 = vsel %vm368, %v3385, 0
      %v3476 = vsel %vm368, %v3386, 0
      %v3479 = vsel %vm368, %v3387, 0
      %v3482 = vsel %vm368, %v3388, 0
      %v3485 = vsel %vm368, %v3389, 0
      %v3488 = vsel %vm465, %v3390, 0
      %3490 = vmatprep.subr.mxu0 0.0
      %3491 = vmatpush1.msra.mxu0 0.0
      %3492 = vmatprep.subr.mxu0 0.0
      %3493 = vmatpush1.msra.mxu0 0.0
      %3494 = vmatprep.subr.mxu0 0.0
      %3495 = vmatpush1.msra.mxu0 0.0
      %3496 = vmatprep.subr.mxu0 0.0
      %3497 = vmatpush1.msra.mxu0 0.0
      %3498 = vmatprep.subr.mxu0 0.0
      %3499 = vmatpush1.msra.mxu0 0.0
      %3500 = vmatprep.subr.mxu0 0.0
      %3501 = vmatpush1.msra.mxu0 0.0
      %3502 = vmatprep.subr.mxu0 0.0
      %3503 = vmatpush1.msra.mxu0 0.0
      %3504 = vmatprep.subr.mxu0 0.0
      %3505 = vmatpush1.msra.mxu0 0.0
      %3506 = vmatprep.subr.mxu0 0.0
      %3507 = vmatpush1.msra.mxu0 0.0
      %3508 = vmatprep.subr.mxu0 0.0
      %3509 = vmatpush1.msra.mxu0 0.0
      %3510 = vmatprep.subr.mxu0 0.0
      %3511 = vmatpush1.msra.mxu0 0.0
      %3512 = vmatprep.subr.mxu0 0.0
      %3513 = vmatpush1.msra.mxu0 0.0
      %3514 = vmatprep.subr.mxu0 0.0
      %3515 = vmatpush1.msra.mxu0 0.0
      %3516 = vmatprep.subr.mxu0 0.0
      %3517 = vmatpush1.msra.mxu0 0.0
      %3518 = vmatprep.subr.mxu0 0.0
      %3519 = vmatpush1.msra.mxu0 0.0
      %3520 = vmatprep.subr.mxu0 0.0
      %3521 = vmatpush1.msra.mxu0 %v3488
      %3522 = vmatprep.subr.mxu0 0.0
      %3523 = vmatpush2.msra.mxu0 0.0
      %3524 = vmatprep.subr.mxu0 0.0
      %3525 = vmatpush2.msra.mxu0 0.0
      %3526 = vmatprep.subr.mxu0 0.0
      %3527 = vmatpush2.msra.mxu0 0.0
      %3528 = vmatprep.subr.mxu0 0.0
      %3529 = vmatpush2.msra.mxu0 0.0
      %3530 = vmatprep.subr.mxu0 0.0
      %3531 = vmatpush2.msra.mxu0 0.0
      %3532 = vmatprep.subr.mxu0 0.0
      %3533 = vmatpush2.msra.mxu0 0.0
      %3534 = vmatprep.subr.mxu0 0.0
      %3535 = vmatpush2.msra.mxu0 0.0
      %3536 = vmatprep.subr.mxu0 0.0
      %3537 = vmatpush2.msra.mxu0 0.0
      %3538 = vmatprep.subr.mxu0 0.0
      %3539 = vmatpush2.msra.mxu0 0.0
      %3540 = vmatprep.subr.mxu0 0.0
      %3541 = vmatpush2.msra.mxu0 0.0
      %3542 = vmatprep.subr.mxu0 0.0
      %3543 = vmatpush2.msra.mxu0 0.0
      %3544 = vmatprep.subr.mxu0 0.0
      %3545 = vmatpush2.msra.mxu0 0.0
      %3546 = vmatprep.subr.mxu0 0.0
      %3547 = vmatpush2.msra.mxu0 0.0
      %3548 = vmatprep.subr.mxu0 0.0
      %3549 = vmatpush2.msra.mxu0 0.0
      %3550 = vmatprep.subr.mxu0 0.0
      %3551 = vmatpush2.msra.mxu0 0.0
      %3552 = vmatprep.subr.mxu0 0.0
      %3553 = vmatpush2.msra.mxu0 0.0
      %3554 = vmatprep.mubr.f32.mxu0 0.0
      %3555 = vmatmul.mubr.f32.gmra.mxu0 %v3392
      %v3556 = vpop.f32.mrf.mxu0
      %v3557 = vadd.f32 0.0, %v3556
      %v3558 = vpop.f32.mrf.mxu0
      %3559 = vmatprep.mubr.f32.mxu0 0.0
      %3560 = vmatmul.mubr.f32.gmra.mxu0 %v3395
      %v3561 = vpop.f32.mrf.mxu0
      %v3562 = vadd.f32 0.0, %v3561
      %v3563 = vpop.f32.mrf.mxu0
      %3564 = vmatprep.mubr.f32.mxu0 0.0
      %3565 = vmatmul.mubr.f32.gmra.mxu0 %v3398
      %v3566 = vpop.f32.mrf.mxu0
      %v3567 = vadd.f32 0.0, %v3566
      %v3568 = vpop.f32.mrf.mxu0
      %3569 = vmatprep.mubr.f32.mxu0 0.0
      %3570 = vmatmul.mubr.f32.gmra.mxu0 %v3401
      %v3571 = vpop.f32.mrf.mxu0
      %v3572 = vadd.f32 0.0, %v3571
      %v3573 = vpop.f32.mrf.mxu0
      %3574 = vmatprep.mubr.f32.mxu0 0.0
      %3575 = vmatmul.mubr.f32.gmra.mxu0 %v3404
      %v3576 = vpop.f32.mrf.mxu0
      %v3577 = vadd.f32 0.0, %v3576
      %v3578 = vpop.f32.mrf.mxu0
      %3579 = vmatprep.mubr.f32.mxu0 0.0
      %3580 = vmatmul.mubr.f32.gmra.mxu0 %v3407
      %v3581 = vpop.f32.mrf.mxu0
      %v3582 = vadd.f32 0.0, %v3581
      %v3583 = vpop.f32.mrf.mxu0
      %3584 = vmatprep.mubr.f32.mxu0 0.0
      %3585 = vmatmul.mubr.f32.gmra.mxu0 %v3410
      %v3586 = vpop.f32.mrf.mxu0
      %v3587 = vadd.f32 0.0, %v3586
      %v3588 = vpop.f32.mrf.mxu0
      %3589 = vmatprep.mubr.f32.mxu0 0.0
      %3590 = vmatmul.mubr.f32.gmra.mxu0 %v3413
      %v3591 = vpop.f32.mrf.mxu0
      %v3592 = vadd.f32 0.0, %v3591
      %v3593 = vpop.f32.mrf.mxu0
      %3594 = vmatprep.mubr.f32.mxu0 0.0
      %3595 = vmatmul.mubr.f32.gmra.mxu0 %v3416
      %v3596 = vpop.f32.mrf.mxu0
      %v3597 = vadd.f32 0.0, %v3596
      %v3598 = vpop.f32.mrf.mxu0
      %3599 = vmatprep.mubr.f32.mxu0 0.0
      %3600 = vmatmul.mubr.f32.gmra.mxu0 %v3419
      %v3601 = vpop.f32.mrf.mxu0
      %v3602 = vadd.f32 0.0, %v3601
      %v3603 = vpop.f32.mrf.mxu0
      %3604 = vmatprep.mubr.f32.mxu0 0.0
      %3605 = vmatmul.mubr.f32.gmra.mxu0 %v3422
      %v3606 = vpop.f32.mrf.mxu0
      %v3607 = vadd.f32 0.0, %v3606
      %v3608 = vpop.f32.mrf.mxu0
      %3609 = vmatprep.mubr.f32.mxu0 0.0
      %3610 = vmatmul.mubr.f32.gmra.mxu0 %v3425
      %v3611 = vpop.f32.mrf.mxu0
      %v3612 = vadd.f32 0.0, %v3611
      %v3613 = vpop.f32.mrf.mxu0
      %3614 = vmatprep.mubr.f32.mxu0 0.0
      %3615 = vmatmul.mubr.f32.gmra.mxu0 %v3428
      %v3616 = vpop.f32.mrf.mxu0
      %v3617 = vadd.f32 0.0, %v3616
      %v3618 = vpop.f32.mrf.mxu0
      %3619 = vmatprep.mubr.f32.mxu0 0.0
      %3620 = vmatmul.mubr.f32.gmra.mxu0 %v3431
      %v3621 = vpop.f32.mrf.mxu0
      %v3622 = vadd.f32 0.0, %v3621
      %v3623 = vpop.f32.mrf.mxu0
      %3624 = vmatprep.mubr.f32.mxu0 0.0
      %3625 = vmatmul.mubr.f32.gmra.mxu0 %v3434
      %v3626 = vpop.f32.mrf.mxu0
      %v3627 = vadd.f32 0.0, %v3626
      %v3628 = vpop.f32.mrf.mxu0
      %3629 = vmatprep.mubr.f32.mxu0 0.0
      %3630 = vmatmul.mubr.f32.gmra.mxu0 %v3437
      %v3631 = vpop.f32.mrf.mxu0
      %v3632 = vadd.f32 0.0, %v3631
      %v3633 = vpop.f32.mrf.mxu0
      %3634 = vmatprep.mubr.f32.mxu0 0.0
      %3635 = vmatmul.mubr.f32.gmra.mxu0 %v3440
      %v3636 = vpop.f32.mrf.mxu0
      %v3637 = vadd.f32 0.0, %v3636
      %v3638 = vpop.f32.mrf.mxu0
      %3639 = vmatprep.mubr.f32.mxu0 0.0
      %3640 = vmatmul.mubr.f32.gmra.mxu0 %v3443
      %v3641 = vpop.f32.mrf.mxu0
      %v3642 = vadd.f32 0.0, %v3641
      %v3643 = vpop.f32.mrf.mxu0
      %3644 = vmatprep.mubr.f32.mxu0 0.0
      %3645 = vmatmul.mubr.f32.gmra.mxu0 %v3446
      %v3646 = vpop.f32.mrf.mxu0
      %v3647 = vadd.f32 0.0, %v3646
      %v3648 = vpop.f32.mrf.mxu0
      %3649 = vmatprep.mubr.f32.mxu0 0.0
      %3650 = vmatmul.mubr.f32.gmra.mxu0 %v3449
      %v3651 = vpop.f32.mrf.mxu0
      %v3652 = vadd.f32 0.0, %v3651
      %v3653 = vpop.f32.mrf.mxu0
      %3654 = vmatprep.mubr.f32.mxu0 0.0
      %3655 = vmatmul.mubr.f32.gmra.mxu0 %v3452
      %v3656 = vpop.f32.mrf.mxu0
      %v3657 = vadd.f32 0.0, %v3656
      %v3658 = vpop.f32.mrf.mxu0
      %3659 = vmatprep.mubr.f32.mxu0 0.0
      %3660 = vmatmul.mubr.f32.gmra.mxu0 %v3455
      %v3661 = vpop.f32.mrf.mxu0
      %v3662 = vadd.f32 0.0, %v3661
      %v3663 = vpop.f32.mrf.mxu0
      %3664 = vmatprep.mubr.f32.mxu0 0.0
      %3665 = vmatmul.mubr.f32.gmra.mxu0 %v3458
      %v3666 = vpop.f32.mrf.mxu0
      %v3667 = vadd.f32 0.0, %v3666
      %v3668 = vpop.f32.mrf.mxu0
      %3669 = vmatprep.mubr.f32.mxu0 0.0
      %3670 = vmatmul.mubr.f32.gmra.mxu0 %v3461
      %v3671 = vpop.f32.mrf.mxu0
      %v3672 = vadd.f32 0.0, %v3671
      %v3673 = vpop.f32.mrf.mxu0
      %3674 = vmatprep.mubr.f32.mxu0 0.0
      %3675 = vmatmul.mubr.f32.gmra.mxu0 %v3464
      %v3676 = vpop.f32.mrf.mxu0
      %v3677 = vadd.f32 0.0, %v3676
      %v3678 = vpop.f32.mrf.mxu0
      %3679 = vmatprep.mubr.f32.mxu0 0.0
      %3680 = vmatmul.mubr.f32.gmra.mxu0 %v3467
      %v3681 = vpop.f32.mrf.mxu0
      %v3682 = vadd.f32 0.0, %v3681
      %v3683 = vpop.f32.mrf.mxu0
      %3684 = vmatprep.mubr.f32.mxu0 0.0
      %3685 = vmatmul.mubr.f32.gmra.mxu0 %v3470
      %v3686 = vpop.f32.mrf.mxu0
      %v3687 = vadd.f32 0.0, %v3686
      %v3688 = vpop.f32.mrf.mxu0
      %3689 = vmatprep.mubr.f32.mxu0 0.0
      %3690 = vmatmul.mubr.f32.gmra.mxu0 %v3473
      %v3691 = vpop.f32.mrf.mxu0
      %v3692 = vadd.f32 0.0, %v3691
      %v3693 = vpop.f32.mrf.mxu0
      %3694 = vmatprep.mubr.f32.mxu0 0.0
      %3695 = vmatmul.mubr.f32.gmra.mxu0 %v3476
      %v3696 = vpop.f32.mrf.mxu0
      %v3697 = vadd.f32 0.0, %v3696
      %v3698 = vpop.f32.mrf.mxu0
      %3699 = vmatprep.mubr.f32.mxu0 0.0
      %3700 = vmatmul.mubr.f32.gmra.mxu0 %v3479
      %v3701 = vpop.f32.mrf.mxu0
      %v3702 = vadd.f32 0.0, %v3701
      %v3703 = vpop.f32.mrf.mxu0
      %3704 = vmatprep.mubr.f32.mxu0 0.0
      %3705 = vmatmul.mubr.f32.gmra.mxu0 %v3482
      %v3706 = vpop.f32.mrf.mxu0
      %v3707 = vadd.f32 0.0, %v3706
      %v3708 = vpop.f32.mrf.mxu0
      %3709 = vmatprep.mubr.f32.mxu0 0.0
      %3710 = vmatmul.mubr.f32.gmra.mxu0 %v3485
      %v3711 = vpop.f32.mrf.mxu0
      %v3712 = vadd.f32 0.0, %v3711
      %v3713 = vpop.f32.mrf.mxu0
      %3714 = vdwg.mxu0
      %v3715 = vadd.f32 %v3326, %v3557
      %v3716 = vadd.f32 %v3327, %v3562
      %v3717 = vadd.f32 %v3328, %v3567
      %v3718 = vadd.f32 %v3329, %v3572
      %v3719 = vadd.f32 %v3330, %v3577
      %v3720 = vadd.f32 %v3331, %v3582
      %v3721 = vadd.f32 %v3332, %v3587
      %v3722 = vadd.f32 %v3333, %v3592
      %v3723 = vadd.f32 %v3334, %v3597
      %v3724 = vadd.f32 %v3335, %v3602
      %v3725 = vadd.f32 %v3336, %v3607
      %v3726 = vadd.f32 %v3337, %v3612
      %v3727 = vadd.f32 %v3338, %v3617
      %v3728 = vadd.f32 %v3339, %v3622
      %v3729 = vadd.f32 %v3340, %v3627
      %v3730 = vadd.f32 %v3341, %v3632
      %v3731 = vadd.f32 %v3342, %v3637
      %v3732 = vadd.f32 %v3343, %v3642
      %v3733 = vadd.f32 %v3344, %v3647
      %v3734 = vadd.f32 %v3345, %v3652
      %v3735 = vadd.f32 %v3346, %v3657
      %v3736 = vadd.f32 %v3347, %v3662
      %v3737 = vadd.f32 %v3348, %v3667
      %v3738 = vadd.f32 %v3349, %v3672
      %v3739 = vadd.f32 %v3350, %v3677
      %v3740 = vadd.f32 %v3351, %v3682
      %v3741 = vadd.f32 %v3352, %v3687
      %v3742 = vadd.f32 %v3353, %v3692
      %v3743 = vadd.f32 %v3354, %v3697
      %v3744 = vadd.f32 %v3355, %v3702
      %v3745 = vadd.f32 %v3356, %v3707
      %v3746 = vadd.f32 %v3357, %v3712
      %v3747 = vld [vmem:[%s2] sm:$0x1]
      %v3749 = vlaneseq
      %v3750 = vshrl.u32 %v3749, 7
      %v3751 = vsub.s32 0, %v3750
      %v3752 = vrot.slane %v3747, %v3751
      %v3754 = vadd.f32 %v3715, %v3752
      %v3755 = vadd.f32 %v3716, %v3752
      %v3756 = vadd.f32 %v3717, %v3752
      %v3757 = vadd.f32 %v3718, %v3752
      %v3758 = vadd.f32 %v3719, %v3752
      %v3759 = vadd.f32 %v3720, %v3752
      %v3760 = vadd.f32 %v3721, %v3752
      %v3761 = vadd.f32 %v3722, %v3752
      %v3762 = vadd.f32 %v3723, %v3752
      %v3763 = vadd.f32 %v3724, %v3752
      %v3764 = vadd.f32 %v3725, %v3752
      %v3765 = vadd.f32 %v3726, %v3752
      %v3766 = vadd.f32 %v3727, %v3752
      %v3767 = vadd.f32 %v3728, %v3752
      %v3768 = vadd.f32 %v3729, %v3752
      %v3769 = vadd.f32 %v3730, %v3752
      %v3770 = vadd.f32 %v3731, %v3752
      %v3771 = vadd.f32 %v3732, %v3752
      %v3772 = vadd.f32 %v3733, %v3752
      %v3773 = vadd.f32 %v3734, %v3752
      %v3774 = vadd.f32 %v3735, %v3752
      %v3775 = vadd.f32 %v3736, %v3752
      %v3776 = vadd.f32 %v3737, %v3752
      %v3777 = vadd.f32 %v3738, %v3752
      %v3778 = vadd.f32 %v3739, %v3752
      %v3779 = vadd.f32 %v3740, %v3752
      %v3780 = vadd.f32 %v3741, %v3752
      %v3781 = vadd.f32 %v3742, %v3752
      %v3782 = vadd.f32 %v3743, %v3752
      %v3783 = vadd.f32 %v3744, %v3752
      %v3784 = vadd.f32 %v3745, %v3752
      %v3785 = vadd.f32 %v3746, %v3752
      %v3786 = vmax.f32 %v3754, 0.0
      %v3787 = vmax.f32 %v3755, 0.0
      %v3788 = vmax.f32 %v3756, 0.0
      %v3789 = vmax.f32 %v3757, 0.0
      %v3790 = vmax.f32 %v3758, 0.0
      %v3791 = vmax.f32 %v3759, 0.0
      %v3792 = vmax.f32 %v3760, 0.0
      %v3793 = vmax.f32 %v3761, 0.0
      %v3794 = vmax.f32 %v3762, 0.0
      %v3795 = vmax.f32 %v3763, 0.0
      %v3796 = vmax.f32 %v3764, 0.0
      %v3797 = vmax.f32 %v3765, 0.0
      %v3798 = vmax.f32 %v3766, 0.0
      %v3799 = vmax.f32 %v3767, 0.0
      %v3800 = vmax.f32 %v3768, 0.0
      %v3801 = vmax.f32 %v3769, 0.0
      %v3802 = vmax.f32 %v3770, 0.0
      %v3803 = vmax.f32 %v3771, 0.0
      %v3804 = vmax.f32 %v3772, 0.0
      %v3805 = vmax.f32 %v3773, 0.0
      %v3806 = vmax.f32 %v3774, 0.0
      %v3807 = vmax.f32 %v3775, 0.0
      %v3808 = vmax.f32 %v3776, 0.0
      %v3809 = vmax.f32 %v3777, 0.0
      %v3810 = vmax.f32 %v3778, 0.0
      %v3811 = vmax.f32 %v3779, 0.0
      %v3812 = vmax.f32 %v3780, 0.0
      %v3813 = vmax.f32 %v3781, 0.0
      %v3814 = vmax.f32 %v3782, 0.0
      %v3815 = vmax.f32 %v3783, 0.0
      %v3816 = vmax.f32 %v3784, 0.0
      %v3817 = vmax.f32 %v3785, 0.0
      %vm3818 = vcmask 130048
      %3819 = vst.msk [vmem:[%s287] sm:$0xff] %vm3818, %v3786
      %3820 = vst.msk [vmem:[%s287 + $0x8] sm:$0xff] %vm3818, %v3787
      %3821 = vst.msk [vmem:[%s287 + $0x10] sm:$0xff] %vm3818, %v3788
      %3822 = vst.msk [vmem:[%s287 + $0x18] sm:$0xff] %vm3818, %v3789
      %3823 = vst.msk [vmem:[%s287 + $0x20] sm:$0xff] %vm3818, %v3790
      %3824 = vst.msk [vmem:[%s287 + $0x28] sm:$0xff] %vm3818, %v3791
      %3825 = vst.msk [vmem:[%s287 + $0x30] sm:$0xff] %vm3818, %v3792
      %3826 = vst.msk [vmem:[%s287 + $0x38] sm:$0xff] %vm3818, %v3793
      %3827 = vst.msk [vmem:[%s287 + $0x40] sm:$0xff] %vm3818, %v3794
      %3828 = vst.msk [vmem:[%s287 + $0x48] sm:$0xff] %vm3818, %v3795
      %3829 = vst.msk [vmem:[%s287 + $0x50] sm:$0xff] %vm3818, %v3796
      %3830 = vst.msk [vmem:[%s287 + $0x58] sm:$0xff] %vm3818, %v3797
      %3831 = vst.msk [vmem:[%s287 + $0x60] sm:$0xff] %vm3818, %v3798
      %3832 = vst.msk [vmem:[%s287 + $0x68] sm:$0xff] %vm3818, %v3799
      %3833 = vst.msk [vmem:[%s287 + $0x70] sm:$0xff] %vm3818, %v3800
      %3834 = vst.msk [vmem:[%s287 + $0x78] sm:$0xff] %vm3818, %v3801
      %3835 = vst.msk [vmem:[%s287 + $0x80] sm:$0xff] %vm3818, %v3802
      %3836 = vst.msk [vmem:[%s287 + $0x88] sm:$0xff] %vm3818, %v3803
      %3837 = vst.msk [vmem:[%s287 + $0x90] sm:$0xff] %vm3818, %v3804
      %3838 = vst.msk [vmem:[%s287 + $0x98] sm:$0xff] %vm3818, %v3805
      %3839 = vst.msk [vmem:[%s287 + $0xa0] sm:$0xff] %vm3818, %v3806
      %3840 = vst.msk [vmem:[%s287 + $0xa8] sm:$0xff] %vm3818, %v3807
      %3841 = vst.msk [vmem:[%s287 + $0xb0] sm:$0xff] %vm3818, %v3808
      %3842 = vst.msk [vmem:[%s287 + $0xb8] sm:$0xff] %vm3818, %v3809
      %3843 = vst.msk [vmem:[%s287 + $0xc0] sm:$0xff] %vm3818, %v3810
      %3844 = vst.msk [vmem:[%s287 + $0xc8] sm:$0xff] %vm3818, %v3811
      %3845 = vst.msk [vmem:[%s287 + $0xd0] sm:$0xff] %vm3818, %v3812
      %3846 = vst.msk [vmem:[%s287 + $0xd8] sm:$0xff] %vm3818, %v3813
      %3847 = vst.msk [vmem:[%s287 + $0xe0] sm:$0xff] %vm3818, %v3814
      %3848 = vst.msk [vmem:[%s287 + $0xe8] sm:$0xff] %vm3818, %v3815
      %3849 = vst.msk [vmem:[%s287 + $0xf0] sm:$0xff] %vm3818, %v3816
      %3850 = vst.msk [vmem:[%s287 + $0xf8] sm:$0xff] %vm3818, %v3817
      %v3851 = vld [vmem:[%s3] sm:$0xff]
      %v3852 = vld [vmem:[%s3 + $0x8] sm:$0xff]
      %v3853 = vld [vmem:[%s4] sm:$0x1]
      %v3855 = vlaneseq
      %v3856 = vshrl.u32 %v3855, 7
      %v3857 = vsub.s32 0, %v3856
      %v3858 = vrot.slane %v3853, %v3857
      %v3861 = vsel %vm3818, %v3786, 0
      %v3864 = vsel %vm3818, %v3787, 0
      %v3867 = vsel %vm3818, %v3788, 0
      %v3870 = vsel %vm3818, %v3789, 0
      %v3873 = vsel %vm3818, %v3790, 0
      %v3876 = vsel %vm3818, %v3791, 0
      %v3879 = vsel %vm3818, %v3792, 0
      %v3882 = vsel %vm3818, %v3793, 0
      %v3885 = vsel %vm3818, %v3794, 0
      %v3888 = vsel %vm3818, %v3795, 0
      %v3891 = vsel %vm3818, %v3796, 0
      %v3894 = vsel %vm3818, %v3797, 0
      %v3897 = vsel %vm3818, %v3798, 0
      %v3900 = vsel %vm3818, %v3799, 0
      %v3903 = vsel %vm3818, %v3800, 0
      %v3906 = vsel %vm3818, %v3801, 0
      %v3909 = vsel %vm3818, %v3802, 0
      %v3912 = vsel %vm3818, %v3803, 0
      %v3915 = vsel %vm3818, %v3804, 0
      %v3918 = vsel %vm3818, %v3805, 0
      %v3921 = vsel %vm3818, %v3806, 0
      %v3924 = vsel %vm3818, %v3807, 0
      %v3927 = vsel %vm3818, %v3808, 0
      %v3930 = vsel %vm3818, %v3809, 0
      %v3933 = vsel %vm3818, %v3810, 0
      %v3936 = vsel %vm3818, %v3811, 0
      %v3939 = vsel %vm3818, %v3812, 0
      %v3942 = vsel %vm3818, %v3813, 0
      %v3945 = vsel %vm3818, %v3814, 0
      %v3948 = vsel %vm3818, %v3815, 0
      %v3951 = vsel %vm3818, %v3816, 0
      %v3954 = vsel %vm3818, %v3817, 0
      %3956 = vmatprep.subr.mxu0 0.0
      %3957 = vmatpush1.msra.mxu0 0.0
      %3958 = vmatprep.subr.mxu0 0.0
      %3959 = vmatpush1.msra.mxu0 0.0
      %3960 = vmatprep.subr.mxu0 0.0
      %3961 = vmatpush1.msra.mxu0 0.0
      %3962 = vmatprep.subr.mxu0 0.0
      %3963 = vmatpush1.msra.mxu0 0.0
      %3964 = vmatprep.subr.mxu0 0.0
      %3965 = vmatpush1.msra.mxu0 0.0
      %3966 = vmatprep.subr.mxu0 0.0
      %3967 = vmatpush1.msra.mxu0 0.0
      %3968 = vmatprep.subr.mxu0 0.0
      %3969 = vmatpush1.msra.mxu0 0.0
      %3970 = vmatprep.subr.mxu0 0.0
      %3971 = vmatpush1.msra.mxu0 0.0
      %3972 = vmatprep.subr.mxu0 0.0
      %3973 = vmatpush1.msra.mxu0 0.0
      %3974 = vmatprep.subr.mxu0 0.0
      %3975 = vmatpush1.msra.mxu0 0.0
      %3976 = vmatprep.subr.mxu0 0.0
      %3977 = vmatpush1.msra.mxu0 0.0
      %3978 = vmatprep.subr.mxu0 0.0
      %3979 = vmatpush1.msra.mxu0 0.0
      %3980 = vmatprep.subr.mxu0 0.0
      %3981 = vmatpush1.msra.mxu0 0.0
      %3982 = vmatprep.subr.mxu0 0.0
      %3983 = vmatpush1.msra.mxu0 0.0
      %3984 = vmatprep.subr.mxu0 0.0
      %3985 = vmatpush1.msra.mxu0 %v3852
      %3986 = vmatprep.subr.mxu0 0.0
      %3987 = vmatpush1.msra.mxu0 %v3851
      %3988 = vmatprep.subr.mxu0 0.0
      %3989 = vmatpush2.msra.mxu0 0.0
      %3990 = vmatprep.subr.mxu0 0.0
      %3991 = vmatpush2.msra.mxu0 0.0
      %3992 = vmatprep.subr.mxu0 0.0
      %3993 = vmatpush2.msra.mxu0 0.0
      %3994 = vmatprep.subr.mxu0 0.0
      %3995 = vmatpush2.msra.mxu0 0.0
      %3996 = vmatprep.subr.mxu0 0.0
      %3997 = vmatpush2.msra.mxu0 0.0
      %3998 = vmatprep.subr.mxu0 0.0
      %3999 = vmatpush2.msra.mxu0 0.0
      %4000 = vmatprep.subr.mxu0 0.0
      %4001 = vmatpush2.msra.mxu0 0.0
      %4002 = vmatprep.subr.mxu0 0.0
      %4003 = vmatpush2.msra.mxu0 0.0
      %4004 = vmatprep.subr.mxu0 0.0
      %4005 = vmatpush2.msra.mxu0 0.0
      %4006 = vmatprep.subr.mxu0 0.0
      %4007 = vmatpush2.msra.mxu0 0.0
      %4008 = vmatprep.subr.mxu0 0.0
      %4009 = vmatpush2.msra.mxu0 0.0
      %4010 = vmatprep.subr.mxu0 0.0
      %4011 = vmatpush2.msra.mxu0 0.0
      %4012 = vmatprep.subr.mxu0 0.0
      %4013 = vmatpush2.msra.mxu0 0.0
      %4014 = vmatprep.subr.mxu0 0.0
      %4015 = vmatpush2.msra.mxu0 0.0
      %4016 = vmatprep.subr.mxu0 0.0
      %4017 = vmatpush2.msra.mxu0 0.0
      %4018 = vmatprep.subr.mxu0 0.0
      %4019 = vmatpush2.msra.mxu0 0.0
      %4020 = vmatprep.mubr.f32.mxu0 0.0
      %4021 = vmatmul.mubr.f32.gmra.mxu0 %v3861
      %v4022 = vpop.f32.mrf.mxu0
      %v4023 = vadd.f32 %v3858, %v4022
      %v4024 = vpop.f32.mrf.mxu0
      %4025 = vmatprep.mubr.f32.mxu0 0.0
      %4026 = vmatmul.mubr.f32.gmra.mxu0 %v3864
      %v4027 = vpop.f32.mrf.mxu0
      %v4028 = vadd.f32 %v3858, %v4027
      %v4029 = vpop.f32.mrf.mxu0
      %4030 = vmatprep.mubr.f32.mxu0 0.0
      %4031 = vmatmul.mubr.f32.gmra.mxu0 %v3867
      %v4032 = vpop.f32.mrf.mxu0
      %v4033 = vadd.f32 %v3858, %v4032
      %v4034 = vpop.f32.mrf.mxu0
      %4035 = vmatprep.mubr.f32.mxu0 0.0
      %4036 = vmatmul.mubr.f32.gmra.mxu0 %v3870
      %v4037 = vpop.f32.mrf.mxu0
      %v4038 = vadd.f32 %v3858, %v4037
      %v4039 = vpop.f32.mrf.mxu0
      %4040 = vmatprep.mubr.f32.mxu0 0.0
      %4041 = vmatmul.mubr.f32.gmra.mxu0 %v3873
      %v4042 = vpop.f32.mrf.mxu0
      %v4043 = vadd.f32 %v3858, %v4042
      %v4044 = vpop.f32.mrf.mxu0
      %4045 = vmatprep.mubr.f32.mxu0 0.0
      %4046 = vmatmul.mubr.f32.gmra.mxu0 %v3876
      %v4047 = vpop.f32.mrf.mxu0
      %v4048 = vadd.f32 %v3858, %v4047
      %v4049 = vpop.f32.mrf.mxu0
      %4050 = vmatprep.mubr.f32.mxu0 0.0
      %4051 = vmatmul.mubr.f32.gmra.mxu0 %v3879
      %v4052 = vpop.f32.mrf.mxu0
      %v4053 = vadd.f32 %v3858, %v4052
      %v4054 = vpop.f32.mrf.mxu0
      %4055 = vmatprep.mubr.f32.mxu0 0.0
      %4056 = vmatmul.mubr.f32.gmra.mxu0 %v3882
      %v4057 = vpop.f32.mrf.mxu0
      %v4058 = vadd.f32 %v3858, %v4057
      %v4059 = vpop.f32.mrf.mxu0
      %4060 = vmatprep.mubr.f32.mxu0 0.0
      %4061 = vmatmul.mubr.f32.gmra.mxu0 %v3885
      %v4062 = vpop.f32.mrf.mxu0
      %v4063 = vadd.f32 %v3858, %v4062
      %v4064 = vpop.f32.mrf.mxu0
      %4065 = vmatprep.mubr.f32.mxu0 0.0
      %4066 = vmatmul.mubr.f32.gmra.mxu0 %v3888
      %v4067 = vpop.f32.mrf.mxu0
      %v4068 = vadd.f32 %v3858, %v4067
      %v4069 = vpop.f32.mrf.mxu0
      %4070 = vmatprep.mubr.f32.mxu0 0.0
      %4071 = vmatmul.mubr.f32.gmra.mxu0 %v3891
      %v4072 = vpop.f32.mrf.mxu0
      %v4073 = vadd.f32 %v3858, %v4072
      %v4074 = vpop.f32.mrf.mxu0
      %4075 = vmatprep.mubr.f32.mxu0 0.0
      %4076 = vmatmul.mubr.f32.gmra.mxu0 %v3894
      %v4077 = vpop.f32.mrf.mxu0
      %v4078 = vadd.f32 %v3858, %v4077
      %v4079 = vpop.f32.mrf.mxu0
      %4080 = vmatprep.mubr.f32.mxu0 0.0
      %4081 = vmatmul.mubr.f32.gmra.mxu0 %v3897
      %v4082 = vpop.f32.mrf.mxu0
      %v4083 = vadd.f32 %v3858, %v4082
      %v4084 = vpop.f32.mrf.mxu0
      %4085 = vmatprep.mubr.f32.mxu0 0.0
      %4086 = vmatmul.mubr.f32.gmra.mxu0 %v3900
      %v4087 = vpop.f32.mrf.mxu0
      %v4088 = vadd.f32 %v3858, %v4087
      %v4089 = vpop.f32.mrf.mxu0
      %4090 = vmatprep.mubr.f32.mxu0 0.0
      %4091 = vmatmul.mubr.f32.gmra.mxu0 %v3903
      %v4092 = vpop.f32.mrf.mxu0
      %v4093 = vadd.f32 %v3858, %v4092
      %v4094 = vpop.f32.mrf.mxu0
      %4095 = vmatprep.mubr.f32.mxu0 0.0
      %4096 = vmatmul.mubr.f32.gmra.mxu0 %v3906
      %v4097 = vpop.f32.mrf.mxu0
      %v4098 = vadd.f32 %v3858, %v4097
      %v4099 = vpop.f32.mrf.mxu0
      %4100 = vmatprep.mubr.f32.mxu0 0.0
      %4101 = vmatmul.mubr.f32.gmra.mxu0 %v3909
      %v4102 = vpop.f32.mrf.mxu0
      %v4103 = vadd.f32 %v3858, %v4102
      %v4104 = vpop.f32.mrf.mxu0
      %4105 = vmatprep.mubr.f32.mxu0 0.0
      %4106 = vmatmul.mubr.f32.gmra.mxu0 %v3912
      %v4107 = vpop.f32.mrf.mxu0
      %v4108 = vadd.f32 %v3858, %v4107
      %v4109 = vpop.f32.mrf.mxu0
      %4110 = vmatprep.mubr.f32.mxu0 0.0
      %4111 = vmatmul.mubr.f32.gmra.mxu0 %v3915
      %v4112 = vpop.f32.mrf.mxu0
      %v4113 = vadd.f32 %v3858, %v4112
      %v4114 = vpop.f32.mrf.mxu0
      %4115 = vmatprep.mubr.f32.mxu0 0.0
      %4116 = vmatmul.mubr.f32.gmra.mxu0 %v3918
      %v4117 = vpop.f32.mrf.mxu0
      %v4118 = vadd.f32 %v3858, %v4117
      %v4119 = vpop.f32.mrf.mxu0
      %4120 = vmatprep.mubr.f32.mxu0 0.0
      %4121 = vmatmul.mubr.f32.gmra.mxu0 %v3921
      %v4122 = vpop.f32.mrf.mxu0
      %v4123 = vadd.f32 %v3858, %v4122
      %v4124 = vpop.f32.mrf.mxu0
      %4125 = vmatprep.mubr.f32.mxu0 0.0
      %4126 = vmatmul.mubr.f32.gmra.mxu0 %v3924
      %v4127 = vpop.f32.mrf.mxu0
      %v4128 = vadd.f32 %v3858, %v4127
      %v4129 = vpop.f32.mrf.mxu0
      %4130 = vmatprep.mubr.f32.mxu0 0.0
      %4131 = vmatmul.mubr.f32.gmra.mxu0 %v3927
      %v4132 = vpop.f32.mrf.mxu0
      %v4133 = vadd.f32 %v3858, %v4132
      %v4134 = vpop.f32.mrf.mxu0
      %4135 = vmatprep.mubr.f32.mxu0 0.0
      %4136 = vmatmul.mubr.f32.gmra.mxu0 %v3930
      %v4137 = vpop.f32.mrf.mxu0
      %v4138 = vadd.f32 %v3858, %v4137
      %v4139 = vpop.f32.mrf.mxu0
      %4140 = vmatprep.mubr.f32.mxu0 0.0
      %4141 = vmatmul.mubr.f32.gmra.mxu0 %v3933
      %v4142 = vpop.f32.mrf.mxu0
      %v4143 = vadd.f32 %v3858, %v4142
      %v4144 = vpop.f32.mrf.mxu0
      %4145 = vmatprep.mubr.f32.mxu0 0.0
      %4146 = vmatmul.mubr.f32.gmra.mxu0 %v3936
      %v4147 = vpop.f32.mrf.mxu0
      %v4148 = vadd.f32 %v3858, %v4147
      %v4149 = vpop.f32.mrf.mxu0
      %4150 = vmatprep.mubr.f32.mxu0 0.0
      %4151 = vmatmul.mubr.f32.gmra.mxu0 %v3939
      %v4152 = vpop.f32.mrf.mxu0
      %v4153 = vadd.f32 %v3858, %v4152
      %v4154 = vpop.f32.mrf.mxu0
      %4155 = vmatprep.mubr.f32.mxu0 0.0
      %4156 = vmatmul.mubr.f32.gmra.mxu0 %v3942
      %v4157 = vpop.f32.mrf.mxu0
      %v4158 = vadd.f32 %v3858, %v4157
      %v4159 = vpop.f32.mrf.mxu0
      %4160 = vmatprep.mubr.f32.mxu0 0.0
      %4161 = vmatmul.mubr.f32.gmra.mxu0 %v3945
      %v4162 = vpop.f32.mrf.mxu0
      %v4163 = vadd.f32 %v3858, %v4162
      %v4164 = vpop.f32.mrf.mxu0
      %4165 = vmatprep.mubr.f32.mxu0 0.0
      %4166 = vmatmul.mubr.f32.gmra.mxu0 %v3948
      %v4167 = vpop.f32.mrf.mxu0
      %v4168 = vadd.f32 %v3858, %v4167
      %v4169 = vpop.f32.mrf.mxu0
      %4170 = vmatprep.mubr.f32.mxu0 0.0
      %4171 = vmatmul.mubr.f32.gmra.mxu0 %v3951
      %v4172 = vpop.f32.mrf.mxu0
      %v4173 = vadd.f32 %v3858, %v4172
      %v4174 = vpop.f32.mrf.mxu0
      %4175 = vmatprep.mubr.f32.mxu0 0.0
      %4176 = vmatmul.mubr.f32.gmra.mxu0 %v3954
      %v4177 = vpop.f32.mrf.mxu0
      %v4178 = vadd.f32 %v3858, %v4177
      %v4179 = vpop.f32.mrf.mxu0
      %4180 = vdwg.mxu0
      %4181 = vst [vmem:[%s297] sm:$0xff] %v4023
      %4182 = vst [vmem:[%s297 + $0x8] sm:$0xff] %v4028
      %4183 = vst [vmem:[%s297 + $0x10] sm:$0xff] %v4033
      %4184 = vst [vmem:[%s297 + $0x18] sm:$0xff] %v4038
      %4185 = vst [vmem:[%s297 + $0x20] sm:$0xff] %v4043
      %4186 = vst [vmem:[%s297 + $0x28] sm:$0xff] %v4048
      %4187 = vst [vmem:[%s297 + $0x30] sm:$0xff] %v4053
      %4188 = vst [vmem:[%s297 + $0x38] sm:$0xff] %v4058
      %4189 = vst [vmem:[%s297 + $0x40] sm:$0xff] %v4063
      %4190 = vst [vmem:[%s297 + $0x48] sm:$0xff] %v4068
      %4191 = vst [vmem:[%s297 + $0x50] sm:$0xff] %v4073
      %4192 = vst [vmem:[%s297 + $0x58] sm:$0xff] %v4078
      %4193 = vst [vmem:[%s297 + $0x60] sm:$0xff] %v4083
      %4194 = vst [vmem:[%s297 + $0x68] sm:$0xff] %v4088
      %4195 = vst [vmem:[%s297 + $0x70] sm:$0xff] %v4093
      %4196 = vst [vmem:[%s297 + $0x78] sm:$0xff] %v4098
      %4197 = vst [vmem:[%s297 + $0x80] sm:$0xff] %v4103
      %4198 = vst [vmem:[%s297 + $0x88] sm:$0xff] %v4108
      %4199 = vst [vmem:[%s297 + $0x90] sm:$0xff] %v4113
      %4200 = vst [vmem:[%s297 + $0x98] sm:$0xff] %v4118
      %4201 = vst [vmem:[%s297 + $0xa0] sm:$0xff] %v4123
      %4202 = vst [vmem:[%s297 + $0xa8] sm:$0xff] %v4128
      %4203 = vst [vmem:[%s297 + $0xb0] sm:$0xff] %v4133
      %4204 = vst [vmem:[%s297 + $0xb8] sm:$0xff] %v4138
      %4205 = vst [vmem:[%s297 + $0xc0] sm:$0xff] %v4143
      %4206 = vst [vmem:[%s297 + $0xc8] sm:$0xff] %v4148
      %4207 = vst [vmem:[%s297 + $0xd0] sm:$0xff] %v4153
      %4208 = vst [vmem:[%s297 + $0xd8] sm:$0xff] %v4158
      %4209 = vst [vmem:[%s297 + $0xe0] sm:$0xff] %v4163
      %4210 = vst [vmem:[%s297 + $0xe8] sm:$0xff] %v4168
      %4211 = vst [vmem:[%s297 + $0xf0] sm:$0xff] %v4173
      %4212 = vst [vmem:[%s297 + $0xf8] sm:$0xff] %v4178
      %s4213 = smul.u32 32, %s23
      %p4214 = scmp.lt.s32.totalorder %s22, 1
      %s4215 = scalar_select %p4214, %s22, 1
      %p4216 = scmp.lt.s32.totalorder %s4213, 31
      %s4217 = scalar_select %p4216, %s4213, 31
      %s4218 = smul.addr %s4215, 32
      %s4219 = sadd.s32 %s4217, %s4218
      %s4220 = smul.addr %s4219, 8
      %s4221 = scalar_lea.vmem %s5, %s4220
      %s4222 = smul.u32 32, %s23
      %p4223 = scmp.lt.s32.totalorder %s22, 1
      %s4224 = scalar_select %p4223, %s22, 1
      %p4225 = scmp.lt.s32.totalorder %s4222, 31
      %s4226 = scalar_select %p4225, %s4222, 31
      %s4227 = smul.addr %s4224, 32
      %s4228 = sadd.s32 %s4226, %s4227
      %s4229 = smul.addr %s4228, 8
      %s4230 = scalar_lea.vmem %s6, %s4229
      // Predicated region
      $region41: #{shell2stage_forward.2} parent=39 // pred_check
        %p4231 = pneg %p160
      $region42: #{shell2stage_forward.2} parent=39 // pred_check_branch
        %4233 = sbr.rel (%p4231) target = $region44
      $region43: #{shell2stage_forward.2} parent=39 // pred_region
        %s4234 = smul.u32 32, %s23
      $region44: #{shell2stage_forward.2} parent=39 // pred_fallthru
        _
      // Predicated region
      $region45: #{shell2stage_forward.2} parent=39 // pred_check
        %p4235 = pneg %p188
      $region46: #{shell2stage_forward.2} parent=39 // pred_check_branch
        %4237 = sbr.rel (%p4235) target = $region48
      $region47: #{shell2stage_forward.2} parent=39 // pred_region
        %s4238 = smul.u32 32, %s23
      $region48: #{shell2stage_forward.2} parent=39 // pred_fallthru
        _
    $region40: #{shell2stage_forward.2} parent=5 // pred_fallthru
      _
    %p4239 = scmp.le.s32.totalorder 2, %s13
    // Predicated region
    $region49: #{shell2stage_forward.2} parent=5 // pred_check
      %p4240 = pneg %p4239
    $region50: #{shell2stage_forward.2} parent=5 // pred_check_branch
      %4242 = sbr.rel (%p4240) target = $region52
    $region51: #{shell2stage_forward.2} parent=5 // pred_region
      %s4243 = ssub.s32 %s13, 2
      // Predicated region
      $region53: #{shell2stage_forward.2} parent=51 // pred_check
        %p4244 = pneg %p166
      $region54: #{shell2stage_forward.2} parent=51 // pred_check_branch
        %4246 = sbr.rel (%p4244) target = $region56
      $region55: #{shell2stage_forward.2} parent=51 // pred_region
        %s4247 = smul.u32 32, %s25
        %p4248 = scmp.lt.s32.totalorder %s24, 1
        %s4249 = scalar_select %p4248, %s24, 1
        %p4250 = scmp.lt.s32.totalorder %s4247, 31
        %s4251 = scalar_select %p4250, %s4247, 31
        %s4252 = smul.addr %s4249, 32
        %s4253 = sadd.s32 %s4251, %s4252
        %s4254 = smul.addr %s4253, 8
        %s4255 = scalar_lea.vmem %s5, %s4254
      $region56: #{shell2stage_forward.2} parent=51 // pred_fallthru
        _
      // Predicated region
      $region57: #{shell2stage_forward.2} parent=51 // pred_check
        %p4256 = pneg %p194
      $region58: #{shell2stage_forward.2} parent=51 // pred_check_branch
        %4258 = sbr.rel (%p4256) target = $region60
      $region59: #{shell2stage_forward.2} parent=51 // pred_region
        %s4259 = smul.u32 32, %s25
        %p4260 = scmp.lt.s32.totalorder %s24, 1
        %s4261 = scalar_select %p4260, %s24, 1
        %p4262 = scmp.lt.s32.totalorder %s4259, 31
        %s4263 = scalar_select %p4262, %s4259, 31
        %s4264 = smul.addr %s4261, 32
        %s4265 = sadd.s32 %s4263, %s4264
        %s4266 = smul.addr %s4265, 8
        %s4267 = scalar_lea.vmem %s6, %s4266
      $region60: #{shell2stage_forward.2} parent=51 // pred_fallthru
        _
    $region52: #{shell2stage_forward.2} parent=5 // pred_fallthru
      _
  $region6: #{shell2stage_forward.2} parent=0 // loop_footer
    %s17 = sadd.s32 1, %s13
  $region7: #{shell2stage_forward.2} parent=0 // loop_footer_branch
    %12 = sbr.rel target = $region3
  $region8: #{shell2stage_forward.2} parent=0 // loop_exit
    _

</llo_original>
